<compile_context>
chip_gen: v5e
topology: v5e:2x2
jax: 0.10.0
libtpu: 0.0.40
codegen_flags: <defaults>
</compile_context>

<pallas_src>
import functools

import numpy as np
import jax
import jax.numpy as jnp
from jax.experimental import pallas as pl
from jax.experimental.pallas import tpu as pltpu


# ----------------------------------------------------------------------------- #
# Static architecture config (kept OUT of the parameter pytree)
# ----------------------------------------------------------------------------- #
IMG = 22
IN_CHANS = 30
PATCH = 4
EMBED_DIM = 192
DEPTHS = (2, 2, 18, 2)
NUM_HEADS = (6, 12, 24, 48)
WINDOW = 7
NUM_CLASSES = 2
ECA_DIM = 484          # true ECA hidden size
ECA_PAD = 512          # lane-padded ECA hidden size (multiple of 128)
LN_EPS = 1e-5


def _stage_config():
    res = -(-IMG // PATCH)        # 22 -> pad to 24 -> 6
    C = EMBED_DIM
    stages = []
    for si, (depth, heads) in enumerate(zip(DEPTHS, NUM_HEADS)):
        ws = min(WINDOW, res)     # always == res for this input size
        stages.append(dict(depth=depth, heads=heads, res=res, C=C, ws=ws,
                           has_down=si < len(DEPTHS) - 1))
        if si < len(DEPTHS) - 1:
            res = (res + 1) // 2
            C *= 2
    return stages, res, C


STAGES, FINAL_RES, FINAL_C = _stage_config()


# ----------------------------------------------------------------------------- #
# Small helpers
# ----------------------------------------------------------------------------- #
def _gelu(x):
    # TODO(synk): torch nn.GELU defaults to exact erf-GELU; tanh approximation used
    # in-kernel (rides the EUP slot).
    c = jnp.float32(0.7978845608028654)
    return 0.5 * x * (1.0 + jnp.tanh(c * (x + 0.044715 * x * x * x)))


def _n_tile(K, N, itemsize, max_bytes=8 * 1024 * 1024):
    """Largest multiple-of-128 divisor of N whose (K, tn) weight tile fits max_bytes."""
    if N % 128 != 0:
        return N
    for k in range(N // 128, 0, -1):
        tn = 128 * k
        if N % tn == 0 and K * tn * itemsize <= max_bytes:
            return tn
    return N


def _h_tile(C, H4, itemsize, max_bytes=10 * 1024 * 1024):
    """Hidden-dim tile for the fused MLP: both (C,th) and (th,C) tiles fit max_bytes."""
    if H4 % 128 != 0:
        return H4
    for k in range(H4 // 128, 0, -1):
        th = 128 * k
        if H4 % th == 0 and 2 * C * th * itemsize <= max_bytes:
            return th
    return H4


# ----------------------------------------------------------------------------- #
# Pallas kernels
# ----------------------------------------------------------------------------- #
def _ln_linear_kernel(x_ref, g_ref, bln_ref, w_ref, b_ref, o_ref, *, eps, act):
    """o = act(LayerNorm(x) @ w + b); grid over N tiles (LN recompute is trivial)."""
    x = x_ref[...].astype(jnp.float32)
    mu = jnp.mean(x, axis=-1, keepdims=True)
    var = jnp.mean(jnp.square(x - mu), axis=-1, keepdims=True)
    xn = (x - mu) * jax.lax.rsqrt(var + eps) * g_ref[...] + bln_ref[...]
    r = jnp.dot(xn.astype(w_ref.dtype), w_ref[...],
                preferred_element_type=jnp.float32) + b_ref[...]
    if act == "gelu":
        r = _gelu(r)
    o_ref[...] = r.astype(o_ref.dtype)


def pallas_ln_linear(x, g, beta, w, b=None, act=None, eps=LN_EPS):
    M, K = x.shape
    K2, N = w.shape
    assert K == K2
    if b is None:
        b = jnp.zeros((N,), jnp.float32)
    tn = _n_tile(K, N, w.dtype.itemsize)
    return pl.pallas_call(
        functools.partial(_ln_linear_kernel, eps=eps, act=act),
        out_shape=jax.ShapeDtypeStruct((M, N), jnp.float32),
        grid=(N // tn,),
        in_specs=[
            pl.BlockSpec((M, K), lambda n: (0, 0)),
            pl.BlockSpec((1, K), lambda n: (0, 0)),
            pl.BlockSpec((1, K), lambda n: (0, 0)),
            pl.BlockSpec((K, tn), lambda n: (0, n)),
            pl.BlockSpec((1, tn), lambda n: (0, n)),
        ],
        out_specs=pl.BlockSpec((M, tn), lambda n: (0, n)),
        compiler_params=pltpu.CompilerParams(dimension_semantics=("parallel",)),
    )(x, g.reshape(1, K), beta.reshape(1, K), w, b.reshape(1, N))


def _linear_kernel(x_ref, w_ref, b_ref, o_ref, *, act):
    r = jnp.dot(x_ref[...].astype(w_ref.dtype), w_ref[...],
                preferred_element_type=jnp.float32) + b_ref[...]
    if act == "gelu":
        r = _gelu(r)
    o_ref[...] = r.astype(o_ref.dtype)


def pallas_linear(x, w, b=None, act=None):
    M, K = x.shape
    K2, N = w.shape
    assert K == K2
    if b is None:
        b = jnp.zeros((N,), jnp.float32)
    tn = _n_tile(K, N, w.dtype.itemsize)
    return pl.pallas_call(
        functools.partial(_linear_kernel, act=act),
        out_shape=jax.ShapeDtypeStruct((M, N), jnp.float32),
        grid=(N // tn,),
        in_specs=[
            pl.BlockSpec((M, K), lambda n: (0, 0)),
            pl.BlockSpec((K, tn), lambda n: (0, n)),
            pl.BlockSpec((1, tn), lambda n: (0, n)),
        ],
        out_specs=pl.BlockSpec((M, tn), lambda n: (0, n)),
        compiler_params=pltpu.CompilerParams(dimension_semantics=("parallel",)),
    )(x, w, b.reshape(1, N))


def _linear_ln_kernel(x_ref, w_ref, b_ref, g_ref, beta_ref, o_ref, *, eps):
    """o = LayerNorm(x @ w + b)  — used for patch embedding (single tile)."""
    r = jnp.dot(x_ref[...].astype(w_ref.dtype), w_ref[...],
                preferred_element_type=jnp.float32) + b_ref[...]
    mu = jnp.mean(r, axis=-1, keepdims=True)
    var = jnp.mean(jnp.square(r - mu), axis=-1, keepdims=True)
    o_ref[...] = ((r - mu) * jax.lax.rsqrt(var + eps) * g_ref[...]
                  + beta_ref[...]).astype(o_ref.dtype)


def pallas_linear_ln(x, w, b, g, beta, eps=LN_EPS):
    M, K = x.shape
    _, N = w.shape
    return pl.pallas_call(
        functools.partial(_linear_ln_kernel, eps=eps),
        out_shape=jax.ShapeDtypeStruct((M, N), jnp.float32),
        grid=(1,),
        in_specs=[
            pl.BlockSpec((M, K), lambda i: (0, 0)),
            pl.BlockSpec((K, N), lambda i: (0, 0)),
            pl.BlockSpec((1, N), lambda i: (0, 0)),
            pl.BlockSpec((1, N), lambda i: (0, 0)),
            pl.BlockSpec((1, N), lambda i: (0, 0)),
        ],
        out_specs=pl.BlockSpec((M, N), lambda i: (0, 0)),
    )(x, w, b.reshape(1, N), g.reshape(1, N), beta.reshape(1, N))


def _layernorm_kernel(x_ref, g_ref, b_ref, o_ref, *, eps):
    x = x_ref[...].astype(jnp.float32)
    mu = jnp.mean(x, axis=-1, keepdims=True)
    var = jnp.mean(jnp.square(x - mu), axis=-1, keepdims=True)
    o_ref[...] = ((x - mu) * jax.lax.rsqrt(var + eps) * g_ref[...]
                  + b_ref[...]).astype(o_ref.dtype)


def pallas_layernorm(x, gamma, beta, eps=LN_EPS):
    M, C = x.shape
    return pl.pallas_call(
        functools.partial(_layernorm_kernel, eps=eps),
        out_shape=jax.ShapeDtypeStruct((M, C), jnp.float32),
        grid=(1,),
        in_specs=[
            pl.BlockSpec((M, C), lambda i: (0, 0)),
            pl.BlockSpec((1, C), lambda i: (0, 0)),
            pl.BlockSpec((1, C), lambda i: (0, 0)),
        ],
        out_specs=pl.BlockSpec((M, C), lambda i: (0, 0)),
    )(x, gamma.reshape(1, C), beta.reshape(1, C))


def _swin_attn_kernel(qkv_ref, rpb_ref, wp_ref, bp_ref, x_ref, o_ref,
                      *, heads, dh, scale):
    """All-heads window attention + output projection + residual, per batch element."""
    T = x_ref.shape[1]
    C = x_ref.shape[2]
    qkv = qkv_ref[0]                                         # (T, 3C) f32
    acc = jnp.zeros((T, C), jnp.float32)
    for h in range(heads):                                   # static unroll (<= 48)
        qh = qkv[:, h * dh:(h + 1) * dh]
        kh = qkv[:, C + h * dh:C + (h + 1) * dh]
        vh = qkv[:, 2 * C + h * dh:2 * C + (h + 1) * dh]
        s = jnp.einsum('td,sd->ts', qh, kh,
                       preferred_element_type=jnp.float32) * scale
        s = s + rpb_ref[h]
        m = jnp.max(s, axis=-1, keepdims=True)
        p = jnp.exp(s - m)
        p = p * pl.reciprocal(jnp.sum(p, axis=-1, keepdims=True), approx=True)
        ctx_h = jnp.dot(p, vh, preferred_element_type=jnp.float32)      # (T, dh)
        # fold the output projection into the head loop: acc += ctx_h @ Wp[h-rows]
        acc = acc + jnp.dot(ctx_h.astype(wp_ref.dtype),
                            wp_ref[h * dh:(h + 1) * dh, :],
                            preferred_element_type=jnp.float32)
    out = acc + bp_ref[...] + x_ref[0].astype(jnp.float32)
    o_ref[0] = out.astype(o_ref.dtype)


def pallas_swin_attention(qkv, rpb, wp, bp, x, heads, scale):
    B, T, C3 = qkv.shape
    C = C3 // 3
    dh = C // heads
    return pl.pallas_call(
        functools.partial(_swin_attn_kernel, heads=heads, dh=dh, scale=scale),
        out_shape=jax.ShapeDtypeStruct((B, T, C), jnp.float32),
        grid=(B,),
        in_specs=[
            pl.BlockSpec((1, T, 3 * C), lambda b: (b, 0, 0)),
            pl.BlockSpec((heads, T, T), lambda b: (0, 0, 0)),   # shared, not batched
            pl.BlockSpec((C, C), lambda b: (0, 0)),
            pl.BlockSpec((1, C), lambda b: (0, 0)),
            pl.BlockSpec((1, T, C), lambda b: (b, 0, 0)),
        ],
        out_specs=pl.BlockSpec((1, T, C), lambda b: (b, 0, 0)),
        compiler_params=pltpu.CompilerParams(dimension_semantics=("parallel",)),
    )(qkv, rpb, wp, bp.reshape(1, C), x)


def _mlp_kernel(x_ref, g_ref, bln_ref, w1_ref, b1_ref, w2_ref, b2_ref,
                o_ref, xn_ref, acc_ref, *, eps):
    """o = x + fc2(GELU(fc1(LayerNorm(x))));  grid streams the hidden dimension."""
    h = pl.program_id(0)

    @pl.when(h == 0)
    def _():
        x = x_ref[...].astype(jnp.float32)
        mu = jnp.mean(x, axis=-1, keepdims=True)
        var = jnp.mean(jnp.square(x - mu), axis=-1, keepdims=True)
        xn_ref[...] = (x - mu) * jax.lax.rsqrt(var + eps) * g_ref[...] + bln_ref[...]
        acc_ref[...] = jnp.zeros_like(acc_ref)

    hid = jnp.dot(xn_ref[...].astype(w1_ref.dtype), w1_ref[...],
                  preferred_element_type=jnp.float32) + b1_ref[...]
    hid = _gelu(hid)
    acc_ref[...] += jnp.dot(hid.astype(w2_ref.dtype), w2_ref[...],
                            preferred_element_type=jnp.float32)

    @pl.when(h == pl.num_programs(0) - 1)
    def _():
        o_ref[...] = (acc_ref[...] + b2_ref[...]
                      + x_ref[...].astype(jnp.float32)).astype(o_ref.dtype)


def pallas_swin_mlp(x, g, beta, w1, b1, w2, b2, eps=LN_EPS):
    M, C = x.shape
    _, H4 = w1.shape
    th = _h_tile(C, H4, w1.dtype.itemsize)
    return pl.pallas_call(
        functools.partial(_mlp_kernel, eps=eps),
        out_shape=jax.ShapeDtypeStruct((M, C), jnp.float32),
        grid=(H4 // th,),
        in_specs=[
            pl.BlockSpec((M, C), lambda h: (0, 0)),     # x (residual + LN input)
            pl.BlockSpec((1, C), lambda h: (0, 0)),     # LN gamma
            pl.BlockSpec((1, C), lambda h: (0, 0)),     # LN beta
            pl.BlockSpec((C, th), lambda h: (0, h)),    # fc1 weight tile (bf16)
            pl.BlockSpec((1, th), lambda h: (0, h)),    # fc1 bias tile
            pl.BlockSpec((th, C), lambda h: (h, 0)),    # fc2 weight tile (bf16)
            pl.BlockSpec((1, C), lambda h: (0, 0)),     # fc2 bias
        ],
        out_specs=pl.BlockSpec((M, C), lambda h: (0, 0)),
        scratch_shapes=[pltpu.VMEM((M, C), jnp.float32),
                        pltpu.VMEM((M, C), jnp.float32)],
        compiler_params=pltpu.CompilerParams(dimension_semantics=("arbitrary",)),
    )(x, g.reshape(1, C), beta.reshape(1, C), w1, b1.reshape(1, H4),
      w2, b2.reshape(1, C))


def _eca_kernel(x_ref, wqkv_ref, bqkv_ref, wo_ref, bo_ref, g_ref, beta_ref, o_ref,
                *, scale, true_dim, eps):
    """Whole ECA block (QKV + single-head attention + out proj + residual + LN)."""
    xf = x_ref[0].astype(jnp.float32)                        # (T, HP), padded lanes = 0
    HP = xf.shape[-1]
    qkv = jnp.dot(xf.astype(wqkv_ref.dtype), wqkv_ref[...],
                  preferred_element_type=jnp.float32) + bqkv_ref[...]
    q = qkv[:, :HP]
    k = qkv[:, HP:2 * HP]
    v = qkv[:, 2 * HP:]
    s = jnp.einsum('td,sd->ts', q, k, preferred_element_type=jnp.float32) * scale
    m = jnp.max(s, axis=-1, keepdims=True)
    p = jnp.exp(s - m)
    p = p * pl.reciprocal(jnp.sum(p, axis=-1, keepdims=True), approx=True)
    ctx = jnp.dot(p, v, preferred_element_type=jnp.float32)
    out = jnp.dot(ctx.astype(wo_ref.dtype), wo_ref[...],
                  preferred_element_type=jnp.float32) + bo_ref[...] + xf
    # LayerNorm over the true (unpadded) channel count; padded lanes are exactly zero.
    inv_n = jnp.float32(1.0 / true_dim)
    mu = jnp.sum(out, axis=-1, keepdims=True) * inv_n
    var = jnp.maximum(jnp.sum(out * out, axis=-1, keepdims=True) * inv_n - mu * mu, 0.0)
    y = (out - mu) * jax.lax.rsqrt(var + eps) * g_ref[...] + beta_ref[...]
    o_ref[0] = y.astype(o_ref.dtype)


def pallas_eca(x, p, true_dim, eps=LN_EPS):
    B, T, HP = x.shape
    scale = 1.0 / float(np.sqrt(true_dim))
    return pl.pallas_call(
        functools.partial(_eca_kernel, scale=scale, true_dim=true_dim, eps=eps),
        out_shape=jax.ShapeDtypeStruct((B, T, HP), jnp.float32),
        grid=(B,),
        in_specs=[
            pl.BlockSpec((1, T, HP), lambda b: (b, 0, 0)),
            pl.BlockSpec((HP, 3 * HP), lambda b: (0, 0)),
            pl.BlockSpec((1, 3 * HP), lambda b: (0, 0)),
            pl.BlockSpec((HP, HP), lambda b: (0, 0)),
            pl.BlockSpec((1, HP), lambda b: (0, 0)),
            pl.BlockSpec((1, HP), lambda b: (0, 0)),
            pl.BlockSpec((1, HP), lambda b: (0, 0)),
        ],
        out_specs=pl.BlockSpec((1, T, HP), lambda b: (b, 0, 0)),
        compiler_params=pltpu.CompilerParams(dimension_semantics=("parallel",)),
    )(x, p["wqkv"], p["bqkv"].reshape(1, -1), p["wo"], p["bo"].reshape(1, -1),
      p["ln_g"].reshape(1, -1), p["ln_b"].reshape(1, -1))


# ----------------------------------------------------------------------------- #
# Parameter construction (deterministic, synthetic)
# ----------------------------------------------------------------------------- #
class ParamGen:
    def __init__(self, seed=0):
        self._key = jax.random.PRNGKey(seed)

    def _next(self):
        self._key, sub = jax.random.split(self._key)
        return sub

    def normal(self, shape, scale=0.02):
        return scale * jax.random.normal(self._next(), shape, dtype=jnp.float32)

    def zeros(self, shape):
        return jnp.zeros(shape, jnp.float32)

    def ones(self, shape):
        return jnp.ones(shape, jnp.float32)


def relative_position_index(ws):
    coords = np.stack(np.meshgrid(np.arange(ws), np.arange(ws), indexing="ij"))
    coords_flat = coords.reshape(2, -1)
    rel = coords_flat[:, :, None] - coords_flat[:, None, :]
    rel = rel.transpose(1, 2, 0).astype(np.int64)
    rel[:, :, 0] += ws - 1
    rel[:, :, 1] += ws - 1
    rel[:, :, 0] *= 2 * ws - 1
    return rel.sum(-1)  # (ws*ws, ws*ws)


def init_model(seed=0):
    pg = ParamGen(seed)
    params = {}

    # ---- ECA (single-head channel self-attention over 30 tokens of dim 484) ----
    H, HP = ECA_DIM, ECA_PAD

    def padw(w):
        return jnp.pad(w, ((0, HP - H), (0, HP - H)))

    def padv(v):
        return jnp.pad(v, (0, HP - H))

    wq, bq = pg.normal((H, H)), pg.zeros((H,))
    wk, bk = pg.normal((H, H)), pg.zeros((H,))
    wv, bv = pg.normal((H, H)), pg.zeros((H,))
    wo, bo = pg.normal((H, H)), pg.zeros((H,))
    params["eca"] = dict(
        wqkv=jnp.concatenate([padw(wq), padw(wk), padw(wv)], axis=1).astype(jnp.bfloat16),
        bqkv=jnp.concatenate([padv(bq), padv(bk), padv(bv)]),
        wo=padw(wo).astype(jnp.bfloat16),
        bo=padv(bo),
        ln_g=padv(pg.ones((H,))),      # zeros in padded lanes
        ln_b=padv(pg.zeros((H,))),
    )

    # ---- SwinTransformer(in_chans=30, num_classes=2, embed_dim=192,
    #                      depths=(2,2,18,2), num_heads=(6,12,24,48)) ----
    swin = {}
    swin["patch_embed"] = dict(
        w=pg.normal((IN_CHANS * PATCH * PATCH, EMBED_DIM)).astype(jnp.bfloat16),
        b=pg.zeros((EMBED_DIM,)),
        n_g=pg.ones((EMBED_DIM,)), n_b=pg.zeros((EMBED_DIM,)),
    )

    layers = []
    for st in STAGES:
        C, heads, ws = st["C"], st["heads"], st["ws"]
        T = ws * ws
        idx = relative_position_index(ws).reshape(-1)
        blocks = []
        for _ in range(st["depth"]):
            table = pg.normal(((2 * ws - 1) ** 2, heads))
            # pre-gather the relative position bias to (heads, T, T) once at init
            rpb_bias = jnp.asarray(
                table[idx].reshape(T, T, heads).transpose(2, 0, 1), jnp.float32)
            blocks.append(dict(
                n1_g=pg.ones((C,)), n1_b=pg.zeros((C,)),
                qkv_w=pg.normal((C, 3 * C)).astype(jnp.bfloat16),
                qkv_b=pg.zeros((3 * C,)),
                rpb_bias=rpb_bias,
                proj_w=pg.normal((C, C)).astype(jnp.bfloat16),
                proj_b=pg.zeros((C,)),
                n2_g=pg.ones((C,)), n2_b=pg.zeros((C,)),
                fc1_w=pg.normal((C, 4 * C)).astype(jnp.bfloat16),
                fc1_b=pg.zeros((4 * C,)),
                fc2_w=pg.normal((4 * C, C)).astype(jnp.bfloat16),
                fc2_b=pg.zeros((C,)),
            ))
        layer = dict(blocks=blocks)
        if st["has_down"]:
            layer["downsample"] = dict(
                n_g=pg.ones((4 * C,)), n_b=pg.zeros((4 * C,)),
                red_w=pg.normal((4 * C, 2 * C)).astype(jnp.bfloat16),  # Linear(4C,2C,bias=False)
            )
        layers.append(layer)

    swin["layers"] = layers
    swin["norm_g"] = pg.ones((FINAL_C,))
    swin["norm_b"] = pg.zeros((FINAL_C,))
    swin["head_w"] = pg.normal((FINAL_C, NUM_CLASSES)).astype(jnp.bfloat16)
    swin["head_b"] = pg.zeros((NUM_CLASSES,))
    params["swin"] = swin
    return params


# ----------------------------------------------------------------------------- #
# Model forward (glue in plain JAX, hot path in fused Pallas kernels)
# ----------------------------------------------------------------------------- #
def eca_forward(p, x):
    """x: (B, 30, 484) -> (B, 30, 484).  One pallas_call, grid=(B,)."""
    B, T, H = x.shape
    xp = jnp.pad(x, ((0, 0), (0, 0), (0, ECA_PAD - H)))
    y = pallas_eca(xp, p, true_dim=H)
    return y[..., :H]


def swin_block_forward(blk, x, B, res, C, heads):
    """x: (B*res*res, C).  At these resolutions one window covers the full map."""
    T = res * res
    dh = C // heads
    # (a) LN1 + QKV projection (weight streaming, batch rows folded together)
    qkv = pallas_ln_linear(x, blk["n1_g"], blk["n1_b"], blk["qkv_w"], blk["qkv_b"])
    qkv = qkv.reshape(B, T, 3 * C)
    # (b) window attention (all heads) + output projection + residual
    attn = pallas_swin_attention(qkv, blk["rpb_bias"], blk["proj_w"], blk["proj_b"],
                                 x.reshape(B, T, C), heads, scale=float(dh) ** -0.5)
    x = attn.reshape(B * T, C)
    # (c) LN2 + fc1 + GELU + fc2 + residual
    x = pallas_swin_mlp(x, blk["n2_g"], blk["n2_b"], blk["fc1_w"], blk["fc1_b"],
                        blk["fc2_w"], blk["fc2_b"])
    return x


def patch_merging_forward(p, x, B, res, C):
    x = x.reshape(B, res, res, C)
    rp = res + (res % 2)  # pad odd resolutions (original Swin does the same)
    x = jnp.pad(x, ((0, 0), (0, rp - res), (0, rp - res), (0, 0)))
    x0 = x[:, 0::2, 0::2, :]
    x1 = x[:, 1::2, 0::2, :]
    x2 = x[:, 0::2, 1::2, :]
    x3 = x[:, 1::2, 1::2, :]
    new_res = rp // 2
    xc = jnp.concatenate([x0, x1, x2, x3], axis=-1).reshape(B * new_res * new_res, 4 * C)
    out = pallas_ln_linear(xc, p["n_g"], p["n_b"], p["red_w"], None)   # LN + reduction
    return out, new_res


def patch_embed_forward(p, x):
    """x: (B, 30, 22, 22) NCHW -> tokens (B*6*6, 192)."""
    B, Cin, Hin, Win = x.shape
    ps = PATCH
    Hp = -(-Hin // ps) * ps
    Wp = -(-Win // ps) * ps
    x = jnp.pad(x, ((0, 0), (0, 0), (0, Hp - Hin), (0, Wp - Win)))
    Ho, Wo = Hp // ps, Wp // ps
    # unfold: numerically identical to Conv2d(k=4, s=4) with flattened (Cin,kh,kw) weight
    x = x.reshape(B, Cin, Ho, ps, Wo, ps).transpose(0, 2, 4, 1, 3, 5)
    x = x.reshape(B * Ho * Wo, Cin * ps * ps)
    x = pallas_linear_ln(x, p["w"], p["b"], p["n_g"], p["n_b"])
    return x, Ho


def swin_forward(p, x):
    B = x.shape[0]
    tokens, res = patch_embed_forward(p["patch_embed"], x)
    for st, layer in zip(STAGES, p["layers"]):
        C, heads = st["C"], st["heads"]
        for blk in layer["blocks"]:
            tokens = swin_block_forward(blk, tokens, B, res, C, heads)
        if "downsample" in layer:
            tokens, res = patch_merging_forward(layer["downsample"], tokens, B, res, C)
    tokens = pallas_layernorm(tokens, p["norm_g"], p["norm_b"])
    pooled = tokens.reshape(B, res * res, FINAL_C).mean(axis=1)   # avgpool (glue)
    logits = pallas_linear(pooled, p["head_w"], p["head_b"])
    return logits


def model_forward(params, x):
    B = x.shape[0]
    x = x.reshape(B, IN_CHANS, ECA_DIM)
    x = eca_forward(params["eca"], x)
    x = x.reshape(B, IN_CHANS, IMG, IMG)
    return swin_forward(params["swin"], x)


# ----------------------------------------------------------------------------- #
if __name__ == "__main__":
    key = jax.random.PRNGKey(0)
    x = jax.random.normal(key, (2, 30, 22, 22), dtype=jnp.float32)
    params = init_model(seed=0)
    logits = model_forward(params, x)
    logits = jax.block_until_ready(logits)
    assert logits.shape == (2, NUM_CLASSES), logits.shape
    assert bool(jnp.all(jnp.isfinite(logits)))
    print("KERNEL_OK")
</pallas_src>

<mosaic_0001>
module attributes {stable_mosaic.version = 11 : i64} {
  func.func @_eca_kernel(%arg0: i32, %arg1: memref<1x30x512xf32, #tpu.memory_space<vmem>>, %arg2: memref<512x1536xbf16, #tpu.memory_space<vmem>>, %arg3: memref<1x1536xf32, #tpu.memory_space<vmem>>, %arg4: memref<512x512xbf16, #tpu.memory_space<vmem>>, %arg5: memref<1x512xf32, #tpu.memory_space<vmem>>, %arg6: memref<1x512xf32, #tpu.memory_space<vmem>>, %arg7: memref<1x512xf32, #tpu.memory_space<vmem>>, %arg8: memref<1x30x512xf32, #tpu.memory_space<vmem>>) attributes {dimension_semantics = [#tpu.dimension_semantics<parallel>], iteration_bounds = array<i64: 2>, scalar_prefetch = 0 : i64, scratch_operands = 0 : i64, tpu.core_type = #tpu.core_type<tc>, window_params = [{transform_indices = @transform_0, window_bounds = array<i64: 1, 30, 512>}, {pipeline_mode = #tpu.pipeline_mode<synchronous>, transform_indices = @transform_1, window_bounds = array<i64: 512, 1536>}, {pipeline_mode = #tpu.pipeline_mode<synchronous>, transform_indices = @transform_2, window_bounds = array<i64: 1, 1536>}, {pipeline_mode = #tpu.pipeline_mode<synchronous>, transform_indices = @transform_3, window_bounds = array<i64: 512, 512>}, {pipeline_mode = #tpu.pipeline_mode<synchronous>, transform_indices = @transform_4, window_bounds = array<i64: 1, 512>}, {pipeline_mode = #tpu.pipeline_mode<synchronous>, transform_indices = @transform_5, window_bounds = array<i64: 1, 512>}, {pipeline_mode = #tpu.pipeline_mode<synchronous>, transform_indices = @transform_6, window_bounds = array<i64: 1, 512>}, {transform_indices = @transform_7, window_bounds = array<i64: 1, 30, 512>}]} {
    %c0 = arith.constant 0 : index
    %c0_0 = arith.constant 0 : index
    %c0_1 = arith.constant 0 : index
    %0 = vector.load %arg1[%c0, %c0_0, %c0_1] : memref<1x30x512xf32, #tpu.memory_space<vmem>>, vector<1x30x512xf32>
    %1 = vector.shape_cast %0 : vector<1x30x512xf32> to vector<30x512xf32>
    %2 = arith.truncf %1 : vector<30x512xf32> to vector<30x512xbf16>
    %c0_2 = arith.constant 0 : index
    %c0_3 = arith.constant 0 : index
    %3 = vector.load %arg2[%c0_2, %c0_3] : memref<512x1536xbf16, #tpu.memory_space<vmem>>, vector<512x1536xbf16>
    %cst = arith.constant dense<0.000000e+00> : vector<30x1536xf32>
    %4 = tpu.matmul %2, %3, %cst {dimension_numbers = #tpu.dot_dimension_numbers<[1], [0], [0], [1], [0, 0, 1, 1], [], []>} : vector<30x512xbf16>, vector<512x1536xbf16>, vector<30x1536xf32> -> vector<30x1536xf32>
    %c0_4 = arith.constant 0 : index
    %c0_5 = arith.constant 0 : index
    %5 = vector.load %arg3[%c0_4, %c0_5] : memref<1x1536xf32, #tpu.memory_space<vmem>>, vector<1x1536xf32>
    %6 = vector.broadcast %5 : vector<1x1536xf32> to vector<30x1536xf32>
    %7 = arith.addf %4, %6 : vector<30x1536xf32>
    %8 = vector.extract_strided_slice %7 {offsets = [0, 0], sizes = [30, 512], strides = [1, 1]} : vector<30x1536xf32> to vector<30x512xf32>
    %9 = vector.extract_strided_slice %7 {offsets = [0, 512], sizes = [30, 512], strides = [1, 1]} : vector<30x1536xf32> to vector<30x512xf32>
    %10 = vector.extract_strided_slice %7 {offsets = [0, 1024], sizes = [30, 512], strides = [1, 1]} : vector<30x1536xf32> to vector<30x512xf32>
    "tpu.trace_start"() <{level = 10 : i32, message = "td,sd->ts"}> : () -> ()
    %cst_6 = arith.constant dense<0.000000e+00> : vector<30x30xf32>
    %11 = tpu.matmul %8, %9, %cst_6 {dimension_numbers = #tpu.dot_dimension_numbers<[1], [1], [0], [0], [0, 0, 1, 0], [], []>} : vector<30x512xf32>, vector<30x512xf32>, vector<30x30xf32> -> vector<30x30xf32>
    "tpu.trace_stop"() : () -> ()
    %cst_7 = arith.constant 0.0454545468 : f32
    %12 = vector.broadcast %cst_7 : f32 to vector<30x30xf32>
    %13 = arith.mulf %11, %12 : vector<30x30xf32>
    %cst_8 = arith.constant dense<0xFF800000> : vector<30xf32>
    %14 = vector.multi_reduction <maximumf>, %13, %cst_8 [1] : vector<30x30xf32> to vector<30xf32>
    %15 = vector.shape_cast %14 : vector<30xf32> to vector<30x1xf32>
    %16 = vector.broadcast %15 : vector<30x1xf32> to vector<30x30xf32>
    %17 = arith.subf %13, %16 : vector<30x30xf32>
    %18 = math.exp %17 : vector<30x30xf32>
    %cst_9 = arith.constant dense<0.000000e+00> : vector<30xf32>
    %19 = vector.multi_reduction <add>, %18, %cst_9 [1] : vector<30x30xf32> to vector<30xf32>
    %20 = vector.shape_cast %19 : vector<30xf32> to vector<30x1xf32>
    %21 = tpu.reciprocal %20 {approx = true} : vector<30x1xf32> -> vector<30x1xf32>
    %22 = vector.broadcast %21 : vector<30x1xf32> to vector<30x30xf32>
    %23 = arith.mulf %18, %22 : vector<30x30xf32>
    %cst_10 = arith.constant dense<0.000000e+00> : vector<30x512xf32>
    %24 = tpu.matmul %23, %10, %cst_10 {dimension_numbers = #tpu.dot_dimension_numbers<[1], [0], [0], [1], [0, 0, 1, 1], [], []>} : vector<30x30xf32>, vector<30x512xf32>, vector<30x512xf32> -> vector<30x512xf32>
    %25 = arith.truncf %24 : vector<30x512xf32> to vector<30x512xbf16>
    %c0_11 = arith.constant 0 : index
    %c0_12 = arith.constant 0 : index
    %26 = vector.load %arg4[%c0_11, %c0_12] : memref<512x512xbf16, #tpu.memory_space<vmem>>, vector<512x512xbf16>
    %cst_13 = arith.constant dense<0.000000e+00> : vector<30x512xf32>
    %27 = tpu.matmul %25, %26, %cst_13 {dimension_numbers = #tpu.dot_dimension_numbers<[1], [0], [0], [1], [0, 0, 1, 1], [], []>} : vector<30x512xbf16>, vector<512x512xbf16>, vector<30x512xf32> -> vector<30x512xf32>
    %c0_14 = arith.constant 0 : index
    %c0_15 = arith.constant 0 : index
    %28 = vector.load %arg5[%c0_14, %c0_15] : memref<1x512xf32, #tpu.memory_space<vmem>>, vector<1x512xf32>
    %29 = vector.broadcast %28 : vector<1x512xf32> to vector<30x512xf32>
    %30 = arith.addf %27, %29 : vector<30x512xf32>
    %31 = arith.addf %30, %1 : vector<30x512xf32>
    %cst_16 = arith.constant dense<0.000000e+00> : vector<30xf32>
    %32 = vector.multi_reduction <add>, %31, %cst_16 [1] : vector<30x512xf32> to vector<30xf32>
    %33 = vector.shape_cast %32 : vector<30xf32> to vector<30x1xf32>
    %cst_17 = arith.constant 0.00206611562 : f32
    %34 = vector.broadcast %cst_17 : f32 to vector<30x1xf32>
    %35 = arith.mulf %33, %34 : vector<30x1xf32>
    %36 = arith.mulf %31, %31 : vector<30x512xf32>
    %cst_18 = arith.constant dense<0.000000e+00> : vector<30xf32>
    %37 = vector.multi_reduction <add>, %36, %cst_18 [1] : vector<30x512xf32> to vector<30xf32>
    %38 = vector.shape_cast %37 : vector<30xf32> to vector<30x1xf32>
    %cst_19 = arith.constant 0.00206611562 : f32
    %39 = vector.broadcast %cst_19 : f32 to vector<30x1xf32>
    %40 = arith.mulf %38, %39 : vector<30x1xf32>
    %41 = arith.mulf %35, %35 : vector<30x1xf32>
    %42 = arith.subf %40, %41 : vector<30x1xf32>
    %cst_20 = arith.constant 0.000000e+00 : f32
    %43 = vector.broadcast %cst_20 : f32 to vector<30x1xf32>
    %44 = arith.maximumf %42, %43 : vector<30x1xf32>
    %45 = vector.broadcast %35 : vector<30x1xf32> to vector<30x512xf32>
    %46 = arith.subf %31, %45 : vector<30x512xf32>
    %cst_21 = arith.constant 9.99999974E-6 : f32
    %47 = vector.broadcast %cst_21 : f32 to vector<30x1xf32>
    %48 = arith.addf %44, %47 : vector<30x1xf32>
    %49 = math.rsqrt %48 : vector<30x1xf32>
    %50 = vector.broadcast %49 : vector<30x1xf32> to vector<30x512xf32>
    %51 = arith.mulf %46, %50 : vector<30x512xf32>
    %c0_22 = arith.constant 0 : index
    %c0_23 = arith.constant 0 : index
    %52 = vector.load %arg6[%c0_22, %c0_23] : memref<1x512xf32, #tpu.memory_space<vmem>>, vector<1x512xf32>
    %53 = vector.broadcast %52 : vector<1x512xf32> to vector<30x512xf32>
    %54 = arith.mulf %51, %53 : vector<30x512xf32>
    %c0_24 = arith.constant 0 : index
    %c0_25 = arith.constant 0 : index
    %55 = vector.load %arg7[%c0_24, %c0_25] : memref<1x512xf32, #tpu.memory_space<vmem>>, vector<1x512xf32>
    %56 = vector.broadcast %55 : vector<1x512xf32> to vector<30x512xf32>
    %57 = arith.addf %54, %56 : vector<30x512xf32>
    %c0_26 = arith.constant 0 : index
    %c0_27 = arith.constant 0 : index
    %c0_28 = arith.constant 0 : index
    %58 = vector.load %arg8[%c0_26, %c0_27, %c0_28] : memref<1x30x512xf32, #tpu.memory_space<vmem>>, vector<1x30x512xf32>
    %59 = vector.shape_cast %58 : vector<1x30x512xf32> to vector<30x512xf32>
    %60 = vector.shape_cast %57 : vector<30x512xf32> to vector<1x30x512xf32>
    tpu.vector_store %arg8[%c0_26, %c0_27, %c0_28], %60 {strides = array<i32>} : memref<1x30x512xf32, #tpu.memory_space<vmem>>, vector<1x30x512xf32>,
    return
  }
  func.func @transform_0(%arg0: i32) -> (i32, i32, i32) {
    %c0_i32 = arith.constant 0 : i32
    %c0_i32_0 = arith.constant 0 : i32
    %c0_i32_1 = arith.constant 0 : i32
    return %arg0, %c0_i32, %c0_i32_0 : i32, i32, i32
  }
  func.func @transform_1(%arg0: i32) -> (i32, i32) {
    %c0_i32 = arith.constant 0 : i32
    %c0_i32_0 = arith.constant 0 : i32
    %c0_i32_1 = arith.constant 0 : i32
    return %c0_i32, %c0_i32_0 : i32, i32
  }
  func.func @transform_2(%arg0: i32) -> (i32, i32) {
    %c0_i32 = arith.constant 0 : i32
    %c0_i32_0 = arith.constant 0 : i32
    %c0_i32_1 = arith.constant 0 : i32
    return %c0_i32, %c0_i32_0 : i32, i32
  }
  func.func @transform_3(%arg0: i32) -> (i32, i32) {
    %c0_i32 = arith.constant 0 : i32
    %c0_i32_0 = arith.constant 0 : i32
    %c0_i32_1 = arith.constant 0 : i32
    return %c0_i32, %c0_i32_0 : i32, i32
  }
  func.func @transform_4(%arg0: i32) -> (i32, i32) {
    %c0_i32 = arith.constant 0 : i32
    %c0_i32_0 = arith.constant 0 : i32
    %c0_i32_1 = arith.constant 0 : i32
    return %c0_i32, %c0_i32_0 : i32, i32
  }
  func.func @transform_5(%arg0: i32) -> (i32, i32) {
    %c0_i32 = arith.constant 0 : i32
    %c0_i32_0 = arith.constant 0 : i32
    %c0_i32_1 = arith.constant 0 : i32
    return %c0_i32, %c0_i32_0 : i32, i32
  }
  func.func @transform_6(%arg0: i32) -> (i32, i32) {
    %c0_i32 = arith.constant 0 : i32
    %c0_i32_0 = arith.constant 0 : i32
    %c0_i32_1 = arith.constant 0 : i32
    return %c0_i32, %c0_i32_0 : i32, i32
  }
  func.func @transform_7(%arg0: i32) -> (i32, i32, i32) {
    %c0_i32 = arith.constant 0 : i32
    %c0_i32_0 = arith.constant 0 : i32
    %c0_i32_1 = arith.constant 0 : i32
    return %arg0, %c0_i32, %c0_i32_0 : i32, i32, i32
  }
}

</mosaic_0001>

<llo_original>
// kernel: tpu_custom_call.1
$region0: #{tpu_custom_call.1}
  #allocation0 [shape = 'u32[]', space=smem, size = 0x4, offset = 0x4, fixed_abs, tag = 'smem constant byte address 0x4 - core index']
  #allocation1 [shape = 'u32[72,128]{1,0:T(1,128)}', space=vmem, size = 0x9000, scoped, tag = 'internal scratch']
  %s0 = inlined_call_operand.vmem [shape: f32[2,30,512], index: 0, kind: input, shape index: {}]
  %s1 = inlined_call_operand.hbm [shape: bf16[512,1536], index: 1, kind: input, shape index: {}]
  %s2 = inlined_call_operand.hbm [shape: f32[1,1536], index: 2, kind: input, shape index: {}]
  %s3 = inlined_call_operand.hbm [shape: bf16[512,512], index: 3, kind: input, shape index: {}]
  %s4 = inlined_call_operand.hbm [shape: f32[1,512], index: 4, kind: input, shape index: {}]
  %s5 = inlined_call_operand.hbm [shape: f32[1,512], index: 5, kind: input, shape index: {}]
  %s6 = inlined_call_operand.hbm [shape: f32[1,512], index: 6, kind: input, shape index: {}]
  %s7 = inlined_call_operand.vmem [shape: f32[2,30,512], index: 7, kind: output, shape index: {}]
  %s8 = sld [smem:[#allocation0]]
  $region85: #{tpu_custom_call.1} parent=0
    _
  %s10 = ssub.s32 1, %s8
  %s11 = scalar_select 0, %s10, %s8
  $region1: #{tpu_custom_call.1} parent=0
    #allocation2 [shape = 'u8[1572864]{0}', space=vmem, size = 0x180000, scoped, tag = 'input window, operand 1, single buffered']
    #allocation3 [shape = 's32[2]{0}', space=sflag, size = 0x8, scoped, tag = 'scoped memory for tpu_custom_call.1']
    #allocation4 [shape = 'u8[6144]{0}', space=vmem, size = 0x1800, scoped, tag = 'input window, operand 2, single buffered']
    #allocation5 [shape = 's32[1]{0}', space=sflag, size = 0x4, scoped, tag = 'scoped memory for tpu_custom_call.1']
    #allocation6 [shape = 'u8[524288]{0}', space=vmem, size = 0x80000, scoped, tag = 'input window, operand 3, single buffered']
    #allocation7 [shape = 'u8[2048]{0}', space=vmem, size = 0x800, scoped, tag = 'input window, operand 4, single buffered']
    #allocation8 [shape = 's32[1]{0}', space=sflag, size = 0x4, scoped, tag = 'scoped memory for tpu_custom_call.1']
    #allocation9 [shape = 'u8[2048]{0}', space=vmem, size = 0x800, scoped, tag = 'input window, operand 5, single buffered']
    #allocation10 [shape = 'u8[2048]{0}', space=vmem, size = 0x800, scoped, tag = 'input window, operand 6, single buffered']
    #allocation11 [shape = 's32[1]{0}', space=sflag, size = 0x4, scoped, tag = 'scoped memory for tpu_custom_call.1']
    %12 = vsyncpa [#allocation3], 0
    %13 = vsyncpa [#allocation5], 0
    %14 = vsyncpa [#allocation8], 0
    %15 = vsyncpa [#allocation11], 0
    loop: start=0, step=1, limit=4
    $region2: #{tpu_custom_call.1} parent=1 // loop_pre_header
      _
    $region3: #{tpu_custom_call.1} parent=1 // loop_header
      %s17 = sphi 0, %s21
      %p18 = scmp.ge.s32.totalorder %s17, 4
      %s27 = sphi 0, %s29
      %s30 = sphi 0, %s27
      %s31 = sphi 0, %s30
      %s47 = sphi 0, %s31
      %s51 = sphi 0, %s51
      %s53 = sphi 0, %s51
      %s54 = sphi 0, %s53
      %s68 = sphi 0, %s54
      %s72 = sphi 0, %s72
      %s74 = sphi 0, %s72
      %s75 = sphi 0, %s74
      %s89 = sphi 0, %s75
      %s93 = sphi 0, %s93
      %s95 = sphi 0, %s93
      %s96 = sphi 0, %s95
      %s110 = sphi 0, %s96
      %s114 = sphi 0, %s114
      %s116 = sphi 0, %s114
      %s117 = sphi 0, %s116
      %s131 = sphi 0, %s117
      %s135 = sphi 0, %s135
      %s137 = sphi 0, %s135
      %s138 = sphi 0, %s137
      %s152 = sphi 0, %s138
      %s156 = sphi 0, %s156
      %s158 = sphi 0, %s156
      %s159 = sphi 0, %s158
      %s173 = sphi 0, %s159
      %s179 = sphi 0, %s181
      %s182 = sphi 0, %s179
      %s183 = sphi 0, %s182
      %s199 = sphi 0, %s183
    $region4: #{tpu_custom_call.1} parent=1 // loop_header_branch
      %20 = sbr.rel (%p18) target = $region8
    $region5: #{tpu_custom_call.1} parent=1 // loop_body
      %s22 = ssub.s32 %s17, 1
      %s23 = ssub.s32 %s17, 2
      %s24 = sadd.s32 %s17, 1
      %s25 = ssub.s32 %s17, %s24
      %p26 = scmp.eq.s32.totalorder %s25, 0
      %s28 = sadd.s32 %s27, 1
      %s29 = scalar_select %p26, %s27, %s28
      %p32 = pneg %p26
      %p33 = scmp.eq.s32.totalorder %s17, 1
      %p34 = por %p32, %p33
      %p35 = scmp.ne.s32.totalorder %s27, %s30
      %p36 = scmp.eq.s32.totalorder %s17, 0
      %p37 = por %p35, %p36
      %p38 = scmp.ne.s32.totalorder %s27, %s30
      %p39 = scmp.eq.s32.totalorder %s22, 1
      %p40 = por %p38, %p39
      %p41 = scmp.ne.s32.totalorder %s30, %s31
      %p42 = scmp.eq.s32.totalorder %s22, 0
      %p43 = por %p41, %p42
      %p44 = scmp.ne.s32.totalorder %s30, %s31
      %p45 = scmp.eq.s32.totalorder %s23, 1
      %p46 = por %p44, %p45
      %p48 = scmp.ne.s32.totalorder %s31, %s47
      %p49 = scmp.eq.s32.totalorder %s23, 0
      %p50 = por %p48, %p49
      %s52 = sadd.s32 %s51, 1
      %p55 = scmp.eq.s32.totalorder %s17, 1
      %p56 = scmp.ne.s32.totalorder %s51, %s53
      %p57 = scmp.eq.s32.totalorder %s17, 0
      %p58 = por %p56, %p57
      %p59 = scmp.ne.s32.totalorder %s51, %s53
      %p60 = scmp.eq.s32.totalorder %s22, 1
      %p61 = por %p59, %p60
      %p62 = scmp.ne.s32.totalorder %s53, %s54
      %p63 = scmp.eq.s32.totalorder %s22, 0
      %p64 = por %p62, %p63
      %p65 = scmp.ne.s32.totalorder %s53, %s54
      %p66 = scmp.eq.s32.totalorder %s23, 1
      %p67 = por %p65, %p66
      %p69 = scmp.ne.s32.totalorder %s54, %s68
      %p70 = scmp.eq.s32.totalorder %s23, 0
      %p71 = por %p69, %p70
      %s73 = sadd.s32 %s72, 1
      %p76 = scmp.eq.s32.totalorder %s17, 1
      %p77 = scmp.ne.s32.totalorder %s72, %s74
      %p78 = scmp.eq.s32.totalorder %s17, 0
      %p79 = por %p77, %p78
      %p80 = scmp.ne.s32.totalorder %s72, %s74
      %p81 = scmp.eq.s32.totalorder %s22, 1
      %p82 = por %p80, %p81
      %p83 = scmp.ne.s32.totalorder %s74, %s75
      %p84 = scmp.eq.s32.totalorder %s22, 0
      %p85 = por %p83, %p84
      %p86 = scmp.ne.s32.totalorder %s74, %s75
      %p87 = scmp.eq.s32.totalorder %s23, 1
      %p88 = por %p86, %p87
      %p90 = scmp.ne.s32.totalorder %s75, %s89
      %p91 = scmp.eq.s32.totalorder %s23, 0
      %p92 = por %p90, %p91
      %s94 = sadd.s32 %s93, 1
      %p97 = scmp.eq.s32.totalorder %s17, 1
      %p98 = scmp.ne.s32.totalorder %s93, %s95
      %p99 = scmp.eq.s32.totalorder %s17, 0
      %p100 = por %p98, %p99
      %p101 = scmp.ne.s32.totalorder %s93, %s95
      %p102 = scmp.eq.s32.totalorder %s22, 1
      %p103 = por %p101, %p102
      %p104 = scmp.ne.s32.totalorder %s95, %s96
      %p105 = scmp.eq.s32.totalorder %s22, 0
      %p106 = por %p104, %p105
      %p107 = scmp.ne.s32.totalorder %s95, %s96
      %p108 = scmp.eq.s32.totalorder %s23, 1
      %p109 = por %p107, %p108
      %p111 = scmp.ne.s32.totalorder %s96, %s110
      %p112 = scmp.eq.s32.totalorder %s23, 0
      %p113 = por %p111, %p112
      %s115 = sadd.s32 %s114, 1
      %p118 = scmp.eq.s32.totalorder %s17, 1
      %p119 = scmp.ne.s32.totalorder %s114, %s116
      %p120 = scmp.eq.s32.totalorder %s17, 0
      %p121 = por %p119, %p120
      %p122 = scmp.ne.s32.totalorder %s114, %s116
      %p123 = scmp.eq.s32.totalorder %s22, 1
      %p124 = por %p122, %p123
      %p125 = scmp.ne.s32.totalorder %s116, %s117
      %p126 = scmp.eq.s32.totalorder %s22, 0
      %p127 = por %p125, %p126
      %p128 = scmp.ne.s32.totalorder %s116, %s117
      %p129 = scmp.eq.s32.totalorder %s23, 1
      %p130 = por %p128, %p129
      %p132 = scmp.ne.s32.totalorder %s117, %s131
      %p133 = scmp.eq.s32.totalorder %s23, 0
      %p134 = por %p132, %p133
      %s136 = sadd.s32 %s135, 1
      %p139 = scmp.eq.s32.totalorder %s17, 1
      %p140 = scmp.ne.s32.totalorder %s135, %s137
      %p141 = scmp.eq.s32.totalorder %s17, 0
      %p142 = por %p140, %p141
      %p143 = scmp.ne.s32.totalorder %s135, %s137
      %p144 = scmp.eq.s32.totalorder %s22, 1
      %p145 = por %p143, %p144
      %p146 = scmp.ne.s32.totalorder %s137, %s138
      %p147 = scmp.eq.s32.totalorder %s22, 0
      %p148 = por %p146, %p147
      %p149 = scmp.ne.s32.totalorder %s137, %s138
      %p150 = scmp.eq.s32.totalorder %s23, 1
      %p151 = por %p149, %p150
      %p153 = scmp.ne.s32.totalorder %s138, %s152
      %p154 = scmp.eq.s32.totalorder %s23, 0
      %p155 = por %p153, %p154
      %s157 = sadd.s32 %s156, 1
      %p160 = scmp.eq.s32.totalorder %s17, 1
      %p161 = scmp.ne.s32.totalorder %s156, %s158
      %p162 = scmp.eq.s32.totalorder %s17, 0
      %p163 = por %p161, %p162
      %p164 = scmp.ne.s32.totalorder %s156, %s158
      %p165 = scmp.eq.s32.totalorder %s22, 1
      %p166 = por %p164, %p165
      %p167 = scmp.ne.s32.totalorder %s158, %s159
      %p168 = scmp.eq.s32.totalorder %s22, 0
      %p169 = por %p167, %p168
      %p170 = scmp.ne.s32.totalorder %s158, %s159
      %p171 = scmp.eq.s32.totalorder %s23, 1
      %p172 = por %p170, %p171
      %p174 = scmp.ne.s32.totalorder %s159, %s173
      %p175 = scmp.eq.s32.totalorder %s23, 0
      %p176 = por %p174, %p175
      %s177 = ssub.s32 %s17, %s24
      %p178 = scmp.eq.s32.totalorder %s177, 0
      %s180 = sadd.s32 %s179, 1
      %s181 = scalar_select %p178, %s179, %s180
      %p184 = pneg %p178
      %p185 = scmp.eq.s32.totalorder %s17, 1
      %p186 = por %p184, %p185
      %p187 = scmp.ne.s32.totalorder %s179, %s182
      %p188 = scmp.eq.s32.totalorder %s17, 0
      %p189 = por %p187, %p188
      %p190 = scmp.ne.s32.totalorder %s179, %s182
      %p191 = scmp.eq.s32.totalorder %s22, 1
      %p192 = por %p190, %p191
      %p193 = scmp.ne.s32.totalorder %s182, %s183
      %p194 = scmp.eq.s32.totalorder %s22, 0
      %p195 = por %p193, %p194
      %p196 = scmp.ne.s32.totalorder %s182, %s183
      %p197 = scmp.eq.s32.totalorder %s23, 1
      %p198 = por %p196, %p197
      %p200 = scmp.ne.s32.totalorder %s183, %s199
      %p201 = scmp.eq.s32.totalorder %s23, 0
      %p202 = por %p200, %p201
      %p203 = scmp.le.s32.totalorder 1, %s17
      %p204 = scmp.lt.s32.totalorder %s17, 3
      %p205 = pnand %p203, %p204
      %p206 = pneg %p205
      // Predicated region
      $region9: #{tpu_custom_call.1} parent=5 // pred_check
        _
      $region10: #{tpu_custom_call.1} parent=5 // pred_check_branch
        %208 = sbr.rel (%p205) target = $region12
      $region11: #{tpu_custom_call.1} parent=5 // pred_region
        %s209 = ssub.s32 %s17, 1
        // Predicated region
        $region13: #{tpu_custom_call.1} parent=11 // pred_check
          %p210 = pneg %p64
        $region14: #{tpu_custom_call.1} parent=11 // pred_check_branch
          %212 = sbr.rel (%p210) target = $region16
        $region15: #{tpu_custom_call.1} parent=11 // pred_region
          %214 = vsyncadd [#allocation3], 0
          %s215 = sshll.u32 %s1, 4
          %s216 = int_to_ptr.hbm [resolvable:$true] %s215
          %s217 = sshll.u32 [#allocation2], 4
          %s218 = int_to_ptr.vmem [resolvable:$true] %s217
          %223 = dma.hbm_to_vmem [thread:$0]  %s216, 49152, %s218, [#allocation3], 768, 768, 48
        $region16: #{tpu_custom_call.1} parent=11 // pred_fallthru
          _
        // Predicated region
        $region17: #{tpu_custom_call.1} parent=11 // pred_check
          %p224 = pneg %p85
        $region18: #{tpu_custom_call.1} parent=11 // pred_check_branch
          %226 = sbr.rel (%p224) target = $region20
        $region19: #{tpu_custom_call.1} parent=11 // pred_region
          %228 = vsyncadd [#allocation5], 0
          %s230 = sshll.u32 %s2, 4
          %s231 = int_to_ptr.hbm [resolvable:$true] %s230
          %s232 = sshll.u32 [#allocation4], 4
          %s233 = int_to_ptr.vmem [resolvable:$true] %s232
          %235 = dma.hbm_to_vmem [thread:$0]  %s231, 192, %s233, [#allocation5]
        $region20: #{tpu_custom_call.1} parent=11 // pred_fallthru
          _
        // Predicated region
        $region21: #{tpu_custom_call.1} parent=11 // pred_check
          %p236 = pneg %p106
        $region22: #{tpu_custom_call.1} parent=11 // pred_check_branch
          %238 = sbr.rel (%p236) target = $region24
        $region23: #{tpu_custom_call.1} parent=11 // pred_region
          %240 = vsyncadd [#allocation5], 0
          %s241 = sshll.u32 %s3, 4
          %s242 = int_to_ptr.hbm [resolvable:$true] %s241
          %s243 = sshll.u32 [#allocation6], 4
          %s244 = int_to_ptr.vmem [resolvable:$true] %s243
          %249 = dma.hbm_to_vmem [thread:$0]  %s242, 16384, %s244, [#allocation5], 256, 256, 16
        $region24: #{tpu_custom_call.1} parent=11 // pred_fallthru
          _
        // Predicated region
        $region25: #{tpu_custom_call.1} parent=11 // pred_check
          %p250 = pneg %p127
        $region26: #{tpu_custom_call.1} parent=11 // pred_check_branch
          %252 = sbr.rel (%p250) target = $region28
        $region27: #{tpu_custom_call.1} parent=11 // pred_region
          %254 = vsyncadd [#allocation8], 0
          %s256 = sshll.u32 %s4, 4
          %s257 = int_to_ptr.hbm [resolvable:$true] %s256
          %s258 = sshll.u32 [#allocation7], 4
          %s259 = int_to_ptr.vmem [resolvable:$true] %s258
          %261 = dma.hbm_to_vmem [thread:$0]  %s257, 64, %s259, [#allocation8]
        $region28: #{tpu_custom_call.1} parent=11 // pred_fallthru
          _
        // Predicated region
        $region29: #{tpu_custom_call.1} parent=11 // pred_check
          %p262 = pneg %p148
        $region30: #{tpu_custom_call.1} parent=11 // pred_check_branch
          %264 = sbr.rel (%p262) target = $region32
        $region31: #{tpu_custom_call.1} parent=11 // pred_region
          %266 = vsyncadd [#allocation8], 0
          %s268 = sshll.u32 %s5, 4
          %s269 = int_to_ptr.hbm [resolvable:$true] %s268
          %s270 = sshll.u32 [#allocation9], 4
          %s271 = int_to_ptr.vmem [resolvable:$true] %s270
          %273 = dma.hbm_to_vmem [thread:$0]  %s269, 64, %s271, [#allocation8]
        $region32: #{tpu_custom_call.1} parent=11 // pred_fallthru
          _
        // Predicated region
        $region33: #{tpu_custom_call.1} parent=11 // pred_check
          %p274 = pneg %p169
        $region34: #{tpu_custom_call.1} parent=11 // pred_check_branch
          %276 = sbr.rel (%p274) target = $region36
        $region35: #{tpu_custom_call.1} parent=11 // pred_region
          %278 = vsyncadd [#allocation11], 0
          %s280 = sshll.u32 %s6, 4
          %s281 = int_to_ptr.hbm [resolvable:$true] %s280
          %s282 = sshll.u32 [#allocation10], 4
          %s283 = int_to_ptr.vmem [resolvable:$true] %s282
          %285 = dma.hbm_to_vmem [thread:$0]  %s281, 64, %s283, [#allocation11]
        $region36: #{tpu_custom_call.1} parent=11 // pred_fallthru
          _
      $region12: #{tpu_custom_call.1} parent=5 // pred_fallthru
        _
      %p286 = scmp.lt.s32.totalorder %s17, 2
      // Predicated region
      $region37: #{tpu_custom_call.1} parent=5 // pred_check
        %p287 = pneg %p286
      $region38: #{tpu_custom_call.1} parent=5 // pred_check_branch
        %289 = sbr.rel (%p287) target = $region40
      $region39: #{tpu_custom_call.1} parent=5 // pred_region
        // Predicated region
        $region41: #{tpu_custom_call.1} parent=39 // pred_check
          %p290 = pneg %p37
        $region42: #{tpu_custom_call.1} parent=39 // pred_check_branch
          %292 = sbr.rel (%p290) target = $region44
        $region43: #{tpu_custom_call.1} parent=39 // pred_region
          %p293 = scmp.lt.s32.totalorder %s17, 1
          %s294 = scalar_select %p293, %s17, 1
          %s295 = smul.addr %s294, 16
          %s296 = smul.addr %s295, 8
          %s297 = scalar_lea.vmem %s0, %s296
        $region44: #{tpu_custom_call.1} parent=39 // pred_fallthru
          _
      $region40: #{tpu_custom_call.1} parent=5 // pred_fallthru
        _
      %p298 = scmp.le.s32.totalorder 1, %s17
      %p299 = scmp.lt.s32.totalorder %s17, 3
      %p300 = pnand %p298, %p299
      %p301 = pneg %p300
      // Predicated region
      $region45: #{tpu_custom_call.1} parent=5 // pred_check
        _
      $region46: #{tpu_custom_call.1} parent=5 // pred_check_branch
        %303 = sbr.rel (%p300) target = $region48
      $region47: #{tpu_custom_call.1} parent=5 // pred_region
        %s304 = ssub.s32 %s17, 1
        // Predicated region
        $region49: #{tpu_custom_call.1} parent=47 // pred_check
          %p305 = pneg %p64
        $region50: #{tpu_custom_call.1} parent=47 // pred_check_branch
          %307 = sbr.rel (%p305) target = $region52
        $region51: #{tpu_custom_call.1} parent=47 // pred_region
          %309 = dma.done [#allocation3], 49152
        $region52: #{tpu_custom_call.1} parent=47 // pred_fallthru
          _
        // Predicated region
        $region53: #{tpu_custom_call.1} parent=47 // pred_check
          %p310 = pneg %p85
        $region54: #{tpu_custom_call.1} parent=47 // pred_check_branch
          %312 = sbr.rel (%p310) target = $region56
        $region55: #{tpu_custom_call.1} parent=47 // pred_region
          %314 = dma.done [#allocation5], 192
        $region56: #{tpu_custom_call.1} parent=47 // pred_fallthru
          _
        // Predicated region
        $region57: #{tpu_custom_call.1} parent=47 // pred_check
          %p315 = pneg %p106
        $region58: #{tpu_custom_call.1} parent=47 // pred_check_branch
          %317 = sbr.rel (%p315) target = $region60
        $region59: #{tpu_custom_call.1} parent=47 // pred_region
          %319 = dma.done [#allocation5], 16384
        $region60: #{tpu_custom_call.1} parent=47 // pred_fallthru
          _
        // Predicated region
        $region61: #{tpu_custom_call.1} parent=47 // pred_check
          %p320 = pneg %p127
        $region62: #{tpu_custom_call.1} parent=47 // pred_check_branch
          %322 = sbr.rel (%p320) target = $region64
        $region63: #{tpu_custom_call.1} parent=47 // pred_region
          %324 = dma.done [#allocation8], 64
        $region64: #{tpu_custom_call.1} parent=47 // pred_fallthru
          _
        // Predicated region
        $region65: #{tpu_custom_call.1} parent=47 // pred_check
          %p325 = pneg %p148
        $region66: #{tpu_custom_call.1} parent=47 // pred_check_branch
          %327 = sbr.rel (%p325) target = $region68
        $region67: #{tpu_custom_call.1} parent=47 // pred_region
          %329 = dma.done [#allocation8], 64
        $region68: #{tpu_custom_call.1} parent=47 // pred_fallthru
          _
        // Predicated region
        $region69: #{tpu_custom_call.1} parent=47 // pred_check
          %p330 = pneg %p169
        $region70: #{tpu_custom_call.1} parent=47 // pred_check_branch
          %332 = sbr.rel (%p330) target = $region72
        $region71: #{tpu_custom_call.1} parent=47 // pred_region
          %334 = dma.done [#allocation11], 64
        $region72: #{tpu_custom_call.1} parent=47 // pred_fallthru
          _
        %p335 = scmp.lt.s32.totalorder %s22, 1
        %s336 = scalar_select %p335, %s22, 1
        %s337 = smul.addr %s336, 16
        %s338 = smul.addr %s337, 8
        %s339 = scalar_lea.vmem %s0, %s338
        %p340 = pneg %p43
        %p341 = pneg %p40
        %p342 = pneg %p64
        %p343 = pneg %p61
        %p344 = pneg %p85
        %p345 = pneg %p82
        %p346 = pneg %p106
        %p347 = pneg %p103
        %p348 = pneg %p127
        %p349 = pneg %p124
        %p350 = pneg %p148
        %p351 = pneg %p145
        %p352 = pneg %p169
        %p353 = pneg %p166
        %p354 = pneg %p195
        %p355 = pneg %p192
        %p356 = scmp.lt.s32.totalorder %s22, 1
        %s357 = scalar_select %p356, %s22, 1
        %s358 = smul.addr %s357, 16
        %s359 = smul.addr %s358, 8
        %s360 = scalar_lea.vmem %s7, %s359
        %p361 = scmp.lt.s32.totalorder %s22, 1
        %s362 = scalar_select %p361, %s22, 1
        %s363 = smul.addr %s362, 16
        %s364 = smul.addr %s363, 8
        %s365 = scalar_lea.vmem %s0, %s364
        %p366 = scmp.lt.s32.totalorder %s22, 1
        %s367 = scalar_select %p366, %s22, 1
        %s368 = smul.addr %s367, 16
        %s369 = smul.addr %s368, 8
        %s370 = scalar_lea.vmem %s7, %s369
        %v371 = vld [vmem:[%s365] sm:$0xff]
        %v372 = vld [vmem:[%s365 + $0x8] sm:$0xff]
        %v373 = vld [vmem:[%s365 + $0x10] sm:$0xff]
        %v374 = vld [vmem:[%s365 + $0x18] sm:$0xff]
        %v375 = vld [vmem:[%s365 + $0x20] sm:$0xff]
        %v376 = vld [vmem:[%s365 + $0x28] sm:$0xff]
        %v377 = vld [vmem:[%s365 + $0x30] sm:$0xff]
        %v378 = vld [vmem:[%s365 + $0x38] sm:$0xff]
        %v379 = vld [vmem:[%s365 + $0x40] sm:$0xff]
        %v380 = vld [vmem:[%s365 + $0x48] sm:$0xff]
        %v381 = vld [vmem:[%s365 + $0x50] sm:$0xff]
        %v382 = vld [vmem:[%s365 + $0x58] sm:$0xff]
        %v383 = vld [vmem:[%s365 + $0x60] sm:$0x3f]
        %v384 = vld [vmem:[%s365 + $0x68] sm:$0x3f]
        %v385 = vld [vmem:[%s365 + $0x70] sm:$0x3f]
        %v386 = vld [vmem:[%s365 + $0x78] sm:$0x3f]
        %v387 = vpack.c.bf16 %v375, %v371
        %v388 = vpack.c.bf16 %v376, %v372
        %v389 = vpack.c.bf16 %v377, %v373
        %v390 = vpack.c.bf16 %v378, %v374
        %v391 = vpack.c.bf16 %v383, %v379
        %v392 = vpack.c.bf16 %v384, %v380
        %v393 = vpack.c.bf16 %v385, %v381
        %v394 = vpack.c.bf16 %v386, %v382
        %v395 = vld [vmem:[#allocation2] sm:$0xff]
        %v396 = vld [vmem:[#allocation2 + $0x8] sm:$0xff]
        %v397 = vld [vmem:[#allocation2 + $0x10] sm:$0xff]
        %v398 = vld [vmem:[#allocation2 + $0x18] sm:$0xff]
        %v399 = vld [vmem:[#allocation2 + $0x20] sm:$0xff]
        %v400 = vld [vmem:[#allocation2 + $0x28] sm:$0xff]
        %v401 = vld [vmem:[#allocation2 + $0x30] sm:$0xff]
        %v402 = vld [vmem:[#allocation2 + $0x38] sm:$0xff]
        %v403 = vld [vmem:[#allocation2 + $0x40] sm:$0xff]
        %v404 = vld [vmem:[#allocation2 + $0x48] sm:$0xff]
        %v405 = vld [vmem:[#allocation2 + $0x50] sm:$0xff]
        %v406 = vld [vmem:[#allocation2 + $0x58] sm:$0xff]
        %v407 = vld [vmem:[#allocation2 + $0x60] sm:$0xff]
        %v408 = vld [vmem:[#allocation2 + $0x68] sm:$0xff]
        %v409 = vld [vmem:[#allocation2 + $0x70] sm:$0xff]
        %v410 = vld [vmem:[#allocation2 + $0x78] sm:$0xff]
        %v411 = vld [vmem:[#allocation2 + $0x80] sm:$0xff]
        %v412 = vld [vmem:[#allocation2 + $0x88] sm:$0xff]
        %v413 = vld [vmem:[#allocation2 + $0x90] sm:$0xff]
        %v414 = vld [vmem:[#allocation2 + $0x98] sm:$0xff]
        %v415 = vld [vmem:[#allocation2 + $0xa0] sm:$0xff]
        %v416 = vld [vmem:[#allocation2 + $0xa8] sm:$0xff]
        %v417 = vld [vmem:[#allocation2 + $0xb0] sm:$0xff]
        %v418 = vld [vmem:[#allocation2 + $0xb8] sm:$0xff]
        %v419 = vld [vmem:[#allocation2 + $0xc0] sm:$0xff]
        %v420 = vld [vmem:[#allocation2 + $0xc8] sm:$0xff]
        %v421 = vld [vmem:[#allocation2 + $0xd0] sm:$0xff]
        %v422 = vld [vmem:[#allocation2 + $0xd8] sm:$0xff]
        %v423 = vld [vmem:[#allocation2 + $0xe0] sm:$0xff]
        %v424 = vld [vmem:[#allocation2 + $0xe8] sm:$0xff]
        %v425 = vld [vmem:[#allocation2 + $0xf0] sm:$0xff]
        %v426 = vld [vmem:[#allocation2 + $0xf8] sm:$0xff]
        %v427 = vld [vmem:[#allocation2 + $0x100] sm:$0xff]
        %v428 = vld [vmem:[#allocation2 + $0x108] sm:$0xff]
        %v429 = vld [vmem:[#allocation2 + $0x110] sm:$0xff]
        %v430 = vld [vmem:[#allocation2 + $0x118] sm:$0xff]
        %v431 = vld [vmem:[#allocation2 + $0x120] sm:$0xff]
        %v432 = vld [vmem:[#allocation2 + $0x128] sm:$0xff]
        %v433 = vld [vmem:[#allocation2 + $0x130] sm:$0xff]
        %v434 = vld [vmem:[#allocation2 + $0x138] sm:$0xff]
        %v435 = vld [vmem:[#allocation2 + $0x140] sm:$0xff]
        %v436 = vld [vmem:[#allocation2 + $0x148] sm:$0xff]
        %v437 = vld [vmem:[#allocation2 + $0x150] sm:$0xff]
        %v438 = vld [vmem:[#allocation2 + $0x158] sm:$0xff]
        %v439 = vld [vmem:[#allocation2 + $0x160] sm:$0xff]
        %v440 = vld [vmem:[#allocation2 + $0x168] sm:$0xff]
        %v441 = vld [vmem:[#allocation2 + $0x170] sm:$0xff]
        %v442 = vld [vmem:[#allocation2 + $0x178] sm:$0xff]
        %v443 = vld [vmem:[#allocation2 + $0x180] sm:$0xff]
        %v444 = vld [vmem:[#allocation2 + $0x188] sm:$0xff]
        %v445 = vld [vmem:[#allocation2 + $0x190] sm:$0xff]
        %v446 = vld [vmem:[#allocation2 + $0x198] sm:$0xff]
        %v447 = vld [vmem:[#allocation2 + $0x1a0] sm:$0xff]
        %v448 = vld [vmem:[#allocation2 + $0x1a8] sm:$0xff]
        %v449 = vld [vmem:[#allocation2 + $0x1b0] sm:$0xff]
        %v450 = vld [vmem:[#allocation2 + $0x1b8] sm:$0xff]
        %v451 = vld [vmem:[#allocation2 + $0x1c0] sm:$0xff]
        %v452 = vld [vmem:[#allocation2 + $0x1c8] sm:$0xff]
        %v453 = vld [vmem:[#allocation2 + $0x1d0] sm:$0xff]
        %v454 = vld [vmem:[#allocation2 + $0x1d8] sm:$0xff]
        %v455 = vld [vmem:[#allocation2 + $0x1e0] sm:$0xff]
        %v456 = vld [vmem:[#allocation2 + $0x1e8] sm:$0xff]
        %v457 = vld [vmem:[#allocation2 + $0x1f0] sm:$0xff]
        %v458 = vld [vmem:[#allocation2 + $0x1f8] sm:$0xff]
        %v459 = vld [vmem:[#allocation2 + $0x200] sm:$0xff]
        %v460 = vld [vmem:[#allocation2 + $0x208] sm:$0xff]
        %v461 = vld [vmem:[#allocation2 + $0x210] sm:$0xff]
        %v462 = vld [vmem:[#allocation2 + $0x218] sm:$0xff]
        %v463 = vld [vmem:[#allocation2 + $0x220] sm:$0xff]
        %v464 = vld [vmem:[#allocation2 + $0x228] sm:$0xff]
        %v465 = vld [vmem:[#allocation2 + $0x230] sm:$0xff]
        %v466 = vld [vmem:[#allocation2 + $0x238] sm:$0xff]
        %v467 = vld [vmem:[#allocation2 + $0x240] sm:$0xff]
        %v468 = vld [vmem:[#allocation2 + $0x248] sm:$0xff]
        %v469 = vld [vmem:[#allocation2 + $0x250] sm:$0xff]
        %v470 = vld [vmem:[#allocation2 + $0x258] sm:$0xff]
        %v471 = vld [vmem:[#allocation2 + $0x260] sm:$0xff]
        %v472 = vld [vmem:[#allocation2 + $0x268] sm:$0xff]
        %v473 = vld [vmem:[#allocation2 + $0x270] sm:$0xff]
        %v474 = vld [vmem:[#allocation2 + $0x278] sm:$0xff]
        %v475 = vld [vmem:[#allocation2 + $0x280] sm:$0xff]
        %v476 = vld [vmem:[#allocation2 + $0x288] sm:$0xff]
        %v477 = vld [vmem:[#allocation2 + $0x290] sm:$0xff]
        %v478 = vld [vmem:[#allocation2 + $0x298] sm:$0xff]
        %v479 = vld [vmem:[#allocation2 + $0x2a0] sm:$0xff]
        %v480 = vld [vmem:[#allocation2 + $0x2a8] sm:$0xff]
        %v481 = vld [vmem:[#allocation2 + $0x2b0] sm:$0xff]
        %v482 = vld [vmem:[#allocation2 + $0x2b8] sm:$0xff]
        %v483 = vld [vmem:[#allocation2 + $0x2c0] sm:$0xff]
        %v484 = vld [vmem:[#allocation2 + $0x2c8] sm:$0xff]
        %v485 = vld [vmem:[#allocation2 + $0x2d0] sm:$0xff]
        %v486 = vld [vmem:[#allocation2 + $0x2d8] sm:$0xff]
        %v487 = vld [vmem:[#allocation2 + $0x2e0] sm:$0xff]
        %v488 = vld [vmem:[#allocation2 + $0x2e8] sm:$0xff]
        %v489 = vld [vmem:[#allocation2 + $0x2f0] sm:$0xff]
        %v490 = vld [vmem:[#allocation2 + $0x2f8] sm:$0xff]
        %v491 = vld [vmem:[#allocation2 + $0x300] sm:$0xff]
        %v492 = vld [vmem:[#allocation2 + $0x308] sm:$0xff]
        %v493 = vld [vmem:[#allocation2 + $0x310] sm:$0xff]
        %v494 = vld [vmem:[#allocation2 + $0x318] sm:$0xff]
        %v495 = vld [vmem:[#allocation2 + $0x320] sm:$0xff]
        %v496 = vld [vmem:[#allocation2 + $0x328] sm:$0xff]
        %v497 = vld [vmem:[#allocation2 + $0x330] sm:$0xff]
        %v498 = vld [vmem:[#allocation2 + $0x338] sm:$0xff]
        %v499 = vld [vmem:[#allocation2 + $0x340] sm:$0xff]
        %v500 = vld [vmem:[#allocation2 + $0x348] sm:$0xff]
        %v501 = vld [vmem:[#allocation2 + $0x350] sm:$0xff]
        %v502 = vld [vmem:[#allocation2 + $0x358] sm:$0xff]
        %v503 = vld [vmem:[#allocation2 + $0x360] sm:$0xff]
        %v504 = vld [vmem:[#allocation2 + $0x368] sm:$0xff]
        %v505 = vld [vmem:[#allocation2 + $0x370] sm:$0xff]
        %v506 = vld [vmem:[#allocation2 + $0x378] sm:$0xff]
        %v507 = vld [vmem:[#allocation2 + $0x380] sm:$0xff]
        %v508 = vld [vmem:[#allocation2 + $0x388] sm:$0xff]
        %v509 = vld [vmem:[#allocation2 + $0x390] sm:$0xff]
        %v510 = vld [vmem:[#allocation2 + $0x398] sm:$0xff]
        %v511 = vld [vmem:[#allocation2 + $0x3a0] sm:$0xff]
        %v512 = vld [vmem:[#allocation2 + $0x3a8] sm:$0xff]
        %v513 = vld [vmem:[#allocation2 + $0x3b0] sm:$0xff]
        %v514 = vld [vmem:[#allocation2 + $0x3b8] sm:$0xff]
        %v515 = vld [vmem:[#allocation2 + $0x3c0] sm:$0xff]
        %v516 = vld [vmem:[#allocation2 + $0x3c8] sm:$0xff]
        %v517 = vld [vmem:[#allocation2 + $0x3d0] sm:$0xff]
        %v518 = vld [vmem:[#allocation2 + $0x3d8] sm:$0xff]
        %v519 = vld [vmem:[#allocation2 + $0x3e0] sm:$0xff]
        %v520 = vld [vmem:[#allocation2 + $0x3e8] sm:$0xff]
        %v521 = vld [vmem:[#allocation2 + $0x3f0] sm:$0xff]
        %v522 = vld [vmem:[#allocation2 + $0x3f8] sm:$0xff]
        %v523 = vld [vmem:[#allocation2 + $0x400] sm:$0xff]
        %v524 = vld [vmem:[#allocation2 + $0x408] sm:$0xff]
        %v525 = vld [vmem:[#allocation2 + $0x410] sm:$0xff]
        %v526 = vld [vmem:[#allocation2 + $0x418] sm:$0xff]
        %v527 = vld [vmem:[#allocation2 + $0x420] sm:$0xff]
        %v528 = vld [vmem:[#allocation2 + $0x428] sm:$0xff]
        %v529 = vld [vmem:[#allocation2 + $0x430] sm:$0xff]
        %v530 = vld [vmem:[#allocation2 + $0x438] sm:$0xff]
        %v531 = vld [vmem:[#allocation2 + $0x440] sm:$0xff]
        %v532 = vld [vmem:[#allocation2 + $0x448] sm:$0xff]
        %v533 = vld [vmem:[#allocation2 + $0x450] sm:$0xff]
        %v534 = vld [vmem:[#allocation2 + $0x458] sm:$0xff]
        %v535 = vld [vmem:[#allocation2 + $0x460] sm:$0xff]
        %v536 = vld [vmem:[#allocation2 + $0x468] sm:$0xff]
        %v537 = vld [vmem:[#allocation2 + $0x470] sm:$0xff]
        %v538 = vld [vmem:[#allocation2 + $0x478] sm:$0xff]
        %v539 = vld [vmem:[#allocation2 + $0x480] sm:$0xff]
        %v540 = vld [vmem:[#allocation2 + $0x488] sm:$0xff]
        %v541 = vld [vmem:[#allocation2 + $0x490] sm:$0xff]
        %v542 = vld [vmem:[#allocation2 + $0x498] sm:$0xff]
        %v543 = vld [vmem:[#allocation2 + $0x4a0] sm:$0xff]
        %v544 = vld [vmem:[#allocation2 + $0x4a8] sm:$0xff]
        %v545 = vld [vmem:[#allocation2 + $0x4b0] sm:$0xff]
        %v546 = vld [vmem:[#allocation2 + $0x4b8] sm:$0xff]
        %v547 = vld [vmem:[#allocation2 + $0x4c0] sm:$0xff]
        %v548 = vld [vmem:[#allocation2 + $0x4c8] sm:$0xff]
        %v549 = vld [vmem:[#allocation2 + $0x4d0] sm:$0xff]
        %v550 = vld [vmem:[#allocation2 + $0x4d8] sm:$0xff]
        %v551 = vld [vmem:[#allocation2 + $0x4e0] sm:$0xff]
        %v552 = vld [vmem:[#allocation2 + $0x4e8] sm:$0xff]
        %v553 = vld [vmem:[#allocation2 + $0x4f0] sm:$0xff]
        %v554 = vld [vmem:[#allocation2 + $0x4f8] sm:$0xff]
        %v555 = vld [vmem:[#allocation2 + $0x500] sm:$0xff]
        %v556 = vld [vmem:[#allocation2 + $0x508] sm:$0xff]
        %v557 = vld [vmem:[#allocation2 + $0x510] sm:$0xff]
        %v558 = vld [vmem:[#allocation2 + $0x518] sm:$0xff]
        %v559 = vld [vmem:[#allocation2 + $0x520] sm:$0xff]
        %v560 = vld [vmem:[#allocation2 + $0x528] sm:$0xff]
        %v561 = vld [vmem:[#allocation2 + $0x530] sm:$0xff]
        %v562 = vld [vmem:[#allocation2 + $0x538] sm:$0xff]
        %v563 = vld [vmem:[#allocation2 + $0x540] sm:$0xff]
        %v564 = vld [vmem:[#allocation2 + $0x548] sm:$0xff]
        %v565 = vld [vmem:[#allocation2 + $0x550] sm:$0xff]
        %v566 = vld [vmem:[#allocation2 + $0x558] sm:$0xff]
        %v567 = vld [vmem:[#allocation2 + $0x560] sm:$0xff]
        %v568 = vld [vmem:[#allocation2 + $0x568] sm:$0xff]
        %v569 = vld [vmem:[#allocation2 + $0x570] sm:$0xff]
        %v570 = vld [vmem:[#allocation2 + $0x578] sm:$0xff]
        %v571 = vld [vmem:[#allocation2 + $0x580] sm:$0xff]
        %v572 = vld [vmem:[#allocation2 + $0x588] sm:$0xff]
        %v573 = vld [vmem:[#allocation2 + $0x590] sm:$0xff]
        %v574 = vld [vmem:[#allocation2 + $0x598] sm:$0xff]
        %v575 = vld [vmem:[#allocation2 + $0x5a0] sm:$0xff]
        %v576 = vld [vmem:[#allocation2 + $0x5a8] sm:$0xff]
        %v577 = vld [vmem:[#allocation2 + $0x5b0] sm:$0xff]
        %v578 = vld [vmem:[#allocation2 + $0x5b8] sm:$0xff]
        %v579 = vld [vmem:[#allocation2 + $0x5c0] sm:$0xff]
        %v580 = vld [vmem:[#allocation2 + $0x5c8] sm:$0xff]
        %v581 = vld [vmem:[#allocation2 + $0x5d0] sm:$0xff]
        %v582 = vld [vmem:[#allocation2 + $0x5d8] sm:$0xff]
        %v583 = vld [vmem:[#allocation2 + $0x5e0] sm:$0xff]
        %v584 = vld [vmem:[#allocation2 + $0x5e8] sm:$0xff]
        %v585 = vld [vmem:[#allocation2 + $0x5f0] sm:$0xff]
        %v586 = vld [vmem:[#allocation2 + $0x5f8] sm:$0xff]
        %v587 = vld [vmem:[#allocation2 + $0x600] sm:$0xff]
        %v588 = vld [vmem:[#allocation2 + $0x608] sm:$0xff]
        %v589 = vld [vmem:[#allocation2 + $0x610] sm:$0xff]
        %v590 = vld [vmem:[#allocation2 + $0x618] sm:$0xff]
        %v591 = vld [vmem:[#allocation2 + $0x620] sm:$0xff]
        %v592 = vld [vmem:[#allocation2 + $0x628] sm:$0xff]
        %v593 = vld [vmem:[#allocation2 + $0x630] sm:$0xff]
        %v594 = vld [vmem:[#allocation2 + $0x638] sm:$0xff]
        %v595 = vld [vmem:[#allocation2 + $0x640] sm:$0xff]
        %v596 = vld [vmem:[#allocation2 + $0x648] sm:$0xff]
        %v597 = vld [vmem:[#allocation2 + $0x650] sm:$0xff]
        %v598 = vld [vmem:[#allocation2 + $0x658] sm:$0xff]
        %v599 = vld [vmem:[#allocation2 + $0x660] sm:$0xff]
        %v600 = vld [vmem:[#allocation2 + $0x668] sm:$0xff]
        %v601 = vld [vmem:[#allocation2 + $0x670] sm:$0xff]
        %v602 = vld [vmem:[#allocation2 + $0x678] sm:$0xff]
        %v603 = vld [vmem:[#allocation2 + $0x680] sm:$0xff]
        %v604 = vld [vmem:[#allocation2 + $0x688] sm:$0xff]
        %v605 = vld [vmem:[#allocation2 + $0x690] sm:$0xff]
        %v606 = vld [vmem:[#allocation2 + $0x698] sm:$0xff]
        %v607 = vld [vmem:[#allocation2 + $0x6a0] sm:$0xff]
        %v608 = vld [vmem:[#allocation2 + $0x6a8] sm:$0xff]
        %v609 = vld [vmem:[#allocation2 + $0x6b0] sm:$0xff]
        %v610 = vld [vmem:[#allocation2 + $0x6b8] sm:$0xff]
        %v611 = vld [vmem:[#allocation2 + $0x6c0] sm:$0xff]
        %v612 = vld [vmem:[#allocation2 + $0x6c8] sm:$0xff]
        %v613 = vld [vmem:[#allocation2 + $0x6d0] sm:$0xff]
        %v614 = vld [vmem:[#allocation2 + $0x6d8] sm:$0xff]
        %v615 = vld [vmem:[#allocation2 + $0x6e0] sm:$0xff]
        %v616 = vld [vmem:[#allocation2 + $0x6e8] sm:$0xff]
        %v617 = vld [vmem:[#allocation2 + $0x6f0] sm:$0xff]
        %v618 = vld [vmem:[#allocation2 + $0x6f8] sm:$0xff]
        %v619 = vld [vmem:[#allocation2 + $0x700] sm:$0xff]
        %v620 = vld [vmem:[#allocation2 + $0x708] sm:$0xff]
        %v621 = vld [vmem:[#allocation2 + $0x710] sm:$0xff]
        %v622 = vld [vmem:[#allocation2 + $0x718] sm:$0xff]
        %v623 = vld [vmem:[#allocation2 + $0x720] sm:$0xff]
        %v624 = vld [vmem:[#allocation2 + $0x728] sm:$0xff]
        %v625 = vld [vmem:[#allocation2 + $0x730] sm:$0xff]
        %v626 = vld [vmem:[#allocation2 + $0x738] sm:$0xff]
        %v627 = vld [vmem:[#allocation2 + $0x740] sm:$0xff]
        %v628 = vld [vmem:[#allocation2 + $0x748] sm:$0xff]
        %v629 = vld [vmem:[#allocation2 + $0x750] sm:$0xff]
        %v630 = vld [vmem:[#allocation2 + $0x758] sm:$0xff]
        %v631 = vld [vmem:[#allocation2 + $0x760] sm:$0xff]
        %v632 = vld [vmem:[#allocation2 + $0x768] sm:$0xff]
        %v633 = vld [vmem:[#allocation2 + $0x770] sm:$0xff]
        %v634 = vld [vmem:[#allocation2 + $0x778] sm:$0xff]
        %v635 = vld [vmem:[#allocation2 + $0x780] sm:$0xff]
        %v636 = vld [vmem:[#allocation2 + $0x788] sm:$0xff]
        %v637 = vld [vmem:[#allocation2 + $0x790] sm:$0xff]
        %v638 = vld [vmem:[#allocation2 + $0x798] sm:$0xff]
        %v639 = vld [vmem:[#allocation2 + $0x7a0] sm:$0xff]
        %v640 = vld [vmem:[#allocation2 + $0x7a8] sm:$0xff]
        %v641 = vld [vmem:[#allocation2 + $0x7b0] sm:$0xff]
        %v642 = vld [vmem:[#allocation2 + $0x7b8] sm:$0xff]
        %v643 = vld [vmem:[#allocation2 + $0x7c0] sm:$0xff]
        %v644 = vld [vmem:[#allocation2 + $0x7c8] sm:$0xff]
        %v645 = vld [vmem:[#allocation2 + $0x7d0] sm:$0xff]
        %v646 = vld [vmem:[#allocation2 + $0x7d8] sm:$0xff]
        %v647 = vld [vmem:[#allocation2 + $0x7e0] sm:$0xff]
        %v648 = vld [vmem:[#allocation2 + $0x7e8] sm:$0xff]
        %v649 = vld [vmem:[#allocation2 + $0x7f0] sm:$0xff]
        %v650 = vld [vmem:[#allocation2 + $0x7f8] sm:$0xff]
        %v651 = vld [vmem:[#allocation2 + $0x800] sm:$0xff]
        %v652 = vld [vmem:[#allocation2 + $0x808] sm:$0xff]
        %v653 = vld [vmem:[#allocation2 + $0x810] sm:$0xff]
        %v654 = vld [vmem:[#allocation2 + $0x818] sm:$0xff]
        %v655 = vld [vmem:[#allocation2 + $0x820] sm:$0xff]
        %v656 = vld [vmem:[#allocation2 + $0x828] sm:$0xff]
        %v657 = vld [vmem:[#allocation2 + $0x830] sm:$0xff]
        %v658 = vld [vmem:[#allocation2 + $0x838] sm:$0xff]
        %v659 = vld [vmem:[#allocation2 + $0x840] sm:$0xff]
        %v660 = vld [vmem:[#allocation2 + $0x848] sm:$0xff]
        %v661 = vld [vmem:[#allocation2 + $0x850] sm:$0xff]
        %v662 = vld [vmem:[#allocation2 + $0x858] sm:$0xff]
        %v663 = vld [vmem:[#allocation2 + $0x860] sm:$0xff]
        %v664 = vld [vmem:[#allocation2 + $0x868] sm:$0xff]
        %v665 = vld [vmem:[#allocation2 + $0x870] sm:$0xff]
        %v666 = vld [vmem:[#allocation2 + $0x878] sm:$0xff]
        %v667 = vld [vmem:[#allocation2 + $0x880] sm:$0xff]
        %v668 = vld [vmem:[#allocation2 + $0x888] sm:$0xff]
        %v669 = vld [vmem:[#allocation2 + $0x890] sm:$0xff]
        %v670 = vld [vmem:[#allocation2 + $0x898] sm:$0xff]
        %v671 = vld [vmem:[#allocation2 + $0x8a0] sm:$0xff]
        %v672 = vld [vmem:[#allocation2 + $0x8a8] sm:$0xff]
        %v673 = vld [vmem:[#allocation2 + $0x8b0] sm:$0xff]
        %v674 = vld [vmem:[#allocation2 + $0x8b8] sm:$0xff]
        %v675 = vld [vmem:[#allocation2 + $0x8c0] sm:$0xff]
        %v676 = vld [vmem:[#allocation2 + $0x8c8] sm:$0xff]
        %v677 = vld [vmem:[#allocation2 + $0x8d0] sm:$0xff]
        %v678 = vld [vmem:[#allocation2 + $0x8d8] sm:$0xff]
        %v679 = vld [vmem:[#allocation2 + $0x8e0] sm:$0xff]
        %v680 = vld [vmem:[#allocation2 + $0x8e8] sm:$0xff]
        %v681 = vld [vmem:[#allocation2 + $0x8f0] sm:$0xff]
        %v682 = vld [vmem:[#allocation2 + $0x8f8] sm:$0xff]
        %v683 = vld [vmem:[#allocation2 + $0x900] sm:$0xff]
        %v684 = vld [vmem:[#allocation2 + $0x908] sm:$0xff]
        %v685 = vld [vmem:[#allocation2 + $0x910] sm:$0xff]
        %v686 = vld [vmem:[#allocation2 + $0x918] sm:$0xff]
        %v687 = vld [vmem:[#allocation2 + $0x920] sm:$0xff]
        %v688 = vld [vmem:[#allocation2 + $0x928] sm:$0xff]
        %v689 = vld [vmem:[#allocation2 + $0x930] sm:$0xff]
        %v690 = vld [vmem:[#allocation2 + $0x938] sm:$0xff]
        %v691 = vld [vmem:[#allocation2 + $0x940] sm:$0xff]
        %v692 = vld [vmem:[#allocation2 + $0x948] sm:$0xff]
        %v693 = vld [vmem:[#allocation2 + $0x950] sm:$0xff]
        %v694 = vld [vmem:[#allocation2 + $0x958] sm:$0xff]
        %v695 = vld [vmem:[#allocation2 + $0x960] sm:$0xff]
        %v696 = vld [vmem:[#allocation2 + $0x968] sm:$0xff]
        %v697 = vld [vmem:[#allocation2 + $0x970] sm:$0xff]
        %v698 = vld [vmem:[#allocation2 + $0x978] sm:$0xff]
        %v699 = vld [vmem:[#allocation2 + $0x980] sm:$0xff]
        %v700 = vld [vmem:[#allocation2 + $0x988] sm:$0xff]
        %v701 = vld [vmem:[#allocation2 + $0x990] sm:$0xff]
        %v702 = vld [vmem:[#allocation2 + $0x998] sm:$0xff]
        %v703 = vld [vmem:[#allocation2 + $0x9a0] sm:$0xff]
        %v704 = vld [vmem:[#allocation2 + $0x9a8] sm:$0xff]
        %v705 = vld [vmem:[#allocation2 + $0x9b0] sm:$0xff]
        %v706 = vld [vmem:[#allocation2 + $0x9b8] sm:$0xff]
        %v707 = vld [vmem:[#allocation2 + $0x9c0] sm:$0xff]
        %v708 = vld [vmem:[#allocation2 + $0x9c8] sm:$0xff]
        %v709 = vld [vmem:[#allocation2 + $0x9d0] sm:$0xff]
        %v710 = vld [vmem:[#allocation2 + $0x9d8] sm:$0xff]
        %v711 = vld [vmem:[#allocation2 + $0x9e0] sm:$0xff]
        %v712 = vld [vmem:[#allocation2 + $0x9e8] sm:$0xff]
        %v713 = vld [vmem:[#allocation2 + $0x9f0] sm:$0xff]
        %v714 = vld [vmem:[#allocation2 + $0x9f8] sm:$0xff]
        %v715 = vld [vmem:[#allocation2 + $0xa00] sm:$0xff]
        %v716 = vld [vmem:[#allocation2 + $0xa08] sm:$0xff]
        %v717 = vld [vmem:[#allocation2 + $0xa10] sm:$0xff]
        %v718 = vld [vmem:[#allocation2 + $0xa18] sm:$0xff]
        %v719 = vld [vmem:[#allocation2 + $0xa20] sm:$0xff]
        %v720 = vld [vmem:[#allocation2 + $0xa28] sm:$0xff]
        %v721 = vld [vmem:[#allocation2 + $0xa30] sm:$0xff]
        %v722 = vld [vmem:[#allocation2 + $0xa38] sm:$0xff]
        %v723 = vld [vmem:[#allocation2 + $0xa40] sm:$0xff]
        %v724 = vld [vmem:[#allocation2 + $0xa48] sm:$0xff]
        %v725 = vld [vmem:[#allocation2 + $0xa50] sm:$0xff]
        %v726 = vld [vmem:[#allocation2 + $0xa58] sm:$0xff]
        %v727 = vld [vmem:[#allocation2 + $0xa60] sm:$0xff]
        %v728 = vld [vmem:[#allocation2 + $0xa68] sm:$0xff]
        %v729 = vld [vmem:[#allocation2 + $0xa70] sm:$0xff]
        %v730 = vld [vmem:[#allocation2 + $0xa78] sm:$0xff]
        %v731 = vld [vmem:[#allocation2 + $0xa80] sm:$0xff]
        %v732 = vld [vmem:[#allocation2 + $0xa88] sm:$0xff]
        %v733 = vld [vmem:[#allocation2 + $0xa90] sm:$0xff]
        %v734 = vld [vmem:[#allocation2 + $0xa98] sm:$0xff]
        %v735 = vld [vmem:[#allocation2 + $0xaa0] sm:$0xff]
        %v736 = vld [vmem:[#allocation2 + $0xaa8] sm:$0xff]
        %v737 = vld [vmem:[#allocation2 + $0xab0] sm:$0xff]
        %v738 = vld [vmem:[#allocation2 + $0xab8] sm:$0xff]
        %v739 = vld [vmem:[#allocation2 + $0xac0] sm:$0xff]
        %v740 = vld [vmem:[#allocation2 + $0xac8] sm:$0xff]
        %v741 = vld [vmem:[#allocation2 + $0xad0] sm:$0xff]
        %v742 = vld [vmem:[#allocation2 + $0xad8] sm:$0xff]
        %v743 = vld [vmem:[#allocation2 + $0xae0] sm:$0xff]
        %v744 = vld [vmem:[#allocation2 + $0xae8] sm:$0xff]
        %v745 = vld [vmem:[#allocation2 + $0xaf0] sm:$0xff]
        %v746 = vld [vmem:[#allocation2 + $0xaf8] sm:$0xff]
        %v747 = vld [vmem:[#allocation2 + $0xb00] sm:$0xff]
        %v748 = vld [vmem:[#allocation2 + $0xb08] sm:$0xff]
        %v749 = vld [vmem:[#allocation2 + $0xb10] sm:$0xff]
        %v750 = vld [vmem:[#allocation2 + $0xb18] sm:$0xff]
        %v751 = vld [vmem:[#allocation2 + $0xb20] sm:$0xff]
        %v752 = vld [vmem:[#allocation2 + $0xb28] sm:$0xff]
        %v753 = vld [vmem:[#allocation2 + $0xb30] sm:$0xff]
        %v754 = vld [vmem:[#allocation2 + $0xb38] sm:$0xff]
        %v755 = vld [vmem:[#allocation2 + $0xb40] sm:$0xff]
        %v756 = vld [vmem:[#allocation2 + $0xb48] sm:$0xff]
        %v757 = vld [vmem:[#allocation2 + $0xb50] sm:$0xff]
        %v758 = vld [vmem:[#allocation2 + $0xb58] sm:$0xff]
        %v759 = vld [vmem:[#allocation2 + $0xb60] sm:$0xff]
        %v760 = vld [vmem:[#allocation2 + $0xb68] sm:$0xff]
        %v761 = vld [vmem:[#allocation2 + $0xb70] sm:$0xff]
        %v762 = vld [vmem:[#allocation2 + $0xb78] sm:$0xff]
        %v763 = vld [vmem:[#allocation2 + $0xb80] sm:$0xff]
        %v764 = vld [vmem:[#allocation2 + $0xb88] sm:$0xff]
        %v765 = vld [vmem:[#allocation2 + $0xb90] sm:$0xff]
        %v766 = vld [vmem:[#allocation2 + $0xb98] sm:$0xff]
        %v767 = vld [vmem:[#allocation2 + $0xba0] sm:$0xff]
        %v768 = vld [vmem:[#allocation2 + $0xba8] sm:$0xff]
        %v769 = vld [vmem:[#allocation2 + $0xbb0] sm:$0xff]
        %v770 = vld [vmem:[#allocation2 + $0xbb8] sm:$0xff]
        %v771 = vld [vmem:[#allocation2 + $0xbc0] sm:$0xff]
        %v772 = vld [vmem:[#allocation2 + $0xbc8] sm:$0xff]
        %v773 = vld [vmem:[#allocation2 + $0xbd0] sm:$0xff]
        %v774 = vld [vmem:[#allocation2 + $0xbd8] sm:$0xff]
        %v775 = vld [vmem:[#allocation2 + $0xbe0] sm:$0xff]
        %v776 = vld [vmem:[#allocation2 + $0xbe8] sm:$0xff]
        %v777 = vld [vmem:[#allocation2 + $0xbf0] sm:$0xff]
        %v778 = vld [vmem:[#allocation2 + $0xbf8] sm:$0xff]
        %v779 = vld [vmem:[#allocation4] sm:$0xff]
        %v780 = vld [vmem:[#allocation4 + $0x8] sm:$0xf]
        %v783 = vperm.slane %v779, 0
        %v784 = vperm.slane %v779, 1
        %v785 = vperm.slane %v779, 2
        %v786 = vperm.slane %v779, 3
        %v787 = vperm.slane %v779, 4
        %v788 = vperm.slane %v779, 5
        %v789 = vperm.slane %v779, 6
        %v790 = vperm.slane %v779, 7
        %v791 = vperm.slane %v780, 0
        %v792 = vperm.slane %v780, 1
        %v793 = vperm.slane %v780, 2
        %v794 = vperm.slane %v780, 3
        %v1191 = vunpack.c.l.b16 %v395
        %v1192 = vunpack.c.h.b16 %v395
        %v1193 = vunpack.c.l.b16 %v396
        %v1194 = vunpack.c.h.b16 %v396
        %v1195 = vunpack.c.l.b16 %v397
        %v1196 = vunpack.c.h.b16 %v397
        %v1197 = vunpack.c.l.b16 %v398
        %v1198 = vunpack.c.h.b16 %v398
        %v1199 = vunpack.c.l.b16 %v399
        %v1200 = vunpack.c.h.b16 %v399
        %v1201 = vunpack.c.l.b16 %v400
        %v1202 = vunpack.c.h.b16 %v400
        %v1203 = vunpack.c.l.b16 %v401
        %v1204 = vunpack.c.h.b16 %v401
        %v1205 = vunpack.c.l.b16 %v402
        %v1206 = vunpack.c.h.b16 %v402
        %v1207 = vunpack.c.l.b16 %v403
        %v1208 = vunpack.c.h.b16 %v403
        %v1209 = vunpack.c.l.b16 %v404
        %v1210 = vunpack.c.h.b16 %v404
        %v1211 = vunpack.c.l.b16 %v405
        %v1212 = vunpack.c.h.b16 %v405
        %v1213 = vunpack.c.l.b16 %v406
        %v1214 = vunpack.c.h.b16 %v406
        %v1215 = vunpack.c.l.b16 %v407
        %v1216 = vunpack.c.h.b16 %v407
        %v1217 = vunpack.c.l.b16 %v408
        %v1218 = vunpack.c.h.b16 %v408
        %v1219 = vunpack.c.l.b16 %v409
        %v1220 = vunpack.c.h.b16 %v409
        %v1221 = vunpack.c.l.b16 %v410
        %v1222 = vunpack.c.h.b16 %v410
        %v1223 = vunpack.c.l.b16 %v411
        %v1224 = vunpack.c.h.b16 %v411
        %v1225 = vunpack.c.l.b16 %v412
        %v1226 = vunpack.c.h.b16 %v412
        %v1227 = vunpack.c.l.b16 %v413
        %v1228 = vunpack.c.h.b16 %v413
        %v1229 = vunpack.c.l.b16 %v414
        %v1230 = vunpack.c.h.b16 %v414
        %v1231 = vunpack.c.l.b16 %v415
        %v1232 = vunpack.c.h.b16 %v415
        %v1233 = vunpack.c.l.b16 %v416
        %v1234 = vunpack.c.h.b16 %v416
        %v1235 = vunpack.c.l.b16 %v417
        %v1236 = vunpack.c.h.b16 %v417
        %v1237 = vunpack.c.l.b16 %v418
        %v1238 = vunpack.c.h.b16 %v418
        %v1239 = vunpack.c.l.b16 %v419
        %v1240 = vunpack.c.h.b16 %v419
        %v1241 = vunpack.c.l.b16 %v420
        %v1242 = vunpack.c.h.b16 %v420
        %v1243 = vunpack.c.l.b16 %v421
        %v1244 = vunpack.c.h.b16 %v421
        %v1245 = vunpack.c.l.b16 %v422
        %v1246 = vunpack.c.h.b16 %v422
        %v1247 = vunpack.c.l.b16 %v423
        %v1248 = vunpack.c.h.b16 %v423
        %v1249 = vunpack.c.l.b16 %v424
        %v1250 = vunpack.c.h.b16 %v424
        %v1251 = vunpack.c.l.b16 %v425
        %v1252 = vunpack.c.h.b16 %v425
        %v1253 = vunpack.c.l.b16 %v426
        %v1254 = vunpack.c.h.b16 %v426
        %v1255 = vunpack.c.l.b16 %v427
        %v1256 = vunpack.c.h.b16 %v427
        %v1257 = vunpack.c.l.b16 %v428
        %v1258 = vunpack.c.h.b16 %v428
        %v1259 = vunpack.c.l.b16 %v429
        %v1260 = vunpack.c.h.b16 %v429
        %v1261 = vunpack.c.l.b16 %v430
        %v1262 = vunpack.c.h.b16 %v430
        %v1263 = vunpack.c.l.b16 %v431
        %v1264 = vunpack.c.h.b16 %v431
        %v1265 = vunpack.c.l.b16 %v432
        %v1266 = vunpack.c.h.b16 %v432
        %v1267 = vunpack.c.l.b16 %v433
        %v1268 = vunpack.c.h.b16 %v433
        %v1269 = vunpack.c.l.b16 %v434
        %v1270 = vunpack.c.h.b16 %v434
        %v1271 = vunpack.c.l.b16 %v435
        %v1272 = vunpack.c.h.b16 %v435
        %v1273 = vunpack.c.l.b16 %v436
        %v1274 = vunpack.c.h.b16 %v436
        %v1275 = vunpack.c.l.b16 %v437
        %v1276 = vunpack.c.h.b16 %v437
        %v1277 = vunpack.c.l.b16 %v438
        %v1278 = vunpack.c.h.b16 %v438
        %v1279 = vunpack.c.l.b16 %v439
        %v1280 = vunpack.c.h.b16 %v439
        %v1281 = vunpack.c.l.b16 %v440
        %v1282 = vunpack.c.h.b16 %v440
        %v1283 = vunpack.c.l.b16 %v441
        %v1284 = vunpack.c.h.b16 %v441
        %v1285 = vunpack.c.l.b16 %v442
        %v1286 = vunpack.c.h.b16 %v442
        %v1287 = vunpack.c.l.b16 %v443
        %v1288 = vunpack.c.h.b16 %v443
        %v1289 = vunpack.c.l.b16 %v444
        %v1290 = vunpack.c.h.b16 %v444
        %v1291 = vunpack.c.l.b16 %v445
        %v1292 = vunpack.c.h.b16 %v445
        %v1293 = vunpack.c.l.b16 %v446
        %v1294 = vunpack.c.h.b16 %v446
        %v1295 = vunpack.c.l.b16 %v447
        %v1296 = vunpack.c.h.b16 %v447
        %v1297 = vunpack.c.l.b16 %v448
        %v1298 = vunpack.c.h.b16 %v448
        %v1299 = vunpack.c.l.b16 %v449
        %v1300 = vunpack.c.h.b16 %v449
        %v1301 = vunpack.c.l.b16 %v450
        %v1302 = vunpack.c.h.b16 %v450
        %v1303 = vunpack.c.l.b16 %v451
        %v1304 = vunpack.c.h.b16 %v451
        %v1305 = vunpack.c.l.b16 %v452
        %v1306 = vunpack.c.h.b16 %v452
        %v1307 = vunpack.c.l.b16 %v453
        %v1308 = vunpack.c.h.b16 %v453
        %v1309 = vunpack.c.l.b16 %v454
        %v1310 = vunpack.c.h.b16 %v454
        %v1311 = vunpack.c.l.b16 %v455
        %v1312 = vunpack.c.h.b16 %v455
        %v1313 = vunpack.c.l.b16 %v456
        %v1314 = vunpack.c.h.b16 %v456
        %v1315 = vunpack.c.l.b16 %v457
        %v1316 = vunpack.c.h.b16 %v457
        %v1317 = vunpack.c.l.b16 %v458
        %v1318 = vunpack.c.h.b16 %v458
        %v1319 = vunpack.c.l.b16 %v459
        %v1320 = vunpack.c.h.b16 %v459
        %v1321 = vunpack.c.l.b16 %v460
        %v1322 = vunpack.c.h.b16 %v460
        %v1323 = vunpack.c.l.b16 %v461
        %v1324 = vunpack.c.h.b16 %v461
        %v1325 = vunpack.c.l.b16 %v462
        %v1326 = vunpack.c.h.b16 %v462
        %v1327 = vunpack.c.l.b16 %v463
        %v1328 = vunpack.c.h.b16 %v463
        %v1329 = vunpack.c.l.b16 %v464
        %v1330 = vunpack.c.h.b16 %v464
        %v1331 = vunpack.c.l.b16 %v465
        %v1332 = vunpack.c.h.b16 %v465
        %v1333 = vunpack.c.l.b16 %v466
        %v1334 = vunpack.c.h.b16 %v466
        %v1335 = vunpack.c.l.b16 %v467
        %v1336 = vunpack.c.h.b16 %v467
        %v1337 = vunpack.c.l.b16 %v468
        %v1338 = vunpack.c.h.b16 %v468
        %v1339 = vunpack.c.l.b16 %v469
        %v1340 = vunpack.c.h.b16 %v469
        %v1341 = vunpack.c.l.b16 %v470
        %v1342 = vunpack.c.h.b16 %v470
        %v1343 = vunpack.c.l.b16 %v471
        %v1344 = vunpack.c.h.b16 %v471
        %v1345 = vunpack.c.l.b16 %v472
        %v1346 = vunpack.c.h.b16 %v472
        %v1347 = vunpack.c.l.b16 %v473
        %v1348 = vunpack.c.h.b16 %v473
        %v1349 = vunpack.c.l.b16 %v474
        %v1350 = vunpack.c.h.b16 %v474
        %v1351 = vunpack.c.l.b16 %v475
        %v1352 = vunpack.c.h.b16 %v475
        %v1353 = vunpack.c.l.b16 %v476
        %v1354 = vunpack.c.h.b16 %v476
        %v1355 = vunpack.c.l.b16 %v477
        %v1356 = vunpack.c.h.b16 %v477
        %v1357 = vunpack.c.l.b16 %v478
        %v1358 = vunpack.c.h.b16 %v478
        %v1359 = vunpack.c.l.b16 %v479
        %v1360 = vunpack.c.h.b16 %v479
        %v1361 = vunpack.c.l.b16 %v480
        %v1362 = vunpack.c.h.b16 %v480
        %v1363 = vunpack.c.l.b16 %v481
        %v1364 = vunpack.c.h.b16 %v481
        %v1365 = vunpack.c.l.b16 %v482
        %v1366 = vunpack.c.h.b16 %v482
        %v1367 = vunpack.c.l.b16 %v483
        %v1368 = vunpack.c.h.b16 %v483
        %v1369 = vunpack.c.l.b16 %v484
        %v1370 = vunpack.c.h.b16 %v484
        %v1371 = vunpack.c.l.b16 %v485
        %v1372 = vunpack.c.h.b16 %v485
        %v1373 = vunpack.c.l.b16 %v486
        %v1374 = vunpack.c.h.b16 %v486
        %v1375 = vunpack.c.l.b16 %v487
        %v1376 = vunpack.c.h.b16 %v487
        %v1377 = vunpack.c.l.b16 %v488
        %v1378 = vunpack.c.h.b16 %v488
        %v1379 = vunpack.c.l.b16 %v489
        %v1380 = vunpack.c.h.b16 %v489
        %v1381 = vunpack.c.l.b16 %v490
        %v1382 = vunpack.c.h.b16 %v490
        %v1383 = vunpack.c.l.b16 %v491
        %v1384 = vunpack.c.h.b16 %v491
        %v1385 = vunpack.c.l.b16 %v492
        %v1386 = vunpack.c.h.b16 %v492
        %v1387 = vunpack.c.l.b16 %v493
        %v1388 = vunpack.c.h.b16 %v493
        %v1389 = vunpack.c.l.b16 %v494
        %v1390 = vunpack.c.h.b16 %v494
        %v1391 = vunpack.c.l.b16 %v495
        %v1392 = vunpack.c.h.b16 %v495
        %v1393 = vunpack.c.l.b16 %v496
        %v1394 = vunpack.c.h.b16 %v496
        %v1395 = vunpack.c.l.b16 %v497
        %v1396 = vunpack.c.h.b16 %v497
        %v1397 = vunpack.c.l.b16 %v498
        %v1398 = vunpack.c.h.b16 %v498
        %v1399 = vunpack.c.l.b16 %v499
        %v1400 = vunpack.c.h.b16 %v499
        %v1401 = vunpack.c.l.b16 %v500
        %v1402 = vunpack.c.h.b16 %v500
        %v1403 = vunpack.c.l.b16 %v501
        %v1404 = vunpack.c.h.b16 %v501
        %v1405 = vunpack.c.l.b16 %v502
        %v1406 = vunpack.c.h.b16 %v502
        %v1407 = vunpack.c.l.b16 %v503
        %v1408 = vunpack.c.h.b16 %v503
        %v1409 = vunpack.c.l.b16 %v504
        %v1410 = vunpack.c.h.b16 %v504
        %v1411 = vunpack.c.l.b16 %v505
        %v1412 = vunpack.c.h.b16 %v505
        %v1413 = vunpack.c.l.b16 %v506
        %v1414 = vunpack.c.h.b16 %v506
        %v1415 = vunpack.c.l.b16 %v507
        %v1416 = vunpack.c.h.b16 %v507
        %v1417 = vunpack.c.l.b16 %v508
        %v1418 = vunpack.c.h.b16 %v508
        %v1419 = vunpack.c.l.b16 %v509
        %v1420 = vunpack.c.h.b16 %v509
        %v1421 = vunpack.c.l.b16 %v510
        %v1422 = vunpack.c.h.b16 %v510
        %v1423 = vunpack.c.l.b16 %v511
        %v1424 = vunpack.c.h.b16 %v511
        %v1425 = vunpack.c.l.b16 %v512
        %v1426 = vunpack.c.h.b16 %v512
        %v1427 = vunpack.c.l.b16 %v513
        %v1428 = vunpack.c.h.b16 %v513
        %v1429 = vunpack.c.l.b16 %v514
        %v1430 = vunpack.c.h.b16 %v514
        %v1431 = vunpack.c.l.b16 %v515
        %v1432 = vunpack.c.h.b16 %v515
        %v1433 = vunpack.c.l.b16 %v516
        %v1434 = vunpack.c.h.b16 %v516
        %v1435 = vunpack.c.l.b16 %v517
        %v1436 = vunpack.c.h.b16 %v517
        %v1437 = vunpack.c.l.b16 %v518
        %v1438 = vunpack.c.h.b16 %v518
        %v1439 = vunpack.c.l.b16 %v519
        %v1440 = vunpack.c.h.b16 %v519
        %v1441 = vunpack.c.l.b16 %v520
        %v1442 = vunpack.c.h.b16 %v520
        %v1443 = vunpack.c.l.b16 %v521
        %v1444 = vunpack.c.h.b16 %v521
        %v1445 = vunpack.c.l.b16 %v522
        %v1446 = vunpack.c.h.b16 %v522
        %v1447 = vunpack.c.l.b16 %v523
        %v1448 = vunpack.c.h.b16 %v523
        %v1449 = vunpack.c.l.b16 %v524
        %v1450 = vunpack.c.h.b16 %v524
        %v1451 = vunpack.c.l.b16 %v525
        %v1452 = vunpack.c.h.b16 %v525
        %v1453 = vunpack.c.l.b16 %v526
        %v1454 = vunpack.c.h.b16 %v526
        %v1455 = vunpack.c.l.b16 %v527
        %v1456 = vunpack.c.h.b16 %v527
        %v1457 = vunpack.c.l.b16 %v528
        %v1458 = vunpack.c.h.b16 %v528
        %v1459 = vunpack.c.l.b16 %v529
        %v1460 = vunpack.c.h.b16 %v529
        %v1461 = vunpack.c.l.b16 %v530
        %v1462 = vunpack.c.h.b16 %v530
        %v1463 = vunpack.c.l.b16 %v531
        %v1464 = vunpack.c.h.b16 %v531
        %v1465 = vunpack.c.l.b16 %v532
        %v1466 = vunpack.c.h.b16 %v532
        %v1467 = vunpack.c.l.b16 %v533
        %v1468 = vunpack.c.h.b16 %v533
        %v1469 = vunpack.c.l.b16 %v534
        %v1470 = vunpack.c.h.b16 %v534
        %v1471 = vunpack.c.l.b16 %v535
        %v1472 = vunpack.c.h.b16 %v535
        %v1473 = vunpack.c.l.b16 %v536
        %v1474 = vunpack.c.h.b16 %v536
        %v1475 = vunpack.c.l.b16 %v537
        %v1476 = vunpack.c.h.b16 %v537
        %v1477 = vunpack.c.l.b16 %v538
        %v1478 = vunpack.c.h.b16 %v538
        %v1479 = vunpack.c.l.b16 %v539
        %v1480 = vunpack.c.h.b16 %v539
        %v1481 = vunpack.c.l.b16 %v540
        %v1482 = vunpack.c.h.b16 %v540
        %v1483 = vunpack.c.l.b16 %v541
        %v1484 = vunpack.c.h.b16 %v541
        %v1485 = vunpack.c.l.b16 %v542
        %v1486 = vunpack.c.h.b16 %v542
        %v1487 = vunpack.c.l.b16 %v543
        %v1488 = vunpack.c.h.b16 %v543
        %v1489 = vunpack.c.l.b16 %v544
        %v1490 = vunpack.c.h.b16 %v544
        %v1491 = vunpack.c.l.b16 %v545
        %v1492 = vunpack.c.h.b16 %v545
        %v1493 = vunpack.c.l.b16 %v546
        %v1494 = vunpack.c.h.b16 %v546
        %v1495 = vunpack.c.l.b16 %v547
        %v1496 = vunpack.c.h.b16 %v547
        %v1497 = vunpack.c.l.b16 %v548
        %v1498 = vunpack.c.h.b16 %v548
        %v1499 = vunpack.c.l.b16 %v549
        %v1500 = vunpack.c.h.b16 %v549
        %v1501 = vunpack.c.l.b16 %v550
        %v1502 = vunpack.c.h.b16 %v550
        %v1503 = vunpack.c.l.b16 %v551
        %v1504 = vunpack.c.h.b16 %v551
        %v1505 = vunpack.c.l.b16 %v552
        %v1506 = vunpack.c.h.b16 %v552
        %v1507 = vunpack.c.l.b16 %v553
        %v1508 = vunpack.c.h.b16 %v553
        %v1509 = vunpack.c.l.b16 %v554
        %v1510 = vunpack.c.h.b16 %v554
        %v1511 = vunpack.c.l.b16 %v555
        %v1512 = vunpack.c.h.b16 %v555
        %v1513 = vunpack.c.l.b16 %v556
        %v1514 = vunpack.c.h.b16 %v556
        %v1515 = vunpack.c.l.b16 %v557
        %v1516 = vunpack.c.h.b16 %v557
        %v1517 = vunpack.c.l.b16 %v558
        %v1518 = vunpack.c.h.b16 %v558
        %v1519 = vunpack.c.l.b16 %v559
        %v1520 = vunpack.c.h.b16 %v559
        %v1521 = vunpack.c.l.b16 %v560
        %v1522 = vunpack.c.h.b16 %v560
        %v1523 = vunpack.c.l.b16 %v561
        %v1524 = vunpack.c.h.b16 %v561
        %v1525 = vunpack.c.l.b16 %v562
        %v1526 = vunpack.c.h.b16 %v562
        %v1527 = vunpack.c.l.b16 %v563
        %v1528 = vunpack.c.h.b16 %v563
        %v1529 = vunpack.c.l.b16 %v564
        %v1530 = vunpack.c.h.b16 %v564
        %v1531 = vunpack.c.l.b16 %v565
        %v1532 = vunpack.c.h.b16 %v565
        %v1533 = vunpack.c.l.b16 %v566
        %v1534 = vunpack.c.h.b16 %v566
        %v1535 = vunpack.c.l.b16 %v567
        %v1536 = vunpack.c.h.b16 %v567
        %v1537 = vunpack.c.l.b16 %v568
        %v1538 = vunpack.c.h.b16 %v568
        %v1539 = vunpack.c.l.b16 %v569
        %v1540 = vunpack.c.h.b16 %v569
        %v1541 = vunpack.c.l.b16 %v570
        %v1542 = vunpack.c.h.b16 %v570
        %v1543 = vunpack.c.l.b16 %v571
        %v1544 = vunpack.c.h.b16 %v571
        %v1545 = vunpack.c.l.b16 %v572
        %v1546 = vunpack.c.h.b16 %v572
        %v1547 = vunpack.c.l.b16 %v573
        %v1548 = vunpack.c.h.b16 %v573
        %v1549 = vunpack.c.l.b16 %v574
        %v1550 = vunpack.c.h.b16 %v574
        %v1551 = vunpack.c.l.b16 %v575
        %v1552 = vunpack.c.h.b16 %v575
        %v1553 = vunpack.c.l.b16 %v576
        %v1554 = vunpack.c.h.b16 %v576
        %v1555 = vunpack.c.l.b16 %v577
        %v1556 = vunpack.c.h.b16 %v577
        %v1557 = vunpack.c.l.b16 %v578
        %v1558 = vunpack.c.h.b16 %v578
        %v1559 = vunpack.c.l.b16 %v579
        %v1560 = vunpack.c.h.b16 %v579
        %v1561 = vunpack.c.l.b16 %v580
        %v1562 = vunpack.c.h.b16 %v580
        %v1563 = vunpack.c.l.b16 %v581
        %v1564 = vunpack.c.h.b16 %v581
        %v1565 = vunpack.c.l.b16 %v582
        %v1566 = vunpack.c.h.b16 %v582
        %v1567 = vunpack.c.l.b16 %v583
        %v1568 = vunpack.c.h.b16 %v583
        %v1569 = vunpack.c.l.b16 %v584
        %v1570 = vunpack.c.h.b16 %v584
        %v1571 = vunpack.c.l.b16 %v585
        %v1572 = vunpack.c.h.b16 %v585
        %v1573 = vunpack.c.l.b16 %v586
        %v1574 = vunpack.c.h.b16 %v586
        %v1575 = vunpack.c.l.b16 %v587
        %v1576 = vunpack.c.h.b16 %v587
        %v1577 = vunpack.c.l.b16 %v588
        %v1578 = vunpack.c.h.b16 %v588
        %v1579 = vunpack.c.l.b16 %v589
        %v1580 = vunpack.c.h.b16 %v589
        %v1581 = vunpack.c.l.b16 %v590
        %v1582 = vunpack.c.h.b16 %v590
        %v1583 = vunpack.c.l.b16 %v591
        %v1584 = vunpack.c.h.b16 %v591
        %v1585 = vunpack.c.l.b16 %v592
        %v1586 = vunpack.c.h.b16 %v592
        %v1587 = vunpack.c.l.b16 %v593
        %v1588 = vunpack.c.h.b16 %v593
        %v1589 = vunpack.c.l.b16 %v594
        %v1590 = vunpack.c.h.b16 %v594
        %v1591 = vunpack.c.l.b16 %v595
        %v1592 = vunpack.c.h.b16 %v595
        %v1593 = vunpack.c.l.b16 %v596
        %v1594 = vunpack.c.h.b16 %v596
        %v1595 = vunpack.c.l.b16 %v597
        %v1596 = vunpack.c.h.b16 %v597
        %v1597 = vunpack.c.l.b16 %v598
        %v1598 = vunpack.c.h.b16 %v598
        %v1599 = vunpack.c.l.b16 %v599
        %v1600 = vunpack.c.h.b16 %v599
        %v1601 = vunpack.c.l.b16 %v600
        %v1602 = vunpack.c.h.b16 %v600
        %v1603 = vunpack.c.l.b16 %v601
        %v1604 = vunpack.c.h.b16 %v601
        %v1605 = vunpack.c.l.b16 %v602
        %v1606 = vunpack.c.h.b16 %v602
        %v1607 = vunpack.c.l.b16 %v603
        %v1608 = vunpack.c.h.b16 %v603
        %v1609 = vunpack.c.l.b16 %v604
        %v1610 = vunpack.c.h.b16 %v604
        %v1611 = vunpack.c.l.b16 %v605
        %v1612 = vunpack.c.h.b16 %v605
        %v1613 = vunpack.c.l.b16 %v606
        %v1614 = vunpack.c.h.b16 %v606
        %v1615 = vunpack.c.l.b16 %v607
        %v1616 = vunpack.c.h.b16 %v607
        %v1617 = vunpack.c.l.b16 %v608
        %v1618 = vunpack.c.h.b16 %v608
        %v1619 = vunpack.c.l.b16 %v609
        %v1620 = vunpack.c.h.b16 %v609
        %v1621 = vunpack.c.l.b16 %v610
        %v1622 = vunpack.c.h.b16 %v610
        %v1623 = vunpack.c.l.b16 %v611
        %v1624 = vunpack.c.h.b16 %v611
        %v1625 = vunpack.c.l.b16 %v612
        %v1626 = vunpack.c.h.b16 %v612
        %v1627 = vunpack.c.l.b16 %v613
        %v1628 = vunpack.c.h.b16 %v613
        %v1629 = vunpack.c.l.b16 %v614
        %v1630 = vunpack.c.h.b16 %v614
        %v1631 = vunpack.c.l.b16 %v615
        %v1632 = vunpack.c.h.b16 %v615
        %v1633 = vunpack.c.l.b16 %v616
        %v1634 = vunpack.c.h.b16 %v616
        %v1635 = vunpack.c.l.b16 %v617
        %v1636 = vunpack.c.h.b16 %v617
        %v1637 = vunpack.c.l.b16 %v618
        %v1638 = vunpack.c.h.b16 %v618
        %v1639 = vunpack.c.l.b16 %v619
        %v1640 = vunpack.c.h.b16 %v619
        %v1641 = vunpack.c.l.b16 %v620
        %v1642 = vunpack.c.h.b16 %v620
        %v1643 = vunpack.c.l.b16 %v621
        %v1644 = vunpack.c.h.b16 %v621
        %v1645 = vunpack.c.l.b16 %v622
        %v1646 = vunpack.c.h.b16 %v622
        %v1647 = vunpack.c.l.b16 %v623
        %v1648 = vunpack.c.h.b16 %v623
        %v1649 = vunpack.c.l.b16 %v624
        %v1650 = vunpack.c.h.b16 %v624
        %v1651 = vunpack.c.l.b16 %v625
        %v1652 = vunpack.c.h.b16 %v625
        %v1653 = vunpack.c.l.b16 %v626
        %v1654 = vunpack.c.h.b16 %v626
        %v1655 = vunpack.c.l.b16 %v627
        %v1656 = vunpack.c.h.b16 %v627
        %v1657 = vunpack.c.l.b16 %v628
        %v1658 = vunpack.c.h.b16 %v628
        %v1659 = vunpack.c.l.b16 %v629
        %v1660 = vunpack.c.h.b16 %v629
        %v1661 = vunpack.c.l.b16 %v630
        %v1662 = vunpack.c.h.b16 %v630
        %v1663 = vunpack.c.l.b16 %v631
        %v1664 = vunpack.c.h.b16 %v631
        %v1665 = vunpack.c.l.b16 %v632
        %v1666 = vunpack.c.h.b16 %v632
        %v1667 = vunpack.c.l.b16 %v633
        %v1668 = vunpack.c.h.b16 %v633
        %v1669 = vunpack.c.l.b16 %v634
        %v1670 = vunpack.c.h.b16 %v634
        %v1671 = vunpack.c.l.b16 %v635
        %v1672 = vunpack.c.h.b16 %v635
        %v1673 = vunpack.c.l.b16 %v636
        %v1674 = vunpack.c.h.b16 %v636
        %v1675 = vunpack.c.l.b16 %v637
        %v1676 = vunpack.c.h.b16 %v637
        %v1677 = vunpack.c.l.b16 %v638
        %v1678 = vunpack.c.h.b16 %v638
        %v1679 = vunpack.c.l.b16 %v639
        %v1680 = vunpack.c.h.b16 %v639
        %v1681 = vunpack.c.l.b16 %v640
        %v1682 = vunpack.c.h.b16 %v640
        %v1683 = vunpack.c.l.b16 %v641
        %v1684 = vunpack.c.h.b16 %v641
        %v1685 = vunpack.c.l.b16 %v642
        %v1686 = vunpack.c.h.b16 %v642
        %v1687 = vunpack.c.l.b16 %v643
        %v1688 = vunpack.c.h.b16 %v643
        %v1689 = vunpack.c.l.b16 %v644
        %v1690 = vunpack.c.h.b16 %v644
        %v1691 = vunpack.c.l.b16 %v645
        %v1692 = vunpack.c.h.b16 %v645
        %v1693 = vunpack.c.l.b16 %v646
        %v1694 = vunpack.c.h.b16 %v646
        %v1695 = vunpack.c.l.b16 %v647
        %v1696 = vunpack.c.h.b16 %v647
        %v1697 = vunpack.c.l.b16 %v648
        %v1698 = vunpack.c.h.b16 %v648
        %v1699 = vunpack.c.l.b16 %v649
        %v1700 = vunpack.c.h.b16 %v649
        %v1701 = vunpack.c.l.b16 %v650
        %v1702 = vunpack.c.h.b16 %v650
        %v1703 = vunpack.c.l.b16 %v651
        %v1704 = vunpack.c.h.b16 %v651
        %v1705 = vunpack.c.l.b16 %v652
        %v1706 = vunpack.c.h.b16 %v652
        %v1707 = vunpack.c.l.b16 %v653
        %v1708 = vunpack.c.h.b16 %v653
        %v1709 = vunpack.c.l.b16 %v654
        %v1710 = vunpack.c.h.b16 %v654
        %v1711 = vunpack.c.l.b16 %v655
        %v1712 = vunpack.c.h.b16 %v655
        %v1713 = vunpack.c.l.b16 %v656
        %v1714 = vunpack.c.h.b16 %v656
        %v1715 = vunpack.c.l.b16 %v657
        %v1716 = vunpack.c.h.b16 %v657
        %v1717 = vunpack.c.l.b16 %v658
        %v1718 = vunpack.c.h.b16 %v658
        %v1719 = vunpack.c.l.b16 %v659
        %v1720 = vunpack.c.h.b16 %v659
        %v1721 = vunpack.c.l.b16 %v660
        %v1722 = vunpack.c.h.b16 %v660
        %v1723 = vunpack.c.l.b16 %v661
        %v1724 = vunpack.c.h.b16 %v661
        %v1725 = vunpack.c.l.b16 %v662
        %v1726 = vunpack.c.h.b16 %v662
        %v1727 = vunpack.c.l.b16 %v663
        %v1728 = vunpack.c.h.b16 %v663
        %v1729 = vunpack.c.l.b16 %v664
        %v1730 = vunpack.c.h.b16 %v664
        %v1731 = vunpack.c.l.b16 %v665
        %v1732 = vunpack.c.h.b16 %v665
        %v1733 = vunpack.c.l.b16 %v666
        %v1734 = vunpack.c.h.b16 %v666
        %v1735 = vunpack.c.l.b16 %v667
        %v1736 = vunpack.c.h.b16 %v667
        %v1737 = vunpack.c.l.b16 %v668
        %v1738 = vunpack.c.h.b16 %v668
        %v1739 = vunpack.c.l.b16 %v669
        %v1740 = vunpack.c.h.b16 %v669
        %v1741 = vunpack.c.l.b16 %v670
        %v1742 = vunpack.c.h.b16 %v670
        %v1743 = vunpack.c.l.b16 %v671
        %v1744 = vunpack.c.h.b16 %v671
        %v1745 = vunpack.c.l.b16 %v672
        %v1746 = vunpack.c.h.b16 %v672
        %v1747 = vunpack.c.l.b16 %v673
        %v1748 = vunpack.c.h.b16 %v673
        %v1749 = vunpack.c.l.b16 %v674
        %v1750 = vunpack.c.h.b16 %v674
        %v1751 = vunpack.c.l.b16 %v675
        %v1752 = vunpack.c.h.b16 %v675
        %v1753 = vunpack.c.l.b16 %v676
        %v1754 = vunpack.c.h.b16 %v676
        %v1755 = vunpack.c.l.b16 %v677
        %v1756 = vunpack.c.h.b16 %v677
        %v1757 = vunpack.c.l.b16 %v678
        %v1758 = vunpack.c.h.b16 %v678
        %v1759 = vunpack.c.l.b16 %v679
        %v1760 = vunpack.c.h.b16 %v679
        %v1761 = vunpack.c.l.b16 %v680
        %v1762 = vunpack.c.h.b16 %v680
        %v1763 = vunpack.c.l.b16 %v681
        %v1764 = vunpack.c.h.b16 %v681
        %v1765 = vunpack.c.l.b16 %v682
        %v1766 = vunpack.c.h.b16 %v682
        %v1767 = vunpack.c.l.b16 %v683
        %v1768 = vunpack.c.h.b16 %v683
        %v1769 = vunpack.c.l.b16 %v684
        %v1770 = vunpack.c.h.b16 %v684
        %v1771 = vunpack.c.l.b16 %v685
        %v1772 = vunpack.c.h.b16 %v685
        %v1773 = vunpack.c.l.b16 %v686
        %v1774 = vunpack.c.h.b16 %v686
        %v1775 = vunpack.c.l.b16 %v687
        %v1776 = vunpack.c.h.b16 %v687
        %v1777 = vunpack.c.l.b16 %v688
        %v1778 = vunpack.c.h.b16 %v688
        %v1779 = vunpack.c.l.b16 %v689
        %v1780 = vunpack.c.h.b16 %v689
        %v1781 = vunpack.c.l.b16 %v690
        %v1782 = vunpack.c.h.b16 %v690
        %v1783 = vunpack.c.l.b16 %v691
        %v1784 = vunpack.c.h.b16 %v691
        %v1785 = vunpack.c.l.b16 %v692
        %v1786 = vunpack.c.h.b16 %v692
        %v1787 = vunpack.c.l.b16 %v693
        %v1788 = vunpack.c.h.b16 %v693
        %v1789 = vunpack.c.l.b16 %v694
        %v1790 = vunpack.c.h.b16 %v694
        %v1791 = vunpack.c.l.b16 %v695
        %v1792 = vunpack.c.h.b16 %v695
        %v1793 = vunpack.c.l.b16 %v696
        %v1794 = vunpack.c.h.b16 %v696
        %v1795 = vunpack.c.l.b16 %v697
        %v1796 = vunpack.c.h.b16 %v697
        %v1797 = vunpack.c.l.b16 %v698
        %v1798 = vunpack.c.h.b16 %v698
        %v1799 = vunpack.c.l.b16 %v699
        %v1800 = vunpack.c.h.b16 %v699
        %v1801 = vunpack.c.l.b16 %v700
        %v1802 = vunpack.c.h.b16 %v700
        %v1803 = vunpack.c.l.b16 %v701
        %v1804 = vunpack.c.h.b16 %v701
        %v1805 = vunpack.c.l.b16 %v702
        %v1806 = vunpack.c.h.b16 %v702
        %v1807 = vunpack.c.l.b16 %v703
        %v1808 = vunpack.c.h.b16 %v703
        %v1809 = vunpack.c.l.b16 %v704
        %v1810 = vunpack.c.h.b16 %v704
        %v1811 = vunpack.c.l.b16 %v705
        %v1812 = vunpack.c.h.b16 %v705
        %v1813 = vunpack.c.l.b16 %v706
        %v1814 = vunpack.c.h.b16 %v706
        %v1815 = vunpack.c.l.b16 %v707
        %v1816 = vunpack.c.h.b16 %v707
        %v1817 = vunpack.c.l.b16 %v708
        %v1818 = vunpack.c.h.b16 %v708
        %v1819 = vunpack.c.l.b16 %v709
        %v1820 = vunpack.c.h.b16 %v709
        %v1821 = vunpack.c.l.b16 %v710
        %v1822 = vunpack.c.h.b16 %v710
        %v1823 = vunpack.c.l.b16 %v711
        %v1824 = vunpack.c.h.b16 %v711
        %v1825 = vunpack.c.l.b16 %v712
        %v1826 = vunpack.c.h.b16 %v712
        %v1827 = vunpack.c.l.b16 %v713
        %v1828 = vunpack.c.h.b16 %v713
        %v1829 = vunpack.c.l.b16 %v714
        %v1830 = vunpack.c.h.b16 %v714
        %v1831 = vunpack.c.l.b16 %v715
        %v1832 = vunpack.c.h.b16 %v715
        %v1833 = vunpack.c.l.b16 %v716
        %v1834 = vunpack.c.h.b16 %v716
        %v1835 = vunpack.c.l.b16 %v717
        %v1836 = vunpack.c.h.b16 %v717
        %v1837 = vunpack.c.l.b16 %v718
        %v1838 = vunpack.c.h.b16 %v718
        %v1839 = vunpack.c.l.b16 %v719
        %v1840 = vunpack.c.h.b16 %v719
        %v1841 = vunpack.c.l.b16 %v720
        %v1842 = vunpack.c.h.b16 %v720
        %v1843 = vunpack.c.l.b16 %v721
        %v1844 = vunpack.c.h.b16 %v721
        %v1845 = vunpack.c.l.b16 %v722
        %v1846 = vunpack.c.h.b16 %v722
        %v1847 = vunpack.c.l.b16 %v723
        %v1848 = vunpack.c.h.b16 %v723
        %v1849 = vunpack.c.l.b16 %v724
        %v1850 = vunpack.c.h.b16 %v724
        %v1851 = vunpack.c.l.b16 %v725
        %v1852 = vunpack.c.h.b16 %v725
        %v1853 = vunpack.c.l.b16 %v726
        %v1854 = vunpack.c.h.b16 %v726
        %v1855 = vunpack.c.l.b16 %v727
        %v1856 = vunpack.c.h.b16 %v727
        %v1857 = vunpack.c.l.b16 %v728
        %v1858 = vunpack.c.h.b16 %v728
        %v1859 = vunpack.c.l.b16 %v729
        %v1860 = vunpack.c.h.b16 %v729
        %v1861 = vunpack.c.l.b16 %v730
        %v1862 = vunpack.c.h.b16 %v730
        %v1863 = vunpack.c.l.b16 %v731
        %v1864 = vunpack.c.h.b16 %v731
        %v1865 = vunpack.c.l.b16 %v732
        %v1866 = vunpack.c.h.b16 %v732
        %v1867 = vunpack.c.l.b16 %v733
        %v1868 = vunpack.c.h.b16 %v733
        %v1869 = vunpack.c.l.b16 %v734
        %v1870 = vunpack.c.h.b16 %v734
        %v1871 = vunpack.c.l.b16 %v735
        %v1872 = vunpack.c.h.b16 %v735
        %v1873 = vunpack.c.l.b16 %v736
        %v1874 = vunpack.c.h.b16 %v736
        %v1875 = vunpack.c.l.b16 %v737
        %v1876 = vunpack.c.h.b16 %v737
        %v1877 = vunpack.c.l.b16 %v738
        %v1878 = vunpack.c.h.b16 %v738
        %v1879 = vunpack.c.l.b16 %v739
        %v1880 = vunpack.c.h.b16 %v739
        %v1881 = vunpack.c.l.b16 %v740
        %v1882 = vunpack.c.h.b16 %v740
        %v1883 = vunpack.c.l.b16 %v741
        %v1884 = vunpack.c.h.b16 %v741
        %v1885 = vunpack.c.l.b16 %v742
        %v1886 = vunpack.c.h.b16 %v742
        %v1887 = vunpack.c.l.b16 %v743
        %v1888 = vunpack.c.h.b16 %v743
        %v1889 = vunpack.c.l.b16 %v744
        %v1890 = vunpack.c.h.b16 %v744
        %v1891 = vunpack.c.l.b16 %v745
        %v1892 = vunpack.c.h.b16 %v745
        %v1893 = vunpack.c.l.b16 %v746
        %v1894 = vunpack.c.h.b16 %v746
        %v1895 = vunpack.c.l.b16 %v747
        %v1896 = vunpack.c.h.b16 %v747
        %v1897 = vunpack.c.l.b16 %v748
        %v1898 = vunpack.c.h.b16 %v748
        %v1899 = vunpack.c.l.b16 %v749
        %v1900 = vunpack.c.h.b16 %v749
        %v1901 = vunpack.c.l.b16 %v750
        %v1902 = vunpack.c.h.b16 %v750
        %v1903 = vunpack.c.l.b16 %v751
        %v1904 = vunpack.c.h.b16 %v751
        %v1905 = vunpack.c.l.b16 %v752
        %v1906 = vunpack.c.h.b16 %v752
        %v1907 = vunpack.c.l.b16 %v753
        %v1908 = vunpack.c.h.b16 %v753
        %v1909 = vunpack.c.l.b16 %v754
        %v1910 = vunpack.c.h.b16 %v754
        %v1911 = vunpack.c.l.b16 %v755
        %v1912 = vunpack.c.h.b16 %v755
        %v1913 = vunpack.c.l.b16 %v756
        %v1914 = vunpack.c.h.b16 %v756
        %v1915 = vunpack.c.l.b16 %v757
        %v1916 = vunpack.c.h.b16 %v757
        %v1917 = vunpack.c.l.b16 %v758
        %v1918 = vunpack.c.h.b16 %v758
        %v1919 = vunpack.c.l.b16 %v759
        %v1920 = vunpack.c.h.b16 %v759
        %v1921 = vunpack.c.l.b16 %v760
        %v1922 = vunpack.c.h.b16 %v760
        %v1923 = vunpack.c.l.b16 %v761
        %v1924 = vunpack.c.h.b16 %v761
        %v1925 = vunpack.c.l.b16 %v762
        %v1926 = vunpack.c.h.b16 %v762
        %v1927 = vunpack.c.l.b16 %v763
        %v1928 = vunpack.c.h.b16 %v763
        %v1929 = vunpack.c.l.b16 %v764
        %v1930 = vunpack.c.h.b16 %v764
        %v1931 = vunpack.c.l.b16 %v765
        %v1932 = vunpack.c.h.b16 %v765
        %v1933 = vunpack.c.l.b16 %v766
        %v1934 = vunpack.c.h.b16 %v766
        %v1935 = vunpack.c.l.b16 %v767
        %v1936 = vunpack.c.h.b16 %v767
        %v1937 = vunpack.c.l.b16 %v768
        %v1938 = vunpack.c.h.b16 %v768
        %v1939 = vunpack.c.l.b16 %v769
        %v1940 = vunpack.c.h.b16 %v769
        %v1941 = vunpack.c.l.b16 %v770
        %v1942 = vunpack.c.h.b16 %v770
        %v1943 = vunpack.c.l.b16 %v771
        %v1944 = vunpack.c.h.b16 %v771
        %v1945 = vunpack.c.l.b16 %v772
        %v1946 = vunpack.c.h.b16 %v772
        %v1947 = vunpack.c.l.b16 %v773
        %v1948 = vunpack.c.h.b16 %v773
        %v1949 = vunpack.c.l.b16 %v774
        %v1950 = vunpack.c.h.b16 %v774
        %v1951 = vunpack.c.l.b16 %v775
        %v1952 = vunpack.c.h.b16 %v775
        %v1953 = vunpack.c.l.b16 %v776
        %v1954 = vunpack.c.h.b16 %v776
        %v1955 = vunpack.c.l.b16 %v777
        %v1956 = vunpack.c.h.b16 %v777
        %v1957 = vunpack.c.l.b16 %v778
        %v1958 = vunpack.c.h.b16 %v778
        %v1959 = vpack.c.b16 %v1203, %v1191
        %v1960 = vpack.c.b16 %v1204, %v1192
        %v1961 = vpack.c.b16 %v1205, %v1193
        %v1962 = vpack.c.b16 %v1206, %v1194
        %v1963 = vpack.c.b16 %v1207, %v1195
        %v1964 = vpack.c.b16 %v1208, %v1196
        %v1965 = vpack.c.b16 %v1209, %v1197
        %v1966 = vpack.c.b16 %v1210, %v1198
        %v1967 = vpack.c.b16 %v1211, %v1199
        %v1968 = vpack.c.b16 %v1212, %v1200
        %v1969 = vpack.c.b16 %v1213, %v1201
        %v1970 = vpack.c.b16 %v1214, %v1202
        %v1971 = vpack.c.b16 %v1227, %v1215
        %v1972 = vpack.c.b16 %v1228, %v1216
        %v1973 = vpack.c.b16 %v1229, %v1217
        %v1974 = vpack.c.b16 %v1230, %v1218
        %v1975 = vpack.c.b16 %v1231, %v1219
        %v1976 = vpack.c.b16 %v1232, %v1220
        %v1977 = vpack.c.b16 %v1233, %v1221
        %v1978 = vpack.c.b16 %v1234, %v1222
        %v1979 = vpack.c.b16 %v1235, %v1223
        %v1980 = vpack.c.b16 %v1236, %v1224
        %v1981 = vpack.c.b16 %v1237, %v1225
        %v1982 = vpack.c.b16 %v1238, %v1226
        %v1983 = vpack.c.b16 %v1251, %v1239
        %v1984 = vpack.c.b16 %v1252, %v1240
        %v1985 = vpack.c.b16 %v1253, %v1241
        %v1986 = vpack.c.b16 %v1254, %v1242
        %v1987 = vpack.c.b16 %v1255, %v1243
        %v1988 = vpack.c.b16 %v1256, %v1244
        %v1989 = vpack.c.b16 %v1257, %v1245
        %v1990 = vpack.c.b16 %v1258, %v1246
        %v1991 = vpack.c.b16 %v1259, %v1247
        %v1992 = vpack.c.b16 %v1260, %v1248
        %v1993 = vpack.c.b16 %v1261, %v1249
        %v1994 = vpack.c.b16 %v1262, %v1250
        %v1995 = vpack.c.b16 %v1275, %v1263
        %v1996 = vpack.c.b16 %v1276, %v1264
        %v1997 = vpack.c.b16 %v1277, %v1265
        %v1998 = vpack.c.b16 %v1278, %v1266
        %v1999 = vpack.c.b16 %v1279, %v1267
        %v2000 = vpack.c.b16 %v1280, %v1268
        %v2001 = vpack.c.b16 %v1281, %v1269
        %v2002 = vpack.c.b16 %v1282, %v1270
        %v2003 = vpack.c.b16 %v1283, %v1271
        %v2004 = vpack.c.b16 %v1284, %v1272
        %v2005 = vpack.c.b16 %v1285, %v1273
        %v2006 = vpack.c.b16 %v1286, %v1274
        %v2007 = vpack.c.b16 %v1299, %v1287
        %v2008 = vpack.c.b16 %v1300, %v1288
        %v2009 = vpack.c.b16 %v1301, %v1289
        %v2010 = vpack.c.b16 %v1302, %v1290
        %v2011 = vpack.c.b16 %v1303, %v1291
        %v2012 = vpack.c.b16 %v1304, %v1292
        %v2013 = vpack.c.b16 %v1305, %v1293
        %v2014 = vpack.c.b16 %v1306, %v1294
        %v2015 = vpack.c.b16 %v1307, %v1295
        %v2016 = vpack.c.b16 %v1308, %v1296
        %v2017 = vpack.c.b16 %v1309, %v1297
        %v2018 = vpack.c.b16 %v1310, %v1298
        %v2019 = vpack.c.b16 %v1323, %v1311
        %v2020 = vpack.c.b16 %v1324, %v1312
        %v2021 = vpack.c.b16 %v1325, %v1313
        %v2022 = vpack.c.b16 %v1326, %v1314
        %v2023 = vpack.c.b16 %v1327, %v1315
        %v2024 = vpack.c.b16 %v1328, %v1316
        %v2025 = vpack.c.b16 %v1329, %v1317
        %v2026 = vpack.c.b16 %v1330, %v1318
        %v2027 = vpack.c.b16 %v1331, %v1319
        %v2028 = vpack.c.b16 %v1332, %v1320
        %v2029 = vpack.c.b16 %v1333, %v1321
        %v2030 = vpack.c.b16 %v1334, %v1322
        %v2031 = vpack.c.b16 %v1347, %v1335
        %v2032 = vpack.c.b16 %v1348, %v1336
        %v2033 = vpack.c.b16 %v1349, %v1337
        %v2034 = vpack.c.b16 %v1350, %v1338
        %v2035 = vpack.c.b16 %v1351, %v1339
        %v2036 = vpack.c.b16 %v1352, %v1340
        %v2037 = vpack.c.b16 %v1353, %v1341
        %v2038 = vpack.c.b16 %v1354, %v1342
        %v2039 = vpack.c.b16 %v1355, %v1343
        %v2040 = vpack.c.b16 %v1356, %v1344
        %v2041 = vpack.c.b16 %v1357, %v1345
        %v2042 = vpack.c.b16 %v1358, %v1346
        %v2043 = vpack.c.b16 %v1371, %v1359
        %v2044 = vpack.c.b16 %v1372, %v1360
        %v2045 = vpack.c.b16 %v1373, %v1361
        %v2046 = vpack.c.b16 %v1374, %v1362
        %v2047 = vpack.c.b16 %v1375, %v1363
        %v2048 = vpack.c.b16 %v1376, %v1364
        %v2049 = vpack.c.b16 %v1377, %v1365
        %v2050 = vpack.c.b16 %v1378, %v1366
        %v2051 = vpack.c.b16 %v1379, %v1367
        %v2052 = vpack.c.b16 %v1380, %v1368
        %v2053 = vpack.c.b16 %v1381, %v1369
        %v2054 = vpack.c.b16 %v1382, %v1370
        %v2055 = vpack.c.b16 %v1395, %v1383
        %v2056 = vpack.c.b16 %v1396, %v1384
        %v2057 = vpack.c.b16 %v1397, %v1385
        %v2058 = vpack.c.b16 %v1398, %v1386
        %v2059 = vpack.c.b16 %v1399, %v1387
        %v2060 = vpack.c.b16 %v1400, %v1388
        %v2061 = vpack.c.b16 %v1401, %v1389
        %v2062 = vpack.c.b16 %v1402, %v1390
        %v2063 = vpack.c.b16 %v1403, %v1391
        %v2064 = vpack.c.b16 %v1404, %v1392
        %v2065 = vpack.c.b16 %v1405, %v1393
        %v2066 = vpack.c.b16 %v1406, %v1394
        %v2067 = vpack.c.b16 %v1419, %v1407
        %v2068 = vpack.c.b16 %v1420, %v1408
        %v2069 = vpack.c.b16 %v1421, %v1409
        %v2070 = vpack.c.b16 %v1422, %v1410
        %v2071 = vpack.c.b16 %v1423, %v1411
        %v2072 = vpack.c.b16 %v1424, %v1412
        %v2073 = vpack.c.b16 %v1425, %v1413
        %v2074 = vpack.c.b16 %v1426, %v1414
        %v2075 = vpack.c.b16 %v1427, %v1415
        %v2076 = vpack.c.b16 %v1428, %v1416
        %v2077 = vpack.c.b16 %v1429, %v1417
        %v2078 = vpack.c.b16 %v1430, %v1418
        %v2079 = vpack.c.b16 %v1443, %v1431
        %v2080 = vpack.c.b16 %v1444, %v1432
        %v2081 = vpack.c.b16 %v1445, %v1433
        %v2082 = vpack.c.b16 %v1446, %v1434
        %v2083 = vpack.c.b16 %v1447, %v1435
        %v2084 = vpack.c.b16 %v1448, %v1436
        %v2085 = vpack.c.b16 %v1449, %v1437
        %v2086 = vpack.c.b16 %v1450, %v1438
        %v2087 = vpack.c.b16 %v1451, %v1439
        %v2088 = vpack.c.b16 %v1452, %v1440
        %v2089 = vpack.c.b16 %v1453, %v1441
        %v2090 = vpack.c.b16 %v1454, %v1442
        %v2091 = vpack.c.b16 %v1467, %v1455
        %v2092 = vpack.c.b16 %v1468, %v1456
        %v2093 = vpack.c.b16 %v1469, %v1457
        %v2094 = vpack.c.b16 %v1470, %v1458
        %v2095 = vpack.c.b16 %v1471, %v1459
        %v2096 = vpack.c.b16 %v1472, %v1460
        %v2097 = vpack.c.b16 %v1473, %v1461
        %v2098 = vpack.c.b16 %v1474, %v1462
        %v2099 = vpack.c.b16 %v1475, %v1463
        %v2100 = vpack.c.b16 %v1476, %v1464
        %v2101 = vpack.c.b16 %v1477, %v1465
        %v2102 = vpack.c.b16 %v1478, %v1466
        %v2103 = vpack.c.b16 %v1491, %v1479
        %v2104 = vpack.c.b16 %v1492, %v1480
        %v2105 = vpack.c.b16 %v1493, %v1481
        %v2106 = vpack.c.b16 %v1494, %v1482
        %v2107 = vpack.c.b16 %v1495, %v1483
        %v2108 = vpack.c.b16 %v1496, %v1484
        %v2109 = vpack.c.b16 %v1497, %v1485
        %v2110 = vpack.c.b16 %v1498, %v1486
        %v2111 = vpack.c.b16 %v1499, %v1487
        %v2112 = vpack.c.b16 %v1500, %v1488
        %v2113 = vpack.c.b16 %v1501, %v1489
        %v2114 = vpack.c.b16 %v1502, %v1490
        %v2115 = vpack.c.b16 %v1515, %v1503
        %v2116 = vpack.c.b16 %v1516, %v1504
        %v2117 = vpack.c.b16 %v1517, %v1505
        %v2118 = vpack.c.b16 %v1518, %v1506
        %v2119 = vpack.c.b16 %v1519, %v1507
        %v2120 = vpack.c.b16 %v1520, %v1508
        %v2121 = vpack.c.b16 %v1521, %v1509
        %v2122 = vpack.c.b16 %v1522, %v1510
        %v2123 = vpack.c.b16 %v1523, %v1511
        %v2124 = vpack.c.b16 %v1524, %v1512
        %v2125 = vpack.c.b16 %v1525, %v1513
        %v2126 = vpack.c.b16 %v1526, %v1514
        %v2127 = vpack.c.b16 %v1539, %v1527
        %v2128 = vpack.c.b16 %v1540, %v1528
        %v2129 = vpack.c.b16 %v1541, %v1529
        %v2130 = vpack.c.b16 %v1542, %v1530
        %v2131 = vpack.c.b16 %v1543, %v1531
        %v2132 = vpack.c.b16 %v1544, %v1532
        %v2133 = vpack.c.b16 %v1545, %v1533
        %v2134 = vpack.c.b16 %v1546, %v1534
        %v2135 = vpack.c.b16 %v1547, %v1535
        %v2136 = vpack.c.b16 %v1548, %v1536
        %v2137 = vpack.c.b16 %v1549, %v1537
        %v2138 = vpack.c.b16 %v1550, %v1538
        %v2139 = vpack.c.b16 %v1563, %v1551
        %v2140 = vpack.c.b16 %v1564, %v1552
        %v2141 = vpack.c.b16 %v1565, %v1553
        %v2142 = vpack.c.b16 %v1566, %v1554
        %v2143 = vpack.c.b16 %v1567, %v1555
        %v2144 = vpack.c.b16 %v1568, %v1556
        %v2145 = vpack.c.b16 %v1569, %v1557
        %v2146 = vpack.c.b16 %v1570, %v1558
        %v2147 = vpack.c.b16 %v1571, %v1559
        %v2148 = vpack.c.b16 %v1572, %v1560
        %v2149 = vpack.c.b16 %v1573, %v1561
        %v2150 = vpack.c.b16 %v1574, %v1562
        %v2151 = vpack.c.b16 %v1587, %v1575
        %v2152 = vpack.c.b16 %v1588, %v1576
        %v2153 = vpack.c.b16 %v1589, %v1577
        %v2154 = vpack.c.b16 %v1590, %v1578
        %v2155 = vpack.c.b16 %v1591, %v1579
        %v2156 = vpack.c.b16 %v1592, %v1580
        %v2157 = vpack.c.b16 %v1593, %v1581
        %v2158 = vpack.c.b16 %v1594, %v1582
        %v2159 = vpack.c.b16 %v1595, %v1583
        %v2160 = vpack.c.b16 %v1596, %v1584
        %v2161 = vpack.c.b16 %v1597, %v1585
        %v2162 = vpack.c.b16 %v1598, %v1586
        %v2163 = vpack.c.b16 %v1611, %v1599
        %v2164 = vpack.c.b16 %v1612, %v1600
        %v2165 = vpack.c.b16 %v1613, %v1601
        %v2166 = vpack.c.b16 %v1614, %v1602
        %v2167 = vpack.c.b16 %v1615, %v1603
        %v2168 = vpack.c.b16 %v1616, %v1604
        %v2169 = vpack.c.b16 %v1617, %v1605
        %v2170 = vpack.c.b16 %v1618, %v1606
        %v2171 = vpack.c.b16 %v1619, %v1607
        %v2172 = vpack.c.b16 %v1620, %v1608
        %v2173 = vpack.c.b16 %v1621, %v1609
        %v2174 = vpack.c.b16 %v1622, %v1610
        %v2175 = vpack.c.b16 %v1635, %v1623
        %v2176 = vpack.c.b16 %v1636, %v1624
        %v2177 = vpack.c.b16 %v1637, %v1625
        %v2178 = vpack.c.b16 %v1638, %v1626
        %v2179 = vpack.c.b16 %v1639, %v1627
        %v2180 = vpack.c.b16 %v1640, %v1628
        %v2181 = vpack.c.b16 %v1641, %v1629
        %v2182 = vpack.c.b16 %v1642, %v1630
        %v2183 = vpack.c.b16 %v1643, %v1631
        %v2184 = vpack.c.b16 %v1644, %v1632
        %v2185 = vpack.c.b16 %v1645, %v1633
        %v2186 = vpack.c.b16 %v1646, %v1634
        %v2187 = vpack.c.b16 %v1659, %v1647
        %v2188 = vpack.c.b16 %v1660, %v1648
        %v2189 = vpack.c.b16 %v1661, %v1649
        %v2190 = vpack.c.b16 %v1662, %v1650
        %v2191 = vpack.c.b16 %v1663, %v1651
        %v2192 = vpack.c.b16 %v1664, %v1652
        %v2193 = vpack.c.b16 %v1665, %v1653
        %v2194 = vpack.c.b16 %v1666, %v1654
        %v2195 = vpack.c.b16 %v1667, %v1655
        %v2196 = vpack.c.b16 %v1668, %v1656
        %v2197 = vpack.c.b16 %v1669, %v1657
        %v2198 = vpack.c.b16 %v1670, %v1658
        %v2199 = vpack.c.b16 %v1683, %v1671
        %v2200 = vpack.c.b16 %v1684, %v1672
        %v2201 = vpack.c.b16 %v1685, %v1673
        %v2202 = vpack.c.b16 %v1686, %v1674
        %v2203 = vpack.c.b16 %v1687, %v1675
        %v2204 = vpack.c.b16 %v1688, %v1676
        %v2205 = vpack.c.b16 %v1689, %v1677
        %v2206 = vpack.c.b16 %v1690, %v1678
        %v2207 = vpack.c.b16 %v1691, %v1679
        %v2208 = vpack.c.b16 %v1692, %v1680
        %v2209 = vpack.c.b16 %v1693, %v1681
        %v2210 = vpack.c.b16 %v1694, %v1682
        %v2211 = vpack.c.b16 %v1707, %v1695
        %v2212 = vpack.c.b16 %v1708, %v1696
        %v2213 = vpack.c.b16 %v1709, %v1697
        %v2214 = vpack.c.b16 %v1710, %v1698
        %v2215 = vpack.c.b16 %v1711, %v1699
        %v2216 = vpack.c.b16 %v1712, %v1700
        %v2217 = vpack.c.b16 %v1713, %v1701
        %v2218 = vpack.c.b16 %v1714, %v1702
        %v2219 = vpack.c.b16 %v1715, %v1703
        %v2220 = vpack.c.b16 %v1716, %v1704
        %v2221 = vpack.c.b16 %v1717, %v1705
        %v2222 = vpack.c.b16 %v1718, %v1706
        %v2223 = vpack.c.b16 %v1731, %v1719
        %v2224 = vpack.c.b16 %v1732, %v1720
        %v2225 = vpack.c.b16 %v1733, %v1721
        %v2226 = vpack.c.b16 %v1734, %v1722
        %v2227 = vpack.c.b16 %v1735, %v1723
        %v2228 = vpack.c.b16 %v1736, %v1724
        %v2229 = vpack.c.b16 %v1737, %v1725
        %v2230 = vpack.c.b16 %v1738, %v1726
        %v2231 = vpack.c.b16 %v1739, %v1727
        %v2232 = vpack.c.b16 %v1740, %v1728
        %v2233 = vpack.c.b16 %v1741, %v1729
        %v2234 = vpack.c.b16 %v1742, %v1730
        %v2235 = vpack.c.b16 %v1755, %v1743
        %v2236 = vpack.c.b16 %v1756, %v1744
        %v2237 = vpack.c.b16 %v1757, %v1745
        %v2238 = vpack.c.b16 %v1758, %v1746
        %v2239 = vpack.c.b16 %v1759, %v1747
        %v2240 = vpack.c.b16 %v1760, %v1748
        %v2241 = vpack.c.b16 %v1761, %v1749
        %v2242 = vpack.c.b16 %v1762, %v1750
        %v2243 = vpack.c.b16 %v1763, %v1751
        %v2244 = vpack.c.b16 %v1764, %v1752
        %v2245 = vpack.c.b16 %v1765, %v1753
        %v2246 = vpack.c.b16 %v1766, %v1754
        %v2247 = vpack.c.b16 %v1779, %v1767
        %v2248 = vpack.c.b16 %v1780, %v1768
        %v2249 = vpack.c.b16 %v1781, %v1769
        %v2250 = vpack.c.b16 %v1782, %v1770
        %v2251 = vpack.c.b16 %v1783, %v1771
        %v2252 = vpack.c.b16 %v1784, %v1772
        %v2253 = vpack.c.b16 %v1785, %v1773
        %v2254 = vpack.c.b16 %v1786, %v1774
        %v2255 = vpack.c.b16 %v1787, %v1775
        %v2256 = vpack.c.b16 %v1788, %v1776
        %v2257 = vpack.c.b16 %v1789, %v1777
        %v2258 = vpack.c.b16 %v1790, %v1778
        %v2259 = vpack.c.b16 %v1803, %v1791
        %v2260 = vpack.c.b16 %v1804, %v1792
        %v2261 = vpack.c.b16 %v1805, %v1793
        %v2262 = vpack.c.b16 %v1806, %v1794
        %v2263 = vpack.c.b16 %v1807, %v1795
        %v2264 = vpack.c.b16 %v1808, %v1796
        %v2265 = vpack.c.b16 %v1809, %v1797
        %v2266 = vpack.c.b16 %v1810, %v1798
        %v2267 = vpack.c.b16 %v1811, %v1799
        %v2268 = vpack.c.b16 %v1812, %v1800
        %v2269 = vpack.c.b16 %v1813, %v1801
        %v2270 = vpack.c.b16 %v1814, %v1802
        %v2271 = vpack.c.b16 %v1827, %v1815
        %v2272 = vpack.c.b16 %v1828, %v1816
        %v2273 = vpack.c.b16 %v1829, %v1817
        %v2274 = vpack.c.b16 %v1830, %v1818
        %v2275 = vpack.c.b16 %v1831, %v1819
        %v2276 = vpack.c.b16 %v1832, %v1820
        %v2277 = vpack.c.b16 %v1833, %v1821
        %v2278 = vpack.c.b16 %v1834, %v1822
        %v2279 = vpack.c.b16 %v1835, %v1823
        %v2280 = vpack.c.b16 %v1836, %v1824
        %v2281 = vpack.c.b16 %v1837, %v1825
        %v2282 = vpack.c.b16 %v1838, %v1826
        %v2283 = vpack.c.b16 %v1851, %v1839
        %v2284 = vpack.c.b16 %v1852, %v1840
        %v2285 = vpack.c.b16 %v1853, %v1841
        %v2286 = vpack.c.b16 %v1854, %v1842
        %v2287 = vpack.c.b16 %v1855, %v1843
        %v2288 = vpack.c.b16 %v1856, %v1844
        %v2289 = vpack.c.b16 %v1857, %v1845
        %v2290 = vpack.c.b16 %v1858, %v1846
        %v2291 = vpack.c.b16 %v1859, %v1847
        %v2292 = vpack.c.b16 %v1860, %v1848
        %v2293 = vpack.c.b16 %v1861, %v1849
        %v2294 = vpack.c.b16 %v1862, %v1850
        %v2295 = vpack.c.b16 %v1875, %v1863
        %v2296 = vpack.c.b16 %v1876, %v1864
        %v2297 = vpack.c.b16 %v1877, %v1865
        %v2298 = vpack.c.b16 %v1878, %v1866
        %v2299 = vpack.c.b16 %v1879, %v1867
        %v2300 = vpack.c.b16 %v1880, %v1868
        %v2301 = vpack.c.b16 %v1881, %v1869
        %v2302 = vpack.c.b16 %v1882, %v1870
        %v2303 = vpack.c.b16 %v1883, %v1871
        %v2304 = vpack.c.b16 %v1884, %v1872
        %v2305 = vpack.c.b16 %v1885, %v1873
        %v2306 = vpack.c.b16 %v1886, %v1874
        %v2307 = vpack.c.b16 %v1899, %v1887
        %v2308 = vpack.c.b16 %v1900, %v1888
        %v2309 = vpack.c.b16 %v1901, %v1889
        %v2310 = vpack.c.b16 %v1902, %v1890
        %v2311 = vpack.c.b16 %v1903, %v1891
        %v2312 = vpack.c.b16 %v1904, %v1892
        %v2313 = vpack.c.b16 %v1905, %v1893
        %v2314 = vpack.c.b16 %v1906, %v1894
        %v2315 = vpack.c.b16 %v1907, %v1895
        %v2316 = vpack.c.b16 %v1908, %v1896
        %v2317 = vpack.c.b16 %v1909, %v1897
        %v2318 = vpack.c.b16 %v1910, %v1898
        %v2319 = vpack.c.b16 %v1923, %v1911
        %v2320 = vpack.c.b16 %v1924, %v1912
        %v2321 = vpack.c.b16 %v1925, %v1913
        %v2322 = vpack.c.b16 %v1926, %v1914
        %v2323 = vpack.c.b16 %v1927, %v1915
        %v2324 = vpack.c.b16 %v1928, %v1916
        %v2325 = vpack.c.b16 %v1929, %v1917
        %v2326 = vpack.c.b16 %v1930, %v1918
        %v2327 = vpack.c.b16 %v1931, %v1919
        %v2328 = vpack.c.b16 %v1932, %v1920
        %v2329 = vpack.c.b16 %v1933, %v1921
        %v2330 = vpack.c.b16 %v1934, %v1922
        %v2331 = vpack.c.b16 %v1947, %v1935
        %v2332 = vpack.c.b16 %v1948, %v1936
        %v2333 = vpack.c.b16 %v1949, %v1937
        %v2334 = vpack.c.b16 %v1950, %v1938
        %v2335 = vpack.c.b16 %v1951, %v1939
        %v2336 = vpack.c.b16 %v1952, %v1940
        %v2337 = vpack.c.b16 %v1953, %v1941
        %v2338 = vpack.c.b16 %v1954, %v1942
        %v2339 = vpack.c.b16 %v1955, %v1943
        %v2340 = vpack.c.b16 %v1956, %v1944
        %v2341 = vpack.c.b16 %v1957, %v1945
        %v2342 = vpack.c.b16 %v1958, %v1946
        %2727 = vmatpush.bf16.msra.mxu0 %v2043
        %2728 = vmatpush.bf16.msra.mxu0 %v2031
        %2729 = vmatpush.bf16.msra.mxu0 %v2019
        %2730 = vmatpush.bf16.msra.mxu0 %v2007
        %2731 = vmatpush.bf16.msra.mxu0 %v1995
        %2732 = vmatpush.bf16.msra.mxu0 %v1983
        %2733 = vmatpush.bf16.msra.mxu0 %v1971
        %2734 = vmatpush.bf16.msra.mxu0 %v1959
        %2735 = vmatmul.bf16.gmra.mxu0 %v387
        %v2736 = vpop.f32.mrf.mxu0
        %v2737 = vadd.f32 %v783, %v2736
        %v2738 = vpop.f32.mrf.mxu0
        %v2739 = vadd.f32 %v783, %v2738
        %2740 = vmatmul.bf16.gmra.mxu0 %v391
        %v2741 = vpop.f32.mrf.mxu0
        %v2742 = vadd.f32 %v783, %v2741
        %v2743 = vpop.f32.mrf.mxu0
        %v2744 = vadd.f32 %v783, %v2743
        %2745 = vdwg.mxu0
        %2746 = vmatpush.bf16.msra.mxu0 %v2139
        %2747 = vmatpush.bf16.msra.mxu0 %v2127
        %2748 = vmatpush.bf16.msra.mxu0 %v2115
        %2749 = vmatpush.bf16.msra.mxu0 %v2103
        %2750 = vmatpush.bf16.msra.mxu0 %v2091
        %2751 = vmatpush.bf16.msra.mxu0 %v2079
        %2752 = vmatpush.bf16.msra.mxu0 %v2067
        %2753 = vmatpush.bf16.msra.mxu0 %v2055
        %2754 = vmatmul.bf16.gmra.mxu0 %v388
        %v2755 = vpop.f32.mrf.mxu0
        %v2756 = vadd.f32 %v2737, %v2755
        %v2757 = vpop.f32.mrf.mxu0
        %v2758 = vadd.f32 %v2739, %v2757
        %2759 = vmatmul.bf16.gmra.mxu0 %v392
        %v2760 = vpop.f32.mrf.mxu0
        %v2761 = vadd.f32 %v2742, %v2760
        %v2762 = vpop.f32.mrf.mxu0
        %v2763 = vadd.f32 %v2744, %v2762
        %2764 = vdwg.mxu0
        %2765 = vmatpush.bf16.msra.mxu0 %v2235
        %2766 = vmatpush.bf16.msra.mxu0 %v2223
        %2767 = vmatpush.bf16.msra.mxu0 %v2211
        %2768 = vmatpush.bf16.msra.mxu0 %v2199
        %2769 = vmatpush.bf16.msra.mxu0 %v2187
        %2770 = vmatpush.bf16.msra.mxu0 %v2175
        %2771 = vmatpush.bf16.msra.mxu0 %v2163
        %2772 = vmatpush.bf16.msra.mxu0 %v2151
        %2773 = vmatmul.bf16.gmra.mxu0 %v389
        %v2774 = vpop.f32.mrf.mxu0
        %v2775 = vadd.f32 %v2756, %v2774
        %v2776 = vpop.f32.mrf.mxu0
        %v2777 = vadd.f32 %v2758, %v2776
        %2778 = vmatmul.bf16.gmra.mxu0 %v393
        %v2779 = vpop.f32.mrf.mxu0
        %v2780 = vadd.f32 %v2761, %v2779
        %v2781 = vpop.f32.mrf.mxu0
        %v2782 = vadd.f32 %v2763, %v2781
        %2783 = vdwg.mxu0
        %2784 = vmatpush.bf16.msra.mxu0 %v2331
        %2785 = vmatpush.bf16.msra.mxu0 %v2319
        %2786 = vmatpush.bf16.msra.mxu0 %v2307
        %2787 = vmatpush.bf16.msra.mxu0 %v2295
        %2788 = vmatpush.bf16.msra.mxu0 %v2283
        %2789 = vmatpush.bf16.msra.mxu0 %v2271
        %2790 = vmatpush.bf16.msra.mxu0 %v2259
        %2791 = vmatpush.bf16.msra.mxu0 %v2247
        %2792 = vmatmul.bf16.gmra.mxu0 %v390
        %v2793 = vpop.f32.mrf.mxu0
        %v2794 = vadd.f32 %v2775, %v2793
        %v2795 = vpop.f32.mrf.mxu0
        %v2796 = vadd.f32 %v2777, %v2795
        %2797 = vmatmul.bf16.gmra.mxu0 %v394
        %v2798 = vpop.f32.mrf.mxu0
        %v2799 = vadd.f32 %v2780, %v2798
        %v2800 = vpop.f32.mrf.mxu0
        %v2801 = vadd.f32 %v2782, %v2800
        %2802 = vdwg.mxu0
        %2803 = vmatpush.bf16.msra.mxu0 %v2044
        %2804 = vmatpush.bf16.msra.mxu0 %v2032
        %2805 = vmatpush.bf16.msra.mxu0 %v2020
        %2806 = vmatpush.bf16.msra.mxu0 %v2008
        %2807 = vmatpush.bf16.msra.mxu0 %v1996
        %2808 = vmatpush.bf16.msra.mxu0 %v1984
        %2809 = vmatpush.bf16.msra.mxu0 %v1972
        %2810 = vmatpush.bf16.msra.mxu0 %v1960
        %2811 = vmatmul.bf16.gmra.mxu0 %v387
        %v2812 = vpop.f32.mrf.mxu0
        %v2813 = vadd.f32 %v784, %v2812
        %v2814 = vpop.f32.mrf.mxu0
        %v2815 = vadd.f32 %v784, %v2814
        %2816 = vmatmul.bf16.gmra.mxu0 %v391
        %v2817 = vpop.f32.mrf.mxu0
        %v2818 = vadd.f32 %v784, %v2817
        %v2819 = vpop.f32.mrf.mxu0
        %v2820 = vadd.f32 %v784, %v2819
        %2821 = vdwg.mxu0
        %2822 = vmatpush.bf16.msra.mxu0 %v2140
        %2823 = vmatpush.bf16.msra.mxu0 %v2128
        %2824 = vmatpush.bf16.msra.mxu0 %v2116
        %2825 = vmatpush.bf16.msra.mxu0 %v2104
        %2826 = vmatpush.bf16.msra.mxu0 %v2092
        %2827 = vmatpush.bf16.msra.mxu0 %v2080
        %2828 = vmatpush.bf16.msra.mxu0 %v2068
        %2829 = vmatpush.bf16.msra.mxu0 %v2056
        %2830 = vmatmul.bf16.gmra.mxu0 %v388
        %v2831 = vpop.f32.mrf.mxu0
        %v2832 = vadd.f32 %v2813, %v2831
        %v2833 = vpop.f32.mrf.mxu0
        %v2834 = vadd.f32 %v2815, %v2833
        %2835 = vmatmul.bf16.gmra.mxu0 %v392
        %v2836 = vpop.f32.mrf.mxu0
        %v2837 = vadd.f32 %v2818, %v2836
        %v2838 = vpop.f32.mrf.mxu0
        %v2839 = vadd.f32 %v2820, %v2838
        %2840 = vdwg.mxu0
        %2841 = vmatpush.bf16.msra.mxu0 %v2236
        %2842 = vmatpush.bf16.msra.mxu0 %v2224
        %2843 = vmatpush.bf16.msra.mxu0 %v2212
        %2844 = vmatpush.bf16.msra.mxu0 %v2200
        %2845 = vmatpush.bf16.msra.mxu0 %v2188
        %2846 = vmatpush.bf16.msra.mxu0 %v2176
        %2847 = vmatpush.bf16.msra.mxu0 %v2164
        %2848 = vmatpush.bf16.msra.mxu0 %v2152
        %2849 = vmatmul.bf16.gmra.mxu0 %v389
        %v2850 = vpop.f32.mrf.mxu0
        %v2851 = vadd.f32 %v2832, %v2850
        %v2852 = vpop.f32.mrf.mxu0
        %v2853 = vadd.f32 %v2834, %v2852
        %2854 = vmatmul.bf16.gmra.mxu0 %v393
        %v2855 = vpop.f32.mrf.mxu0
        %v2856 = vadd.f32 %v2837, %v2855
        %v2857 = vpop.f32.mrf.mxu0
        %v2858 = vadd.f32 %v2839, %v2857
        %2859 = vdwg.mxu0
        %2860 = vmatpush.bf16.msra.mxu0 %v2332
        %2861 = vmatpush.bf16.msra.mxu0 %v2320
        %2862 = vmatpush.bf16.msra.mxu0 %v2308
        %2863 = vmatpush.bf16.msra.mxu0 %v2296
        %2864 = vmatpush.bf16.msra.mxu0 %v2284
        %2865 = vmatpush.bf16.msra.mxu0 %v2272
        %2866 = vmatpush.bf16.msra.mxu0 %v2260
        %2867 = vmatpush.bf16.msra.mxu0 %v2248
        %2868 = vmatmul.bf16.gmra.mxu0 %v390
        %v2869 = vpop.f32.mrf.mxu0
        %v2870 = vadd.f32 %v2851, %v2869
        %v2871 = vpop.f32.mrf.mxu0
        %v2872 = vadd.f32 %v2853, %v2871
        %2873 = vmatmul.bf16.gmra.mxu0 %v394
        %v2874 = vpop.f32.mrf.mxu0
        %v2875 = vadd.f32 %v2856, %v2874
        %v2876 = vpop.f32.mrf.mxu0
        %v2877 = vadd.f32 %v2858, %v2876
        %2878 = vdwg.mxu0
        %2879 = vmatpush.bf16.msra.mxu0 %v2045
        %2880 = vmatpush.bf16.msra.mxu0 %v2033
        %2881 = vmatpush.bf16.msra.mxu0 %v2021
        %2882 = vmatpush.bf16.msra.mxu0 %v2009
        %2883 = vmatpush.bf16.msra.mxu0 %v1997
        %2884 = vmatpush.bf16.msra.mxu0 %v1985
        %2885 = vmatpush.bf16.msra.mxu0 %v1973
        %2886 = vmatpush.bf16.msra.mxu0 %v1961
        %2887 = vmatmul.bf16.gmra.mxu0 %v387
        %v2888 = vpop.f32.mrf.mxu0
        %v2889 = vadd.f32 %v785, %v2888
        %v2890 = vpop.f32.mrf.mxu0
        %v2891 = vadd.f32 %v785, %v2890
        %2892 = vmatmul.bf16.gmra.mxu0 %v391
        %v2893 = vpop.f32.mrf.mxu0
        %v2894 = vadd.f32 %v785, %v2893
        %v2895 = vpop.f32.mrf.mxu0
        %v2896 = vadd.f32 %v785, %v2895
        %2897 = vdwg.mxu0
        %2898 = vmatpush.bf16.msra.mxu0 %v2141
        %2899 = vmatpush.bf16.msra.mxu0 %v2129
        %2900 = vmatpush.bf16.msra.mxu0 %v2117
        %2901 = vmatpush.bf16.msra.mxu0 %v2105
        %2902 = vmatpush.bf16.msra.mxu0 %v2093
        %2903 = vmatpush.bf16.msra.mxu0 %v2081
        %2904 = vmatpush.bf16.msra.mxu0 %v2069
        %2905 = vmatpush.bf16.msra.mxu0 %v2057
        %2906 = vmatmul.bf16.gmra.mxu0 %v388
        %v2907 = vpop.f32.mrf.mxu0
        %v2908 = vadd.f32 %v2889, %v2907
        %v2909 = vpop.f32.mrf.mxu0
        %v2910 = vadd.f32 %v2891, %v2909
        %2911 = vmatmul.bf16.gmra.mxu0 %v392
        %v2912 = vpop.f32.mrf.mxu0
        %v2913 = vadd.f32 %v2894, %v2912
        %v2914 = vpop.f32.mrf.mxu0
        %v2915 = vadd.f32 %v2896, %v2914
        %2916 = vdwg.mxu0
        %2917 = vmatpush.bf16.msra.mxu0 %v2237
        %2918 = vmatpush.bf16.msra.mxu0 %v2225
        %2919 = vmatpush.bf16.msra.mxu0 %v2213
        %2920 = vmatpush.bf16.msra.mxu0 %v2201
        %2921 = vmatpush.bf16.msra.mxu0 %v2189
        %2922 = vmatpush.bf16.msra.mxu0 %v2177
        %2923 = vmatpush.bf16.msra.mxu0 %v2165
        %2924 = vmatpush.bf16.msra.mxu0 %v2153
        %2925 = vmatmul.bf16.gmra.mxu0 %v389
        %v2926 = vpop.f32.mrf.mxu0
        %v2927 = vadd.f32 %v2908, %v2926
        %v2928 = vpop.f32.mrf.mxu0
        %v2929 = vadd.f32 %v2910, %v2928
        %2930 = vmatmul.bf16.gmra.mxu0 %v393
        %v2931 = vpop.f32.mrf.mxu0
        %v2932 = vadd.f32 %v2913, %v2931
        %v2933 = vpop.f32.mrf.mxu0
        %v2934 = vadd.f32 %v2915, %v2933
        %2935 = vdwg.mxu0
        %2936 = vmatpush.bf16.msra.mxu0 %v2333
        %2937 = vmatpush.bf16.msra.mxu0 %v2321
        %2938 = vmatpush.bf16.msra.mxu0 %v2309
        %2939 = vmatpush.bf16.msra.mxu0 %v2297
        %2940 = vmatpush.bf16.msra.mxu0 %v2285
        %2941 = vmatpush.bf16.msra.mxu0 %v2273
        %2942 = vmatpush.bf16.msra.mxu0 %v2261
        %2943 = vmatpush.bf16.msra.mxu0 %v2249
        %2944 = vmatmul.bf16.gmra.mxu0 %v390
        %v2945 = vpop.f32.mrf.mxu0
        %v2946 = vadd.f32 %v2927, %v2945
        %v2947 = vpop.f32.mrf.mxu0
        %v2948 = vadd.f32 %v2929, %v2947
        %2949 = vmatmul.bf16.gmra.mxu0 %v394
        %v2950 = vpop.f32.mrf.mxu0
        %v2951 = vadd.f32 %v2932, %v2950
        %v2952 = vpop.f32.mrf.mxu0
        %v2953 = vadd.f32 %v2934, %v2952
        %2954 = vdwg.mxu0
        %2955 = vmatpush.bf16.msra.mxu0 %v2046
        %2956 = vmatpush.bf16.msra.mxu0 %v2034
        %2957 = vmatpush.bf16.msra.mxu0 %v2022
        %2958 = vmatpush.bf16.msra.mxu0 %v2010
        %2959 = vmatpush.bf16.msra.mxu0 %v1998
        %2960 = vmatpush.bf16.msra.mxu0 %v1986
        %2961 = vmatpush.bf16.msra.mxu0 %v1974
        %2962 = vmatpush.bf16.msra.mxu0 %v1962
        %2963 = vmatmul.bf16.gmra.mxu0 %v387
        %v2964 = vpop.f32.mrf.mxu0
        %v2965 = vadd.f32 %v786, %v2964
        %v2966 = vpop.f32.mrf.mxu0
        %v2967 = vadd.f32 %v786, %v2966
        %2968 = vmatmul.bf16.gmra.mxu0 %v391
        %v2969 = vpop.f32.mrf.mxu0
        %v2970 = vadd.f32 %v786, %v2969
        %v2971 = vpop.f32.mrf.mxu0
        %v2972 = vadd.f32 %v786, %v2971
        %2973 = vdwg.mxu0
        %2974 = vmatpush.bf16.msra.mxu0 %v2142
        %2975 = vmatpush.bf16.msra.mxu0 %v2130
        %2976 = vmatpush.bf16.msra.mxu0 %v2118
        %2977 = vmatpush.bf16.msra.mxu0 %v2106
        %2978 = vmatpush.bf16.msra.mxu0 %v2094
        %2979 = vmatpush.bf16.msra.mxu0 %v2082
        %2980 = vmatpush.bf16.msra.mxu0 %v2070
        %2981 = vmatpush.bf16.msra.mxu0 %v2058
        %2982 = vmatmul.bf16.gmra.mxu0 %v388
        %v2983 = vpop.f32.mrf.mxu0
        %v2984 = vadd.f32 %v2965, %v2983
        %v2985 = vpop.f32.mrf.mxu0
        %v2986 = vadd.f32 %v2967, %v2985
        %2987 = vmatmul.bf16.gmra.mxu0 %v392
        %v2988 = vpop.f32.mrf.mxu0
        %v2989 = vadd.f32 %v2970, %v2988
        %v2990 = vpop.f32.mrf.mxu0
        %v2991 = vadd.f32 %v2972, %v2990
        %2992 = vdwg.mxu0
        %2993 = vmatpush.bf16.msra.mxu0 %v2238
        %2994 = vmatpush.bf16.msra.mxu0 %v2226
        %2995 = vmatpush.bf16.msra.mxu0 %v2214
        %2996 = vmatpush.bf16.msra.mxu0 %v2202
        %2997 = vmatpush.bf16.msra.mxu0 %v2190
        %2998 = vmatpush.bf16.msra.mxu0 %v2178
        %2999 = vmatpush.bf16.msra.mxu0 %v2166
        %3000 = vmatpush.bf16.msra.mxu0 %v2154
        %3001 = vmatmul.bf16.gmra.mxu0 %v389
        %v3002 = vpop.f32.mrf.mxu0
        %v3003 = vadd.f32 %v2984, %v3002
        %v3004 = vpop.f32.mrf.mxu0
        %v3005 = vadd.f32 %v2986, %v3004
        %3006 = vmatmul.bf16.gmra.mxu0 %v393
        %v3007 = vpop.f32.mrf.mxu0
        %v3008 = vadd.f32 %v2989, %v3007
        %v3009 = vpop.f32.mrf.mxu0
        %v3010 = vadd.f32 %v2991, %v3009
        %3011 = vdwg.mxu0
        %3012 = vmatpush.bf16.msra.mxu0 %v2334
        %3013 = vmatpush.bf16.msra.mxu0 %v2322
        %3014 = vmatpush.bf16.msra.mxu0 %v2310
        %3015 = vmatpush.bf16.msra.mxu0 %v2298
        %3016 = vmatpush.bf16.msra.mxu0 %v2286
        %3017 = vmatpush.bf16.msra.mxu0 %v2274
        %3018 = vmatpush.bf16.msra.mxu0 %v2262
        %3019 = vmatpush.bf16.msra.mxu0 %v2250
        %3020 = vmatmul.bf16.gmra.mxu0 %v390
        %v3021 = vpop.f32.mrf.mxu0
        %v3022 = vadd.f32 %v3003, %v3021
        %v3023 = vpop.f32.mrf.mxu0
        %v3024 = vadd.f32 %v3005, %v3023
        %3025 = vmatmul.bf16.gmra.mxu0 %v394
        %v3026 = vpop.f32.mrf.mxu0
        %v3027 = vadd.f32 %v3008, %v3026
        %v3028 = vpop.f32.mrf.mxu0
        %v3029 = vadd.f32 %v3010, %v3028
        %3030 = vdwg.mxu0
        %3031 = vmatpush.bf16.msra.mxu0 %v2047
        %3032 = vmatpush.bf16.msra.mxu0 %v2035
        %3033 = vmatpush.bf16.msra.mxu0 %v2023
        %3034 = vmatpush.bf16.msra.mxu0 %v2011
        %3035 = vmatpush.bf16.msra.mxu0 %v1999
        %3036 = vmatpush.bf16.msra.mxu0 %v1987
        %3037 = vmatpush.bf16.msra.mxu0 %v1975
        %3038 = vmatpush.bf16.msra.mxu0 %v1963
        %3039 = vmatmul.bf16.gmra.mxu0 %v387
        %v3040 = vpop.f32.mrf.mxu0
        %v3041 = vadd.f32 %v787, %v3040
        %v3042 = vpop.f32.mrf.mxu0
        %v3043 = vadd.f32 %v787, %v3042
        %3044 = vmatmul.bf16.gmra.mxu0 %v391
        %v3045 = vpop.f32.mrf.mxu0
        %v3046 = vadd.f32 %v787, %v3045
        %v3047 = vpop.f32.mrf.mxu0
        %v3048 = vadd.f32 %v787, %v3047
        %3049 = vdwg.mxu0
        %3050 = vmatpush.bf16.msra.mxu0 %v2143
        %3051 = vmatpush.bf16.msra.mxu0 %v2131
        %3052 = vmatpush.bf16.msra.mxu0 %v2119
        %3053 = vmatpush.bf16.msra.mxu0 %v2107
        %3054 = vmatpush.bf16.msra.mxu0 %v2095
        %3055 = vmatpush.bf16.msra.mxu0 %v2083
        %3056 = vmatpush.bf16.msra.mxu0 %v2071
        %3057 = vmatpush.bf16.msra.mxu0 %v2059
        %3058 = vmatmul.bf16.gmra.mxu0 %v388
        %v3059 = vpop.f32.mrf.mxu0
        %v3060 = vadd.f32 %v3041, %v3059
        %v3061 = vpop.f32.mrf.mxu0
        %v3062 = vadd.f32 %v3043, %v3061
        %3063 = vmatmul.bf16.gmra.mxu0 %v392
        %v3064 = vpop.f32.mrf.mxu0
        %v3065 = vadd.f32 %v3046, %v3064
        %v3066 = vpop.f32.mrf.mxu0
        %v3067 = vadd.f32 %v3048, %v3066
        %3068 = vdwg.mxu0
        %3069 = vmatpush.bf16.msra.mxu0 %v2239
        %3070 = vmatpush.bf16.msra.mxu0 %v2227
        %3071 = vmatpush.bf16.msra.mxu0 %v2215
        %3072 = vmatpush.bf16.msra.mxu0 %v2203
        %3073 = vmatpush.bf16.msra.mxu0 %v2191
        %3074 = vmatpush.bf16.msra.mxu0 %v2179
        %3075 = vmatpush.bf16.msra.mxu0 %v2167
        %3076 = vmatpush.bf16.msra.mxu0 %v2155
        %3077 = vmatmul.bf16.gmra.mxu0 %v389
        %v3078 = vpop.f32.mrf.mxu0
        %v3079 = vadd.f32 %v3060, %v3078
        %v3080 = vpop.f32.mrf.mxu0
        %v3081 = vadd.f32 %v3062, %v3080
        %3082 = vmatmul.bf16.gmra.mxu0 %v393
        %v3083 = vpop.f32.mrf.mxu0
        %v3084 = vadd.f32 %v3065, %v3083
        %v3085 = vpop.f32.mrf.mxu0
        %v3086 = vadd.f32 %v3067, %v3085
        %3087 = vdwg.mxu0
        %3088 = vmatpush.bf16.msra.mxu0 %v2335
        %3089 = vmatpush.bf16.msra.mxu0 %v2323
        %3090 = vmatpush.bf16.msra.mxu0 %v2311
        %3091 = vmatpush.bf16.msra.mxu0 %v2299
        %3092 = vmatpush.bf16.msra.mxu0 %v2287
        %3093 = vmatpush.bf16.msra.mxu0 %v2275
        %3094 = vmatpush.bf16.msra.mxu0 %v2263
        %3095 = vmatpush.bf16.msra.mxu0 %v2251
        %3096 = vmatmul.bf16.gmra.mxu0 %v390
        %v3097 = vpop.f32.mrf.mxu0
        %v3098 = vadd.f32 %v3079, %v3097
        %v3099 = vpop.f32.mrf.mxu0
        %v3100 = vadd.f32 %v3081, %v3099
        %3101 = vmatmul.bf16.gmra.mxu0 %v394
        %v3102 = vpop.f32.mrf.mxu0
        %v3103 = vadd.f32 %v3084, %v3102
        %v3104 = vpop.f32.mrf.mxu0
        %v3105 = vadd.f32 %v3086, %v3104
        %3106 = vdwg.mxu0
        %3107 = vmatpush.bf16.msra.mxu0 %v2048
        %3108 = vmatpush.bf16.msra.mxu0 %v2036
        %3109 = vmatpush.bf16.msra.mxu0 %v2024
        %3110 = vmatpush.bf16.msra.mxu0 %v2012
        %3111 = vmatpush.bf16.msra.mxu0 %v2000
        %3112 = vmatpush.bf16.msra.mxu0 %v1988
        %3113 = vmatpush.bf16.msra.mxu0 %v1976
        %3114 = vmatpush.bf16.msra.mxu0 %v1964
        %3115 = vmatmul.bf16.gmra.mxu0 %v387
        %v3116 = vpop.f32.mrf.mxu0
        %v3117 = vadd.f32 %v788, %v3116
        %v3118 = vpop.f32.mrf.mxu0
        %v3119 = vadd.f32 %v788, %v3118
        %3120 = vmatmul.bf16.gmra.mxu0 %v391
        %v3121 = vpop.f32.mrf.mxu0
        %v3122 = vadd.f32 %v788, %v3121
        %v3123 = vpop.f32.mrf.mxu0
        %v3124 = vadd.f32 %v788, %v3123
        %3125 = vdwg.mxu0
        %3126 = vmatpush.bf16.msra.mxu0 %v2144
        %3127 = vmatpush.bf16.msra.mxu0 %v2132
        %3128 = vmatpush.bf16.msra.mxu0 %v2120
        %3129 = vmatpush.bf16.msra.mxu0 %v2108
        %3130 = vmatpush.bf16.msra.mxu0 %v2096
        %3131 = vmatpush.bf16.msra.mxu0 %v2084
        %3132 = vmatpush.bf16.msra.mxu0 %v2072
        %3133 = vmatpush.bf16.msra.mxu0 %v2060
        %3134 = vmatmul.bf16.gmra.mxu0 %v388
        %v3135 = vpop.f32.mrf.mxu0
        %v3136 = vadd.f32 %v3117, %v3135
        %v3137 = vpop.f32.mrf.mxu0
        %v3138 = vadd.f32 %v3119, %v3137
        %3139 = vmatmul.bf16.gmra.mxu0 %v392
        %v3140 = vpop.f32.mrf.mxu0
        %v3141 = vadd.f32 %v3122, %v3140
        %v3142 = vpop.f32.mrf.mxu0
        %v3143 = vadd.f32 %v3124, %v3142
        %3144 = vdwg.mxu0
        %3145 = vmatpush.bf16.msra.mxu0 %v2240
        %3146 = vmatpush.bf16.msra.mxu0 %v2228
        %3147 = vmatpush.bf16.msra.mxu0 %v2216
        %3148 = vmatpush.bf16.msra.mxu0 %v2204
        %3149 = vmatpush.bf16.msra.mxu0 %v2192
        %3150 = vmatpush.bf16.msra.mxu0 %v2180
        %3151 = vmatpush.bf16.msra.mxu0 %v2168
        %3152 = vmatpush.bf16.msra.mxu0 %v2156
        %3153 = vmatmul.bf16.gmra.mxu0 %v389
        %v3154 = vpop.f32.mrf.mxu0
        %v3155 = vadd.f32 %v3136, %v3154
        %v3156 = vpop.f32.mrf.mxu0
        %v3157 = vadd.f32 %v3138, %v3156
        %3158 = vmatmul.bf16.gmra.mxu0 %v393
        %v3159 = vpop.f32.mrf.mxu0
        %v3160 = vadd.f32 %v3141, %v3159
        %v3161 = vpop.f32.mrf.mxu0
        %v3162 = vadd.f32 %v3143, %v3161
        %3163 = vdwg.mxu0
        %3164 = vmatpush.bf16.msra.mxu0 %v2336
        %3165 = vmatpush.bf16.msra.mxu0 %v2324
        %3166 = vmatpush.bf16.msra.mxu0 %v2312
        %3167 = vmatpush.bf16.msra.mxu0 %v2300
        %3168 = vmatpush.bf16.msra.mxu0 %v2288
        %3169 = vmatpush.bf16.msra.mxu0 %v2276
        %3170 = vmatpush.bf16.msra.mxu0 %v2264
        %3171 = vmatpush.bf16.msra.mxu0 %v2252
        %3172 = vmatmul.bf16.gmra.mxu0 %v390
        %v3173 = vpop.f32.mrf.mxu0
        %v3174 = vadd.f32 %v3155, %v3173
        %v3175 = vpop.f32.mrf.mxu0
        %v3176 = vadd.f32 %v3157, %v3175
        %3177 = vmatmul.bf16.gmra.mxu0 %v394
        %v3178 = vpop.f32.mrf.mxu0
        %v3179 = vadd.f32 %v3160, %v3178
        %v3180 = vpop.f32.mrf.mxu0
        %v3181 = vadd.f32 %v3162, %v3180
        %3182 = vdwg.mxu0
        %3183 = vmatpush.bf16.msra.mxu0 %v2049
        %3184 = vmatpush.bf16.msra.mxu0 %v2037
        %3185 = vmatpush.bf16.msra.mxu0 %v2025
        %3186 = vmatpush.bf16.msra.mxu0 %v2013
        %3187 = vmatpush.bf16.msra.mxu0 %v2001
        %3188 = vmatpush.bf16.msra.mxu0 %v1989
        %3189 = vmatpush.bf16.msra.mxu0 %v1977
        %3190 = vmatpush.bf16.msra.mxu0 %v1965
        %3191 = vmatmul.bf16.gmra.mxu0 %v387
        %v3192 = vpop.f32.mrf.mxu0
        %v3193 = vadd.f32 %v789, %v3192
        %v3194 = vpop.f32.mrf.mxu0
        %v3195 = vadd.f32 %v789, %v3194
        %3196 = vmatmul.bf16.gmra.mxu0 %v391
        %v3197 = vpop.f32.mrf.mxu0
        %v3198 = vadd.f32 %v789, %v3197
        %v3199 = vpop.f32.mrf.mxu0
        %v3200 = vadd.f32 %v789, %v3199
        %3201 = vdwg.mxu0
        %3202 = vmatpush.bf16.msra.mxu0 %v2145
        %3203 = vmatpush.bf16.msra.mxu0 %v2133
        %3204 = vmatpush.bf16.msra.mxu0 %v2121
        %3205 = vmatpush.bf16.msra.mxu0 %v2109
        %3206 = vmatpush.bf16.msra.mxu0 %v2097
        %3207 = vmatpush.bf16.msra.mxu0 %v2085
        %3208 = vmatpush.bf16.msra.mxu0 %v2073
        %3209 = vmatpush.bf16.msra.mxu0 %v2061
        %3210 = vmatmul.bf16.gmra.mxu0 %v388
        %v3211 = vpop.f32.mrf.mxu0
        %v3212 = vadd.f32 %v3193, %v3211
        %v3213 = vpop.f32.mrf.mxu0
        %v3214 = vadd.f32 %v3195, %v3213
        %3215 = vmatmul.bf16.gmra.mxu0 %v392
        %v3216 = vpop.f32.mrf.mxu0
        %v3217 = vadd.f32 %v3198, %v3216
        %v3218 = vpop.f32.mrf.mxu0
        %v3219 = vadd.f32 %v3200, %v3218
        %3220 = vdwg.mxu0
        %3221 = vmatpush.bf16.msra.mxu0 %v2241
        %3222 = vmatpush.bf16.msra.mxu0 %v2229
        %3223 = vmatpush.bf16.msra.mxu0 %v2217
        %3224 = vmatpush.bf16.msra.mxu0 %v2205
        %3225 = vmatpush.bf16.msra.mxu0 %v2193
        %3226 = vmatpush.bf16.msra.mxu0 %v2181
        %3227 = vmatpush.bf16.msra.mxu0 %v2169
        %3228 = vmatpush.bf16.msra.mxu0 %v2157
        %3229 = vmatmul.bf16.gmra.mxu0 %v389
        %v3230 = vpop.f32.mrf.mxu0
        %v3231 = vadd.f32 %v3212, %v3230
        %v3232 = vpop.f32.mrf.mxu0
        %v3233 = vadd.f32 %v3214, %v3232
        %3234 = vmatmul.bf16.gmra.mxu0 %v393
        %v3235 = vpop.f32.mrf.mxu0
        %v3236 = vadd.f32 %v3217, %v3235
        %v3237 = vpop.f32.mrf.mxu0
        %v3238 = vadd.f32 %v3219, %v3237
        %3239 = vdwg.mxu0
        %3240 = vmatpush.bf16.msra.mxu0 %v2337
        %3241 = vmatpush.bf16.msra.mxu0 %v2325
        %3242 = vmatpush.bf16.msra.mxu0 %v2313
        %3243 = vmatpush.bf16.msra.mxu0 %v2301
        %3244 = vmatpush.bf16.msra.mxu0 %v2289
        %3245 = vmatpush.bf16.msra.mxu0 %v2277
        %3246 = vmatpush.bf16.msra.mxu0 %v2265
        %3247 = vmatpush.bf16.msra.mxu0 %v2253
        %3248 = vmatmul.bf16.gmra.mxu0 %v390
        %v3249 = vpop.f32.mrf.mxu0
        %v3250 = vadd.f32 %v3231, %v3249
        %v3251 = vpop.f32.mrf.mxu0
        %v3252 = vadd.f32 %v3233, %v3251
        %3253 = vmatmul.bf16.gmra.mxu0 %v394
        %v3254 = vpop.f32.mrf.mxu0
        %v3255 = vadd.f32 %v3236, %v3254
        %v3256 = vpop.f32.mrf.mxu0
        %v3257 = vadd.f32 %v3238, %v3256
        %3258 = vdwg.mxu0
        %3259 = vmatpush.bf16.msra.mxu0 %v2050
        %3260 = vmatpush.bf16.msra.mxu0 %v2038
        %3261 = vmatpush.bf16.msra.mxu0 %v2026
        %3262 = vmatpush.bf16.msra.mxu0 %v2014
        %3263 = vmatpush.bf16.msra.mxu0 %v2002
        %3264 = vmatpush.bf16.msra.mxu0 %v1990
        %3265 = vmatpush.bf16.msra.mxu0 %v1978
        %3266 = vmatpush.bf16.msra.mxu0 %v1966
        %3267 = vmatmul.bf16.gmra.mxu0 %v387
        %v3268 = vpop.f32.mrf.mxu0
        %v3269 = vadd.f32 %v790, %v3268
        %v3270 = vpop.f32.mrf.mxu0
        %v3271 = vadd.f32 %v790, %v3270
        %3272 = vmatmul.bf16.gmra.mxu0 %v391
        %v3273 = vpop.f32.mrf.mxu0
        %v3274 = vadd.f32 %v790, %v3273
        %v3275 = vpop.f32.mrf.mxu0
        %v3276 = vadd.f32 %v790, %v3275
        %3277 = vdwg.mxu0
        %3278 = vmatpush.bf16.msra.mxu0 %v2146
        %3279 = vmatpush.bf16.msra.mxu0 %v2134
        %3280 = vmatpush.bf16.msra.mxu0 %v2122
        %3281 = vmatpush.bf16.msra.mxu0 %v2110
        %3282 = vmatpush.bf16.msra.mxu0 %v2098
        %3283 = vmatpush.bf16.msra.mxu0 %v2086
        %3284 = vmatpush.bf16.msra.mxu0 %v2074
        %3285 = vmatpush.bf16.msra.mxu0 %v2062
        %3286 = vmatmul.bf16.gmra.mxu0 %v388
        %v3287 = vpop.f32.mrf.mxu0
        %v3288 = vadd.f32 %v3269, %v3287
        %v3289 = vpop.f32.mrf.mxu0
        %v3290 = vadd.f32 %v3271, %v3289
        %3291 = vmatmul.bf16.gmra.mxu0 %v392
        %v3292 = vpop.f32.mrf.mxu0
        %v3293 = vadd.f32 %v3274, %v3292
        %v3294 = vpop.f32.mrf.mxu0
        %v3295 = vadd.f32 %v3276, %v3294
        %3296 = vdwg.mxu0
        %3297 = vmatpush.bf16.msra.mxu0 %v2242
        %3298 = vmatpush.bf16.msra.mxu0 %v2230
        %3299 = vmatpush.bf16.msra.mxu0 %v2218
        %3300 = vmatpush.bf16.msra.mxu0 %v2206
        %3301 = vmatpush.bf16.msra.mxu0 %v2194
        %3302 = vmatpush.bf16.msra.mxu0 %v2182
        %3303 = vmatpush.bf16.msra.mxu0 %v2170
        %3304 = vmatpush.bf16.msra.mxu0 %v2158
        %3305 = vmatmul.bf16.gmra.mxu0 %v389
        %v3306 = vpop.f32.mrf.mxu0
        %v3307 = vadd.f32 %v3288, %v3306
        %v3308 = vpop.f32.mrf.mxu0
        %v3309 = vadd.f32 %v3290, %v3308
        %3310 = vmatmul.bf16.gmra.mxu0 %v393
        %v3311 = vpop.f32.mrf.mxu0
        %v3312 = vadd.f32 %v3293, %v3311
        %v3313 = vpop.f32.mrf.mxu0
        %v3314 = vadd.f32 %v3295, %v3313
        %3315 = vdwg.mxu0
        %3316 = vmatpush.bf16.msra.mxu0 %v2338
        %3317 = vmatpush.bf16.msra.mxu0 %v2326
        %3318 = vmatpush.bf16.msra.mxu0 %v2314
        %3319 = vmatpush.bf16.msra.mxu0 %v2302
        %3320 = vmatpush.bf16.msra.mxu0 %v2290
        %3321 = vmatpush.bf16.msra.mxu0 %v2278
        %3322 = vmatpush.bf16.msra.mxu0 %v2266
        %3323 = vmatpush.bf16.msra.mxu0 %v2254
        %3324 = vmatmul.bf16.gmra.mxu0 %v390
        %v3325 = vpop.f32.mrf.mxu0
        %v3326 = vadd.f32 %v3307, %v3325
        %v3327 = vpop.f32.mrf.mxu0
        %v3328 = vadd.f32 %v3309, %v3327
        %3329 = vmatmul.bf16.gmra.mxu0 %v394
        %v3330 = vpop.f32.mrf.mxu0
        %v3331 = vadd.f32 %v3312, %v3330
        %v3332 = vpop.f32.mrf.mxu0
        %v3333 = vadd.f32 %v3314, %v3332
        %3334 = vdwg.mxu0
        %3335 = vmatpush.bf16.msra.mxu0 %v2051
        %3336 = vmatpush.bf16.msra.mxu0 %v2039
        %3337 = vmatpush.bf16.msra.mxu0 %v2027
        %3338 = vmatpush.bf16.msra.mxu0 %v2015
        %3339 = vmatpush.bf16.msra.mxu0 %v2003
        %3340 = vmatpush.bf16.msra.mxu0 %v1991
        %3341 = vmatpush.bf16.msra.mxu0 %v1979
        %3342 = vmatpush.bf16.msra.mxu0 %v1967
        %3343 = vmatmul.bf16.gmra.mxu0 %v387
        %v3344 = vpop.f32.mrf.mxu0
        %v3345 = vadd.f32 %v791, %v3344
        %v3346 = vpop.f32.mrf.mxu0
        %v3347 = vadd.f32 %v791, %v3346
        %3348 = vmatmul.bf16.gmra.mxu0 %v391
        %v3349 = vpop.f32.mrf.mxu0
        %v3350 = vadd.f32 %v791, %v3349
        %v3351 = vpop.f32.mrf.mxu0
        %v3352 = vadd.f32 %v791, %v3351
        %3353 = vdwg.mxu0
        %3354 = vmatpush.bf16.msra.mxu0 %v2147
        %3355 = vmatpush.bf16.msra.mxu0 %v2135
        %3356 = vmatpush.bf16.msra.mxu0 %v2123
        %3357 = vmatpush.bf16.msra.mxu0 %v2111
        %3358 = vmatpush.bf16.msra.mxu0 %v2099
        %3359 = vmatpush.bf16.msra.mxu0 %v2087
        %3360 = vmatpush.bf16.msra.mxu0 %v2075
        %3361 = vmatpush.bf16.msra.mxu0 %v2063
        %3362 = vmatmul.bf16.gmra.mxu0 %v388
        %v3363 = vpop.f32.mrf.mxu0
        %v3364 = vadd.f32 %v3345, %v3363
        %v3365 = vpop.f32.mrf.mxu0
        %v3366 = vadd.f32 %v3347, %v3365
        %3367 = vmatmul.bf16.gmra.mxu0 %v392
        %v3368 = vpop.f32.mrf.mxu0
        %v3369 = vadd.f32 %v3350, %v3368
        %v3370 = vpop.f32.mrf.mxu0
        %v3371 = vadd.f32 %v3352, %v3370
        %3372 = vdwg.mxu0
        %3373 = vmatpush.bf16.msra.mxu0 %v2243
        %3374 = vmatpush.bf16.msra.mxu0 %v2231
        %3375 = vmatpush.bf16.msra.mxu0 %v2219
        %3376 = vmatpush.bf16.msra.mxu0 %v2207
        %3377 = vmatpush.bf16.msra.mxu0 %v2195
        %3378 = vmatpush.bf16.msra.mxu0 %v2183
        %3379 = vmatpush.bf16.msra.mxu0 %v2171
        %3380 = vmatpush.bf16.msra.mxu0 %v2159
        %3381 = vmatmul.bf16.gmra.mxu0 %v389
        %v3382 = vpop.f32.mrf.mxu0
        %v3383 = vadd.f32 %v3364, %v3382
        %v3384 = vpop.f32.mrf.mxu0
        %v3385 = vadd.f32 %v3366, %v3384
        %3386 = vmatmul.bf16.gmra.mxu0 %v393
        %v3387 = vpop.f32.mrf.mxu0
        %v3388 = vadd.f32 %v3369, %v3387
        %v3389 = vpop.f32.mrf.mxu0
        %v3390 = vadd.f32 %v3371, %v3389
        %3391 = vdwg.mxu0
        %3392 = vmatpush.bf16.msra.mxu0 %v2339
        %3393 = vmatpush.bf16.msra.mxu0 %v2327
        %3394 = vmatpush.bf16.msra.mxu0 %v2315
        %3395 = vmatpush.bf16.msra.mxu0 %v2303
        %3396 = vmatpush.bf16.msra.mxu0 %v2291
        %3397 = vmatpush.bf16.msra.mxu0 %v2279
        %3398 = vmatpush.bf16.msra.mxu0 %v2267
        %3399 = vmatpush.bf16.msra.mxu0 %v2255
        %3400 = vmatmul.bf16.gmra.mxu0 %v390
        %v3401 = vpop.f32.mrf.mxu0
        %v3402 = vadd.f32 %v3383, %v3401
        %v3403 = vpop.f32.mrf.mxu0
        %v3404 = vadd.f32 %v3385, %v3403
        %3405 = vmatmul.bf16.gmra.mxu0 %v394
        %v3406 = vpop.f32.mrf.mxu0
        %v3407 = vadd.f32 %v3388, %v3406
        %v3408 = vpop.f32.mrf.mxu0
        %v3409 = vadd.f32 %v3390, %v3408
        %3410 = vdwg.mxu0
        %3411 = vmatpush.bf16.msra.mxu0 %v2052
        %3412 = vmatpush.bf16.msra.mxu0 %v2040
        %3413 = vmatpush.bf16.msra.mxu0 %v2028
        %3414 = vmatpush.bf16.msra.mxu0 %v2016
        %3415 = vmatpush.bf16.msra.mxu0 %v2004
        %3416 = vmatpush.bf16.msra.mxu0 %v1992
        %3417 = vmatpush.bf16.msra.mxu0 %v1980
        %3418 = vmatpush.bf16.msra.mxu0 %v1968
        %3419 = vmatmul.bf16.gmra.mxu0 %v387
        %v3420 = vpop.f32.mrf.mxu0
        %v3421 = vadd.f32 %v792, %v3420
        %v3422 = vpop.f32.mrf.mxu0
        %v3423 = vadd.f32 %v792, %v3422
        %3424 = vmatmul.bf16.gmra.mxu0 %v391
        %v3425 = vpop.f32.mrf.mxu0
        %v3426 = vadd.f32 %v792, %v3425
        %v3427 = vpop.f32.mrf.mxu0
        %v3428 = vadd.f32 %v792, %v3427
        %3429 = vdwg.mxu0
        %3430 = vmatpush.bf16.msra.mxu0 %v2148
        %3431 = vmatpush.bf16.msra.mxu0 %v2136
        %3432 = vmatpush.bf16.msra.mxu0 %v2124
        %3433 = vmatpush.bf16.msra.mxu0 %v2112
        %3434 = vmatpush.bf16.msra.mxu0 %v2100
        %3435 = vmatpush.bf16.msra.mxu0 %v2088
        %3436 = vmatpush.bf16.msra.mxu0 %v2076
        %3437 = vmatpush.bf16.msra.mxu0 %v2064
        %3438 = vmatmul.bf16.gmra.mxu0 %v388
        %v3439 = vpop.f32.mrf.mxu0
        %v3440 = vadd.f32 %v3421, %v3439
        %v3441 = vpop.f32.mrf.mxu0
        %v3442 = vadd.f32 %v3423, %v3441
        %3443 = vmatmul.bf16.gmra.mxu0 %v392
        %v3444 = vpop.f32.mrf.mxu0
        %v3445 = vadd.f32 %v3426, %v3444
        %v3446 = vpop.f32.mrf.mxu0
        %v3447 = vadd.f32 %v3428, %v3446
        %3448 = vdwg.mxu0
        %3449 = vmatpush.bf16.msra.mxu0 %v2244
        %3450 = vmatpush.bf16.msra.mxu0 %v2232
        %3451 = vmatpush.bf16.msra.mxu0 %v2220
        %3452 = vmatpush.bf16.msra.mxu0 %v2208
        %3453 = vmatpush.bf16.msra.mxu0 %v2196
        %3454 = vmatpush.bf16.msra.mxu0 %v2184
        %3455 = vmatpush.bf16.msra.mxu0 %v2172
        %3456 = vmatpush.bf16.msra.mxu0 %v2160
        %3457 = vmatmul.bf16.gmra.mxu0 %v389
        %v3458 = vpop.f32.mrf.mxu0
        %v3459 = vadd.f32 %v3440, %v3458
        %v3460 = vpop.f32.mrf.mxu0
        %v3461 = vadd.f32 %v3442, %v3460
        %3462 = vmatmul.bf16.gmra.mxu0 %v393
        %v3463 = vpop.f32.mrf.mxu0
        %v3464 = vadd.f32 %v3445, %v3463
        %v3465 = vpop.f32.mrf.mxu0
        %v3466 = vadd.f32 %v3447, %v3465
        %3467 = vdwg.mxu0
        %3468 = vmatpush.bf16.msra.mxu0 %v2340
        %3469 = vmatpush.bf16.msra.mxu0 %v2328
        %3470 = vmatpush.bf16.msra.mxu0 %v2316
        %3471 = vmatpush.bf16.msra.mxu0 %v2304
        %3472 = vmatpush.bf16.msra.mxu0 %v2292
        %3473 = vmatpush.bf16.msra.mxu0 %v2280
        %3474 = vmatpush.bf16.msra.mxu0 %v2268
        %3475 = vmatpush.bf16.msra.mxu0 %v2256
        %3476 = vmatmul.bf16.gmra.mxu0 %v390
        %v3477 = vpop.f32.mrf.mxu0
        %v3478 = vadd.f32 %v3459, %v3477
        %v3479 = vpop.f32.mrf.mxu0
        %v3480 = vadd.f32 %v3461, %v3479
        %3481 = vmatmul.bf16.gmra.mxu0 %v394
        %v3482 = vpop.f32.mrf.mxu0
        %v3483 = vadd.f32 %v3464, %v3482
        %v3484 = vpop.f32.mrf.mxu0
        %v3485 = vadd.f32 %v3466, %v3484
        %3486 = vdwg.mxu0
        %3487 = vmatpush.bf16.msra.mxu0 %v2053
        %3488 = vmatpush.bf16.msra.mxu0 %v2041
        %3489 = vmatpush.bf16.msra.mxu0 %v2029
        %3490 = vmatpush.bf16.msra.mxu0 %v2017
        %3491 = vmatpush.bf16.msra.mxu0 %v2005
        %3492 = vmatpush.bf16.msra.mxu0 %v1993
        %3493 = vmatpush.bf16.msra.mxu0 %v1981
        %3494 = vmatpush.bf16.msra.mxu0 %v1969
        %3495 = vmatmul.bf16.gmra.mxu0 %v387
        %v3496 = vpop.f32.mrf.mxu0
        %v3497 = vadd.f32 %v793, %v3496
        %v3498 = vpop.f32.mrf.mxu0
        %v3499 = vadd.f32 %v793, %v3498
        %3500 = vmatmul.bf16.gmra.mxu0 %v391
        %v3501 = vpop.f32.mrf.mxu0
        %v3502 = vadd.f32 %v793, %v3501
        %v3503 = vpop.f32.mrf.mxu0
        %v3504 = vadd.f32 %v793, %v3503
        %3505 = vdwg.mxu0
        %3506 = vmatpush.bf16.msra.mxu0 %v2149
        %3507 = vmatpush.bf16.msra.mxu0 %v2137
        %3508 = vmatpush.bf16.msra.mxu0 %v2125
        %3509 = vmatpush.bf16.msra.mxu0 %v2113
        %3510 = vmatpush.bf16.msra.mxu0 %v2101
        %3511 = vmatpush.bf16.msra.mxu0 %v2089
        %3512 = vmatpush.bf16.msra.mxu0 %v2077
        %3513 = vmatpush.bf16.msra.mxu0 %v2065
        %3514 = vmatmul.bf16.gmra.mxu0 %v388
        %v3515 = vpop.f32.mrf.mxu0
        %v3516 = vadd.f32 %v3497, %v3515
        %v3517 = vpop.f32.mrf.mxu0
        %v3518 = vadd.f32 %v3499, %v3517
        %3519 = vmatmul.bf16.gmra.mxu0 %v392
        %v3520 = vpop.f32.mrf.mxu0
        %v3521 = vadd.f32 %v3502, %v3520
        %v3522 = vpop.f32.mrf.mxu0
        %v3523 = vadd.f32 %v3504, %v3522
        %3524 = vdwg.mxu0
        %3525 = vmatpush.bf16.msra.mxu0 %v2245
        %3526 = vmatpush.bf16.msra.mxu0 %v2233
        %3527 = vmatpush.bf16.msra.mxu0 %v2221
        %3528 = vmatpush.bf16.msra.mxu0 %v2209
        %3529 = vmatpush.bf16.msra.mxu0 %v2197
        %3530 = vmatpush.bf16.msra.mxu0 %v2185
        %3531 = vmatpush.bf16.msra.mxu0 %v2173
        %3532 = vmatpush.bf16.msra.mxu0 %v2161
        %3533 = vmatmul.bf16.gmra.mxu0 %v389
        %v3534 = vpop.f32.mrf.mxu0
        %v3535 = vadd.f32 %v3516, %v3534
        %v3536 = vpop.f32.mrf.mxu0
        %v3537 = vadd.f32 %v3518, %v3536
        %3538 = vmatmul.bf16.gmra.mxu0 %v393
        %v3539 = vpop.f32.mrf.mxu0
        %v3540 = vadd.f32 %v3521, %v3539
        %v3541 = vpop.f32.mrf.mxu0
        %v3542 = vadd.f32 %v3523, %v3541
        %3543 = vdwg.mxu0
        %3544 = vmatpush.bf16.msra.mxu0 %v2341
        %3545 = vmatpush.bf16.msra.mxu0 %v2329
        %3546 = vmatpush.bf16.msra.mxu0 %v2317
        %3547 = vmatpush.bf16.msra.mxu0 %v2305
        %3548 = vmatpush.bf16.msra.mxu0 %v2293
        %3549 = vmatpush.bf16.msra.mxu0 %v2281
        %3550 = vmatpush.bf16.msra.mxu0 %v2269
        %3551 = vmatpush.bf16.msra.mxu0 %v2257
        %3552 = vmatmul.bf16.gmra.mxu0 %v390
        %v3553 = vpop.f32.mrf.mxu0
        %v3554 = vadd.f32 %v3535, %v3553
        %v3555 = vpop.f32.mrf.mxu0
        %v3556 = vadd.f32 %v3537, %v3555
        %3557 = vmatmul.bf16.gmra.mxu0 %v394
        %v3558 = vpop.f32.mrf.mxu0
        %v3559 = vadd.f32 %v3540, %v3558
        %v3560 = vpop.f32.mrf.mxu0
        %v3561 = vadd.f32 %v3542, %v3560
        %3562 = vdwg.mxu0
        %3563 = vmatpush.bf16.msra.mxu0 %v2054
        %3564 = vmatpush.bf16.msra.mxu0 %v2042
        %3565 = vmatpush.bf16.msra.mxu0 %v2030
        %3566 = vmatpush.bf16.msra.mxu0 %v2018
        %3567 = vmatpush.bf16.msra.mxu0 %v2006
        %3568 = vmatpush.bf16.msra.mxu0 %v1994
        %3569 = vmatpush.bf16.msra.mxu0 %v1982
        %3570 = vmatpush.bf16.msra.mxu0 %v1970
        %3571 = vmatmul.bf16.gmra.mxu0 %v387
        %v3572 = vpop.f32.mrf.mxu0
        %v3573 = vadd.f32 %v794, %v3572
        %v3574 = vpop.f32.mrf.mxu0
        %v3575 = vadd.f32 %v794, %v3574
        %3576 = vmatmul.bf16.gmra.mxu0 %v391
        %v3577 = vpop.f32.mrf.mxu0
        %v3578 = vadd.f32 %v794, %v3577
        %v3579 = vpop.f32.mrf.mxu0
        %v3580 = vadd.f32 %v794, %v3579
        %3581 = vdwg.mxu0
        %3582 = vmatpush.bf16.msra.mxu0 %v2150
        %3583 = vmatpush.bf16.msra.mxu0 %v2138
        %3584 = vmatpush.bf16.msra.mxu0 %v2126
        %3585 = vmatpush.bf16.msra.mxu0 %v2114
        %3586 = vmatpush.bf16.msra.mxu0 %v2102
        %3587 = vmatpush.bf16.msra.mxu0 %v2090
        %3588 = vmatpush.bf16.msra.mxu0 %v2078
        %3589 = vmatpush.bf16.msra.mxu0 %v2066
        %3590 = vmatmul.bf16.gmra.mxu0 %v388
        %v3591 = vpop.f32.mrf.mxu0
        %v3592 = vadd.f32 %v3573, %v3591
        %v3593 = vpop.f32.mrf.mxu0
        %v3594 = vadd.f32 %v3575, %v3593
        %3595 = vmatmul.bf16.gmra.mxu0 %v392
        %v3596 = vpop.f32.mrf.mxu0
        %v3597 = vadd.f32 %v3578, %v3596
        %v3598 = vpop.f32.mrf.mxu0
        %v3599 = vadd.f32 %v3580, %v3598
        %3600 = vdwg.mxu0
        %3601 = vmatpush.bf16.msra.mxu0 %v2246
        %3602 = vmatpush.bf16.msra.mxu0 %v2234
        %3603 = vmatpush.bf16.msra.mxu0 %v2222
        %3604 = vmatpush.bf16.msra.mxu0 %v2210
        %3605 = vmatpush.bf16.msra.mxu0 %v2198
        %3606 = vmatpush.bf16.msra.mxu0 %v2186
        %3607 = vmatpush.bf16.msra.mxu0 %v2174
        %3608 = vmatpush.bf16.msra.mxu0 %v2162
        %3609 = vmatmul.bf16.gmra.mxu0 %v389
        %v3610 = vpop.f32.mrf.mxu0
        %v3611 = vadd.f32 %v3592, %v3610
        %v3612 = vpop.f32.mrf.mxu0
        %v3613 = vadd.f32 %v3594, %v3612
        %3614 = vmatmul.bf16.gmra.mxu0 %v393
        %v3615 = vpop.f32.mrf.mxu0
        %v3616 = vadd.f32 %v3597, %v3615
        %v3617 = vpop.f32.mrf.mxu0
        %v3618 = vadd.f32 %v3599, %v3617
        %3619 = vdwg.mxu0
        %3620 = vmatpush.bf16.msra.mxu0 %v2342
        %3621 = vmatpush.bf16.msra.mxu0 %v2330
        %3622 = vmatpush.bf16.msra.mxu0 %v2318
        %3623 = vmatpush.bf16.msra.mxu0 %v2306
        %3624 = vmatpush.bf16.msra.mxu0 %v2294
        %3625 = vmatpush.bf16.msra.mxu0 %v2282
        %3626 = vmatpush.bf16.msra.mxu0 %v2270
        %3627 = vmatpush.bf16.msra.mxu0 %v2258
        %3628 = vmatmul.bf16.gmra.mxu0 %v390
        %v3629 = vpop.f32.mrf.mxu0
        %v3630 = vadd.f32 %v3611, %v3629
        %v3631 = vpop.f32.mrf.mxu0
        %v3632 = vadd.f32 %v3613, %v3631
        %3633 = vmatmul.bf16.gmra.mxu0 %v394
        %v3634 = vpop.f32.mrf.mxu0
        %v3635 = vadd.f32 %v3616, %v3634
        %v3636 = vpop.f32.mrf.mxu0
        %v3637 = vadd.f32 %v3618, %v3636
        %3638 = vdwg.mxu0
        %3639 = vmatpush.xpose.msra.mxu0 0.0
        %3640 = vmatpush.xpose.msra.mxu0 0.0
        %3641 = vmatpush.xpose.msra.mxu0 0.0
        %3642 = vmatpush.xpose.msra.mxu0 0.0
        %3643 = vmatpush.xpose.msra.mxu0 0.0
        %3644 = vmatpush.xpose.msra.mxu0 0.0
        %3645 = vmatpush.xpose.msra.mxu0 0.0
        %3646 = vmatpush.xpose.msra.mxu0 0.0
        %3647 = vmatpush.xpose.msra.mxu0 0.0
        %3648 = vmatpush.xpose.msra.mxu0 0.0
        %3649 = vmatpush.xpose.msra.mxu0 0.0
        %3650 = vmatpush.xpose.msra.mxu0 0.0
        %3651 = vmatpush.xpose.msra.mxu0 %v3105
        %3652 = vmatpush.xpose.msra.mxu0 %v3103
        %3653 = vmatpush.xpose.msra.mxu0 %v3100
        %3654 = vmatpush.xpose.msra.mxu0 %v3098
        %3655 = vmatmul.f32.gmra.mxu0 %v2794
        %v3656 = vpop.f32.mrf.mxu0
        %v3657 = vadd.f32 0.0, %v3656
        %3658 = vmatmul.f32.gmra.mxu0 %v2796
        %v3659 = vpop.f32.mrf.mxu0
        %v3660 = vadd.f32 0.0, %v3659
        %3661 = vmatmul.f32.gmra.mxu0 %v2799
        %v3662 = vpop.f32.mrf.mxu0
        %v3663 = vadd.f32 0.0, %v3662
        %3664 = vmatmul.f32.gmra.mxu0 %v2801
        %v3665 = vpop.f32.mrf.mxu0
        %v3666 = vadd.f32 0.0, %v3665
        %3667 = vdwg.mxu0
        %3668 = vmatpush.xpose.msra.mxu0 0.0
        %3669 = vmatpush.xpose.msra.mxu0 0.0
        %3670 = vmatpush.xpose.msra.mxu0 0.0
        %3671 = vmatpush.xpose.msra.mxu0 0.0
        %3672 = vmatpush.xpose.msra.mxu0 0.0
        %3673 = vmatpush.xpose.msra.mxu0 0.0
        %3674 = vmatpush.xpose.msra.mxu0 0.0
        %3675 = vmatpush.xpose.msra.mxu0 0.0
        %3676 = vmatpush.xpose.msra.mxu0 0.0
        %3677 = vmatpush.xpose.msra.mxu0 0.0
        %3678 = vmatpush.xpose.msra.mxu0 0.0
        %3679 = vmatpush.xpose.msra.mxu0 0.0
        %3680 = vmatpush.xpose.msra.mxu0 %v3181
        %3681 = vmatpush.xpose.msra.mxu0 %v3179
        %3682 = vmatpush.xpose.msra.mxu0 %v3176
        %3683 = vmatpush.xpose.msra.mxu0 %v3174
        %3684 = vmatmul.f32.gmra.mxu0 %v2870
        %v3685 = vpop.f32.mrf.mxu0
        %v3686 = vadd.f32 %v3657, %v3685
        %3687 = vmatmul.f32.gmra.mxu0 %v2872
        %v3688 = vpop.f32.mrf.mxu0
        %v3689 = vadd.f32 %v3660, %v3688
        %3690 = vmatmul.f32.gmra.mxu0 %v2875
        %v3691 = vpop.f32.mrf.mxu0
        %v3692 = vadd.f32 %v3663, %v3691
        %3693 = vmatmul.f32.gmra.mxu0 %v2877
        %v3694 = vpop.f32.mrf.mxu0
        %v3695 = vadd.f32 %v3666, %v3694
        %3696 = vdwg.mxu0
        %3697 = vmatpush.xpose.msra.mxu0 0.0
        %3698 = vmatpush.xpose.msra.mxu0 0.0
        %3699 = vmatpush.xpose.msra.mxu0 0.0
        %3700 = vmatpush.xpose.msra.mxu0 0.0
        %3701 = vmatpush.xpose.msra.mxu0 0.0
        %3702 = vmatpush.xpose.msra.mxu0 0.0
        %3703 = vmatpush.xpose.msra.mxu0 0.0
        %3704 = vmatpush.xpose.msra.mxu0 0.0
        %3705 = vmatpush.xpose.msra.mxu0 0.0
        %3706 = vmatpush.xpose.msra.mxu0 0.0
        %3707 = vmatpush.xpose.msra.mxu0 0.0
        %3708 = vmatpush.xpose.msra.mxu0 0.0
        %3709 = vmatpush.xpose.msra.mxu0 %v3257
        %3710 = vmatpush.xpose.msra.mxu0 %v3255
        %3711 = vmatpush.xpose.msra.mxu0 %v3252
        %3712 = vmatpush.xpose.msra.mxu0 %v3250
        %3713 = vmatmul.f32.gmra.mxu0 %v2946
        %v3714 = vpop.f32.mrf.mxu0
        %v3715 = vadd.f32 %v3686, %v3714
        %3716 = vmatmul.f32.gmra.mxu0 %v2948
        %v3717 = vpop.f32.mrf.mxu0
        %v3718 = vadd.f32 %v3689, %v3717
        %3719 = vmatmul.f32.gmra.mxu0 %v2951
        %v3720 = vpop.f32.mrf.mxu0
        %v3721 = vadd.f32 %v3692, %v3720
        %3722 = vmatmul.f32.gmra.mxu0 %v2953
        %v3723 = vpop.f32.mrf.mxu0
        %v3724 = vadd.f32 %v3695, %v3723
        %3725 = vdwg.mxu0
        %3726 = vmatpush.xpose.msra.mxu0 0.0
        %3727 = vmatpush.xpose.msra.mxu0 0.0
        %3728 = vmatpush.xpose.msra.mxu0 0.0
        %3729 = vmatpush.xpose.msra.mxu0 0.0
        %3730 = vmatpush.xpose.msra.mxu0 0.0
        %3731 = vmatpush.xpose.msra.mxu0 0.0
        %3732 = vmatpush.xpose.msra.mxu0 0.0
        %3733 = vmatpush.xpose.msra.mxu0 0.0
        %3734 = vmatpush.xpose.msra.mxu0 0.0
        %3735 = vmatpush.xpose.msra.mxu0 0.0
        %3736 = vmatpush.xpose.msra.mxu0 0.0
        %3737 = vmatpush.xpose.msra.mxu0 0.0
        %3738 = vmatpush.xpose.msra.mxu0 %v3333
        %3739 = vmatpush.xpose.msra.mxu0 %v3331
        %3740 = vmatpush.xpose.msra.mxu0 %v3328
        %3741 = vmatpush.xpose.msra.mxu0 %v3326
        %3742 = vmatmul.f32.gmra.mxu0 %v3022
        %v3743 = vpop.f32.mrf.mxu0
        %v3744 = vadd.f32 %v3715, %v3743
        %3745 = vmatmul.f32.gmra.mxu0 %v3024
        %v3746 = vpop.f32.mrf.mxu0
        %v3747 = vadd.f32 %v3718, %v3746
        %3748 = vmatmul.f32.gmra.mxu0 %v3027
        %v3749 = vpop.f32.mrf.mxu0
        %v3750 = vadd.f32 %v3721, %v3749
        %3751 = vmatmul.f32.gmra.mxu0 %v3029
        %v3752 = vpop.f32.mrf.mxu0
        %v3753 = vadd.f32 %v3724, %v3752
        %3754 = vdwg.mxu0
        %v3755 = vmul.f32 %v3744, 0.045454547
        %v3756 = vmul.f32 %v3747, 0.045454547
        %v3757 = vmul.f32 %v3750, 0.045454547
        %v3758 = vmul.f32 %v3753, 0.045454547
        %vm3759 = vcmask 244736
        %v3760 = vsel %vm3759, %v3755, -inf
        %3761 = vmax.xlane.f32.xlu0 %v3760
        %v3762 = vpop.xlane.xlu0 %3761
        %v3763 = vsel %vm3759, %v3756, -inf
        %3764 = vmax.xlane.f32.xlu0 %v3763
        %v3765 = vpop.xlane.xlu0 %3764
        %v3766 = vsel %vm3759, %v3757, -inf
        %3767 = vmax.xlane.f32.xlu0 %v3766
        %v3768 = vpop.xlane.xlu0 %3767
        %vm3769 = vcmask 242688
        %v3770 = vsel %vm3769, %v3758, -inf
        %3771 = vmax.xlane.f32.xlu0 %v3770
        %v3772 = vpop.xlane.xlu0 %3771
        %v3773 = vsub.f32 %v3755, %v3762
        %v3774 = vsub.f32 %v3756, %v3765
        %v3775 = vsub.f32 %v3757, %v3768
        %v3776 = vsub.f32 %v3758, %v3772
        %v3777 = vmul.f32 %v3773, 1.442695
        %v3778 = vpow.pop %v3777
        %v3779 = vmul.f32 %v3774, 1.442695
        %v3780 = vpow.pop %v3779
        %v3781 = vmul.f32 %v3775, 1.442695
        %v3782 = vpow.pop %v3781
        %v3783 = vmul.f32 %v3776, 1.442695
        %v3784 = vpow.pop %v3783
        %v3785 = vsel %vm3759, %v3778, 0.0
        %3786 = vadd.xlane.f32.xlu0 %v3785
        %v3787 = vpop.xlane.xlu0 %3786
        %v3788 = vsel %vm3759, %v3780, 0.0
        %3789 = vadd.xlane.f32.xlu0 %v3788
        %v3790 = vpop.xlane.xlu0 %3789
        %v3791 = vsel %vm3759, %v3782, 0.0
        %3792 = vadd.xlane.f32.xlu0 %v3791
        %v3793 = vpop.xlane.xlu0 %3792
        %v3794 = vsel %vm3769, %v3784, 0.0
        %3795 = vadd.xlane.f32.xlu0 %v3794
        %v3796 = vpop.xlane.xlu0 %3795
        %v3797 = vrcp.pop %v3787
        %v3798 = vrcp.pop %v3790
        %v3799 = vrcp.pop %v3793
        %v3800 = vrcp.pop %v3796
        %v3801 = vmul.f32 %v3778, %v3797
        %v3802 = vmul.f32 %v3780, %v3798
        %v3803 = vmul.f32 %v3782, %v3799
        %v3804 = vmul.f32 %v3784, %v3800
        %v3806 = vsel %vm3759, %v3801, 0
        %v3809 = vsel %vm3759, %v3802, 0
        %v3812 = vsel %vm3759, %v3803, 0
        %v3815 = vsel %vm3759, %v3804, 0
        %vm3817 = vcmask 1045504
        %v3819 = vsel %vm3817, %v3409, 0
        %v3822 = vsel %vm3817, %v3485, 0
        %v3825 = vsel %vm3817, %v3561, 0
        %v3828 = vsel %vm3817, %v3637, 0
        %3830 = vmatpush.msra.mxu0 0.0
        %3831 = vmatpush.msra.mxu0 0.0
        %3832 = vmatpush.msra.mxu0 0.0
        %3833 = vmatpush.msra.mxu0 0.0
        %3834 = vmatpush.msra.mxu0 0.0
        %3835 = vmatpush.msra.mxu0 0.0
        %3836 = vmatpush.msra.mxu0 0.0
        %3837 = vmatpush.msra.mxu0 0.0
        %3838 = vmatpush.msra.mxu0 0.0
        %3839 = vmatpush.msra.mxu0 0.0
        %3840 = vmatpush.msra.mxu0 0.0
        %3841 = vmatpush.msra.mxu0 0.0
        %3842 = vmatpush.msra.mxu0 %v3819
        %3843 = vmatpush.msra.mxu0 %v3407
        %3844 = vmatpush.msra.mxu0 %v3404
        %3845 = vmatpush.msra.mxu0 %v3402
        %3846 = vmatmul.f32.gmra.mxu0 %v3806
        %v3847 = vpop.f32.mrf.mxu0
        %v3848 = vadd.f32 0.0, %v3847
        %3849 = vmatmul.f32.gmra.mxu0 %v3809
        %v3850 = vpop.f32.mrf.mxu0
        %v3851 = vadd.f32 0.0, %v3850
        %3852 = vmatmul.f32.gmra.mxu0 %v3812
        %v3853 = vpop.f32.mrf.mxu0
        %v3854 = vadd.f32 0.0, %v3853
        %3855 = vmatmul.f32.gmra.mxu0 %v3815
        %v3856 = vpop.f32.mrf.mxu0
        %v3857 = vadd.f32 0.0, %v3856
        %3858 = vdwg.mxu0
        %3859 = vmatpush.msra.mxu0 0.0
        %3860 = vmatpush.msra.mxu0 0.0
        %3861 = vmatpush.msra.mxu0 0.0
        %3862 = vmatpush.msra.mxu0 0.0
        %3863 = vmatpush.msra.mxu0 0.0
        %3864 = vmatpush.msra.mxu0 0.0
        %3865 = vmatpush.msra.mxu0 0.0
        %3866 = vmatpush.msra.mxu0 0.0
        %3867 = vmatpush.msra.mxu0 0.0
        %3868 = vmatpush.msra.mxu0 0.0
        %3869 = vmatpush.msra.mxu0 0.0
        %3870 = vmatpush.msra.mxu0 0.0
        %3871 = vmatpush.msra.mxu0 %v3822
        %3872 = vmatpush.msra.mxu0 %v3483
        %3873 = vmatpush.msra.mxu0 %v3480
        %3874 = vmatpush.msra.mxu0 %v3478
        %3875 = vmatmul.f32.gmra.mxu0 %v3806
        %v3876 = vpop.f32.mrf.mxu0
        %v3877 = vadd.f32 0.0, %v3876
        %3878 = vmatmul.f32.gmra.mxu0 %v3809
        %v3879 = vpop.f32.mrf.mxu0
        %v3880 = vadd.f32 0.0, %v3879
        %3881 = vmatmul.f32.gmra.mxu0 %v3812
        %v3882 = vpop.f32.mrf.mxu0
        %v3883 = vadd.f32 0.0, %v3882
        %3884 = vmatmul.f32.gmra.mxu0 %v3815
        %v3885 = vpop.f32.mrf.mxu0
        %v3886 = vadd.f32 0.0, %v3885
        %3887 = vdwg.mxu0
        %3888 = vmatpush.msra.mxu0 0.0
        %3889 = vmatpush.msra.mxu0 0.0
        %3890 = vmatpush.msra.mxu0 0.0
        %3891 = vmatpush.msra.mxu0 0.0
        %3892 = vmatpush.msra.mxu0 0.0
        %3893 = vmatpush.msra.mxu0 0.0
        %3894 = vmatpush.msra.mxu0 0.0
        %3895 = vmatpush.msra.mxu0 0.0
        %3896 = vmatpush.msra.mxu0 0.0
        %3897 = vmatpush.msra.mxu0 0.0
        %3898 = vmatpush.msra.mxu0 0.0
        %3899 = vmatpush.msra.mxu0 0.0
        %3900 = vmatpush.msra.mxu0 %v3825
        %3901 = vmatpush.msra.mxu0 %v3559
        %3902 = vmatpush.msra.mxu0 %v3556
        %3903 = vmatpush.msra.mxu0 %v3554
        %3904 = vmatmul.f32.gmra.mxu0 %v3806
        %v3905 = vpop.f32.mrf.mxu0
        %v3906 = vadd.f32 0.0, %v3905
        %3907 = vmatmul.f32.gmra.mxu0 %v3809
        %v3908 = vpop.f32.mrf.mxu0
        %v3909 = vadd.f32 0.0, %v3908
        %3910 = vmatmul.f32.gmra.mxu0 %v3812
        %v3911 = vpop.f32.mrf.mxu0
        %v3912 = vadd.f32 0.0, %v3911
        %3913 = vmatmul.f32.gmra.mxu0 %v3815
        %v3914 = vpop.f32.mrf.mxu0
        %v3915 = vadd.f32 0.0, %v3914
        %3916 = vdwg.mxu0
        %3917 = vmatpush.msra.mxu0 0.0
        %3918 = vmatpush.msra.mxu0 0.0
        %3919 = vmatpush.msra.mxu0 0.0
        %3920 = vmatpush.msra.mxu0 0.0
        %3921 = vmatpush.msra.mxu0 0.0
        %3922 = vmatpush.msra.mxu0 0.0
        %3923 = vmatpush.msra.mxu0 0.0
        %3924 = vmatpush.msra.mxu0 0.0
        %3925 = vmatpush.msra.mxu0 0.0
        %3926 = vmatpush.msra.mxu0 0.0
        %3927 = vmatpush.msra.mxu0 0.0
        %3928 = vmatpush.msra.mxu0 0.0
        %3929 = vmatpush.msra.mxu0 %v3828
        %3930 = vmatpush.msra.mxu0 %v3635
        %3931 = vmatpush.msra.mxu0 %v3632
        %3932 = vmatpush.msra.mxu0 %v3630
        %3933 = vmatmul.f32.gmra.mxu0 %v3806
        %v3934 = vpop.f32.mrf.mxu0
        %v3935 = vadd.f32 0.0, %v3934
        %3936 = vmatmul.f32.gmra.mxu0 %v3809
        %v3937 = vpop.f32.mrf.mxu0
        %v3938 = vadd.f32 0.0, %v3937
        %3939 = vmatmul.f32.gmra.mxu0 %v3812
        %v3940 = vpop.f32.mrf.mxu0
        %v3941 = vadd.f32 0.0, %v3940
        %3942 = vmatmul.f32.gmra.mxu0 %v3815
        %v3943 = vpop.f32.mrf.mxu0
        %v3944 = vadd.f32 0.0, %v3943
        %3945 = vdwg.mxu0
        %v3946 = vpack.c.bf16 %v3851, %v3848
        %v3947 = vpack.c.bf16 %v3880, %v3877
        %v3948 = vpack.c.bf16 %v3909, %v3906
        %v3949 = vpack.c.bf16 %v3938, %v3935
        %v3950 = vpack.c.bf16 %v3857, %v3854
        %v3951 = vpack.c.bf16 %v3886, %v3883
        %v3952 = vpack.c.bf16 %v3915, %v3912
        %v3953 = vpack.c.bf16 %v3944, %v3941
        %v3954 = vld [vmem:[#allocation6] sm:$0xff]
        %v3955 = vld [vmem:[#allocation6 + $0x8] sm:$0xff]
        %v3956 = vld [vmem:[#allocation6 + $0x10] sm:$0xff]
        %v3957 = vld [vmem:[#allocation6 + $0x18] sm:$0xff]
        %v3958 = vld [vmem:[#allocation6 + $0x20] sm:$0xff]
        %v3959 = vld [vmem:[#allocation6 + $0x28] sm:$0xff]
        %v3960 = vld [vmem:[#allocation6 + $0x30] sm:$0xff]
        %v3961 = vld [vmem:[#allocation6 + $0x38] sm:$0xff]
        %v3962 = vld [vmem:[#allocation6 + $0x40] sm:$0xff]
        %v3963 = vld [vmem:[#allocation6 + $0x48] sm:$0xff]
        %v3964 = vld [vmem:[#allocation6 + $0x50] sm:$0xff]
        %v3965 = vld [vmem:[#allocation6 + $0x58] sm:$0xff]
        %v3966 = vld [vmem:[#allocation6 + $0x60] sm:$0xff]
        %v3967 = vld [vmem:[#allocation6 + $0x68] sm:$0xff]
        %v3968 = vld [vmem:[#allocation6 + $0x70] sm:$0xff]
        %v3969 = vld [vmem:[#allocation6 + $0x78] sm:$0xff]
        %v3970 = vld [vmem:[#allocation6 + $0x80] sm:$0xff]
        %v3971 = vld [vmem:[#allocation6 + $0x88] sm:$0xff]
        %v3972 = vld [vmem:[#allocation6 + $0x90] sm:$0xff]
        %v3973 = vld [vmem:[#allocation6 + $0x98] sm:$0xff]
        %v3974 = vld [vmem:[#allocation6 + $0xa0] sm:$0xff]
        %v3975 = vld [vmem:[#allocation6 + $0xa8] sm:$0xff]
        %v3976 = vld [vmem:[#allocation6 + $0xb0] sm:$0xff]
        %v3977 = vld [vmem:[#allocation6 + $0xb8] sm:$0xff]
        %v3978 = vld [vmem:[#allocation6 + $0xc0] sm:$0xff]
        %v3979 = vld [vmem:[#allocation6 + $0xc8] sm:$0xff]
        %v3980 = vld [vmem:[#allocation6 + $0xd0] sm:$0xff]
        %v3981 = vld [vmem:[#allocation6 + $0xd8] sm:$0xff]
        %v3982 = vld [vmem:[#allocation6 + $0xe0] sm:$0xff]
        %v3983 = vld [vmem:[#allocation6 + $0xe8] sm:$0xff]
        %v3984 = vld [vmem:[#allocation6 + $0xf0] sm:$0xff]
        %v3985 = vld [vmem:[#allocation6 + $0xf8] sm:$0xff]
        %v3986 = vld [vmem:[#allocation6 + $0x100] sm:$0xff]
        %v3987 = vld [vmem:[#allocation6 + $0x108] sm:$0xff]
        %v3988 = vld [vmem:[#allocation6 + $0x110] sm:$0xff]
        %v3989 = vld [vmem:[#allocation6 + $0x118] sm:$0xff]
        %v3990 = vld [vmem:[#allocation6 + $0x120] sm:$0xff]
        %v3991 = vld [vmem:[#allocation6 + $0x128] sm:$0xff]
        %v3992 = vld [vmem:[#allocation6 + $0x130] sm:$0xff]
        %v3993 = vld [vmem:[#allocation6 + $0x138] sm:$0xff]
        %v3994 = vld [vmem:[#allocation6 + $0x140] sm:$0xff]
        %v3995 = vld [vmem:[#allocation6 + $0x148] sm:$0xff]
        %v3996 = vld [vmem:[#allocation6 + $0x150] sm:$0xff]
        %v3997 = vld [vmem:[#allocation6 + $0x158] sm:$0xff]
        %v3998 = vld [vmem:[#allocation6 + $0x160] sm:$0xff]
        %v3999 = vld [vmem:[#allocation6 + $0x168] sm:$0xff]
        %v4000 = vld [vmem:[#allocation6 + $0x170] sm:$0xff]
        %v4001 = vld [vmem:[#allocation6 + $0x178] sm:$0xff]
        %v4002 = vld [vmem:[#allocation6 + $0x180] sm:$0xff]
        %v4003 = vld [vmem:[#allocation6 + $0x188] sm:$0xff]
        %v4004 = vld [vmem:[#allocation6 + $0x190] sm:$0xff]
        %v4005 = vld [vmem:[#allocation6 + $0x198] sm:$0xff]
        %v4006 = vld [vmem:[#allocation6 + $0x1a0] sm:$0xff]
        %v4007 = vld [vmem:[#allocation6 + $0x1a8] sm:$0xff]
        %v4008 = vld [vmem:[#allocation6 + $0x1b0] sm:$0xff]
        %v4009 = vld [vmem:[#allocation6 + $0x1b8] sm:$0xff]
        %v4010 = vld [vmem:[#allocation6 + $0x1c0] sm:$0xff]
        %v4011 = vld [vmem:[#allocation6 + $0x1c8] sm:$0xff]
        %v4012 = vld [vmem:[#allocation6 + $0x1d0] sm:$0xff]
        %v4013 = vld [vmem:[#allocation6 + $0x1d8] sm:$0xff]
        %v4014 = vld [vmem:[#allocation6 + $0x1e0] sm:$0xff]
        %v4015 = vld [vmem:[#allocation6 + $0x1e8] sm:$0xff]
        %v4016 = vld [vmem:[#allocation6 + $0x1f0] sm:$0xff]
        %v4017 = vld [vmem:[#allocation6 + $0x1f8] sm:$0xff]
        %v4018 = vld [vmem:[#allocation6 + $0x200] sm:$0xff]
        %v4019 = vld [vmem:[#allocation6 + $0x208] sm:$0xff]
        %v4020 = vld [vmem:[#allocation6 + $0x210] sm:$0xff]
        %v4021 = vld [vmem:[#allocation6 + $0x218] sm:$0xff]
        %v4022 = vld [vmem:[#allocation6 + $0x220] sm:$0xff]
        %v4023 = vld [vmem:[#allocation6 + $0x228] sm:$0xff]
        %v4024 = vld [vmem:[#allocation6 + $0x230] sm:$0xff]
        %v4025 = vld [vmem:[#allocation6 + $0x238] sm:$0xff]
        %v4026 = vld [vmem:[#allocation6 + $0x240] sm:$0xff]
        %v4027 = vld [vmem:[#allocation6 + $0x248] sm:$0xff]
        %v4028 = vld [vmem:[#allocation6 + $0x250] sm:$0xff]
        %v4029 = vld [vmem:[#allocation6 + $0x258] sm:$0xff]
        %v4030 = vld [vmem:[#allocation6 + $0x260] sm:$0xff]
        %v4031 = vld [vmem:[#allocation6 + $0x268] sm:$0xff]
        %v4032 = vld [vmem:[#allocation6 + $0x270] sm:$0xff]
        %v4033 = vld [vmem:[#allocation6 + $0x278] sm:$0xff]
        %v4034 = vld [vmem:[#allocation6 + $0x280] sm:$0xff]
        %v4035 = vld [vmem:[#allocation6 + $0x288] sm:$0xff]
        %v4036 = vld [vmem:[#allocation6 + $0x290] sm:$0xff]
        %v4037 = vld [vmem:[#allocation6 + $0x298] sm:$0xff]
        %v4038 = vld [vmem:[#allocation6 + $0x2a0] sm:$0xff]
        %v4039 = vld [vmem:[#allocation6 + $0x2a8] sm:$0xff]
        %v4040 = vld [vmem:[#allocation6 + $0x2b0] sm:$0xff]
        %v4041 = vld [vmem:[#allocation6 + $0x2b8] sm:$0xff]
        %v4042 = vld [vmem:[#allocation6 + $0x2c0] sm:$0xff]
        %v4043 = vld [vmem:[#allocation6 + $0x2c8] sm:$0xff]
        %v4044 = vld [vmem:[#allocation6 + $0x2d0] sm:$0xff]
        %v4045 = vld [vmem:[#allocation6 + $0x2d8] sm:$0xff]
        %v4046 = vld [vmem:[#allocation6 + $0x2e0] sm:$0xff]
        %v4047 = vld [vmem:[#allocation6 + $0x2e8] sm:$0xff]
        %v4048 = vld [vmem:[#allocation6 + $0x2f0] sm:$0xff]
        %v4049 = vld [vmem:[#allocation6 + $0x2f8] sm:$0xff]
        %v4050 = vld [vmem:[#allocation6 + $0x300] sm:$0xff]
        %v4051 = vld [vmem:[#allocation6 + $0x308] sm:$0xff]
        %v4052 = vld [vmem:[#allocation6 + $0x310] sm:$0xff]
        %v4053 = vld [vmem:[#allocation6 + $0x318] sm:$0xff]
        %v4054 = vld [vmem:[#allocation6 + $0x320] sm:$0xff]
        %v4055 = vld [vmem:[#allocation6 + $0x328] sm:$0xff]
        %v4056 = vld [vmem:[#allocation6 + $0x330] sm:$0xff]
        %v4057 = vld [vmem:[#allocation6 + $0x338] sm:$0xff]
        %v4058 = vld [vmem:[#allocation6 + $0x340] sm:$0xff]
        %v4059 = vld [vmem:[#allocation6 + $0x348] sm:$0xff]
        %v4060 = vld [vmem:[#allocation6 + $0x350] sm:$0xff]
        %v4061 = vld [vmem:[#allocation6 + $0x358] sm:$0xff]
        %v4062 = vld [vmem:[#allocation6 + $0x360] sm:$0xff]
        %v4063 = vld [vmem:[#allocation6 + $0x368] sm:$0xff]
        %v4064 = vld [vmem:[#allocation6 + $0x370] sm:$0xff]
        %v4065 = vld [vmem:[#allocation6 + $0x378] sm:$0xff]
        %v4066 = vld [vmem:[#allocation6 + $0x380] sm:$0xff]
        %v4067 = vld [vmem:[#allocation6 + $0x388] sm:$0xff]
        %v4068 = vld [vmem:[#allocation6 + $0x390] sm:$0xff]
        %v4069 = vld [vmem:[#allocation6 + $0x398] sm:$0xff]
        %v4070 = vld [vmem:[#allocation6 + $0x3a0] sm:$0xff]
        %v4071 = vld [vmem:[#allocation6 + $0x3a8] sm:$0xff]
        %v4072 = vld [vmem:[#allocation6 + $0x3b0] sm:$0xff]
        %v4073 = vld [vmem:[#allocation6 + $0x3b8] sm:$0xff]
        %v4074 = vld [vmem:[#allocation6 + $0x3c0] sm:$0xff]
        %v4075 = vld [vmem:[#allocation6 + $0x3c8] sm:$0xff]
        %v4076 = vld [vmem:[#allocation6 + $0x3d0] sm:$0xff]
        %v4077 = vld [vmem:[#allocation6 + $0x3d8] sm:$0xff]
        %v4078 = vld [vmem:[#allocation6 + $0x3e0] sm:$0xff]
        %v4079 = vld [vmem:[#allocation6 + $0x3e8] sm:$0xff]
        %v4080 = vld [vmem:[#allocation6 + $0x3f0] sm:$0xff]
        %v4081 = vld [vmem:[#allocation6 + $0x3f8] sm:$0xff]
        %v4082 = vld [vmem:[#allocation7] sm:$0xf]
        %v4084 = vperm.slane %v4082, 0
        %v4085 = vperm.slane %v4082, 1
        %v4086 = vperm.slane %v4082, 2
        %v4087 = vperm.slane %v4082, 3
        %v4220 = vunpack.c.l.b16 %v3954
        %v4221 = vunpack.c.h.b16 %v3954
        %v4222 = vunpack.c.l.b16 %v3955
        %v4223 = vunpack.c.h.b16 %v3955
        %v4224 = vunpack.c.l.b16 %v3956
        %v4225 = vunpack.c.h.b16 %v3956
        %v4226 = vunpack.c.l.b16 %v3957
        %v4227 = vunpack.c.h.b16 %v3957
        %v4228 = vunpack.c.l.b16 %v3958
        %v4229 = vunpack.c.h.b16 %v3958
        %v4230 = vunpack.c.l.b16 %v3959
        %v4231 = vunpack.c.h.b16 %v3959
        %v4232 = vunpack.c.l.b16 %v3960
        %v4233 = vunpack.c.h.b16 %v3960
        %v4234 = vunpack.c.l.b16 %v3961
        %v4235 = vunpack.c.h.b16 %v3961
        %v4236 = vunpack.c.l.b16 %v3962
        %v4237 = vunpack.c.h.b16 %v3962
        %v4238 = vunpack.c.l.b16 %v3963
        %v4239 = vunpack.c.h.b16 %v3963
        %v4240 = vunpack.c.l.b16 %v3964
        %v4241 = vunpack.c.h.b16 %v3964
        %v4242 = vunpack.c.l.b16 %v3965
        %v4243 = vunpack.c.h.b16 %v3965
        %v4244 = vunpack.c.l.b16 %v3966
        %v4245 = vunpack.c.h.b16 %v3966
        %v4246 = vunpack.c.l.b16 %v3967
        %v4247 = vunpack.c.h.b16 %v3967
        %v4248 = vunpack.c.l.b16 %v3968
        %v4249 = vunpack.c.h.b16 %v3968
        %v4250 = vunpack.c.l.b16 %v3969
        %v4251 = vunpack.c.h.b16 %v3969
        %v4252 = vunpack.c.l.b16 %v3970
        %v4253 = vunpack.c.h.b16 %v3970
        %v4254 = vunpack.c.l.b16 %v3971
        %v4255 = vunpack.c.h.b16 %v3971
        %v4256 = vunpack.c.l.b16 %v3972
        %v4257 = vunpack.c.h.b16 %v3972
        %v4258 = vunpack.c.l.b16 %v3973
        %v4259 = vunpack.c.h.b16 %v3973
        %v4260 = vunpack.c.l.b16 %v3974
        %v4261 = vunpack.c.h.b16 %v3974
        %v4262 = vunpack.c.l.b16 %v3975
        %v4263 = vunpack.c.h.b16 %v3975
        %v4264 = vunpack.c.l.b16 %v3976
        %v4265 = vunpack.c.h.b16 %v3976
        %v4266 = vunpack.c.l.b16 %v3977
        %v4267 = vunpack.c.h.b16 %v3977
        %v4268 = vunpack.c.l.b16 %v3978
        %v4269 = vunpack.c.h.b16 %v3978
        %v4270 = vunpack.c.l.b16 %v3979
        %v4271 = vunpack.c.h.b16 %v3979
        %v4272 = vunpack.c.l.b16 %v3980
        %v4273 = vunpack.c.h.b16 %v3980
        %v4274 = vunpack.c.l.b16 %v3981
        %v4275 = vunpack.c.h.b16 %v3981
        %v4276 = vunpack.c.l.b16 %v3982
        %v4277 = vunpack.c.h.b16 %v3982
        %v4278 = vunpack.c.l.b16 %v3983
        %v4279 = vunpack.c.h.b16 %v3983
        %v4280 = vunpack.c.l.b16 %v3984
        %v4281 = vunpack.c.h.b16 %v3984
        %v4282 = vunpack.c.l.b16 %v3985
        %v4283 = vunpack.c.h.b16 %v3985
        %v4284 = vunpack.c.l.b16 %v3986
        %v4285 = vunpack.c.h.b16 %v3986
        %v4286 = vunpack.c.l.b16 %v3987
        %v4287 = vunpack.c.h.b16 %v3987
        %v4288 = vunpack.c.l.b16 %v3988
        %v4289 = vunpack.c.h.b16 %v3988
        %v4290 = vunpack.c.l.b16 %v3989
        %v4291 = vunpack.c.h.b16 %v3989
        %v4292 = vunpack.c.l.b16 %v3990
        %v4293 = vunpack.c.h.b16 %v3990
        %v4294 = vunpack.c.l.b16 %v3991
        %v4295 = vunpack.c.h.b16 %v3991
        %v4296 = vunpack.c.l.b16 %v3992
        %v4297 = vunpack.c.h.b16 %v3992
        %v4298 = vunpack.c.l.b16 %v3993
        %v4299 = vunpack.c.h.b16 %v3993
        %v4300 = vunpack.c.l.b16 %v3994
        %v4301 = vunpack.c.h.b16 %v3994
        %v4302 = vunpack.c.l.b16 %v3995
        %v4303 = vunpack.c.h.b16 %v3995
        %v4304 = vunpack.c.l.b16 %v3996
        %v4305 = vunpack.c.h.b16 %v3996
        %v4306 = vunpack.c.l.b16 %v3997
        %v4307 = vunpack.c.h.b16 %v3997
        %v4308 = vunpack.c.l.b16 %v3998
        %v4309 = vunpack.c.h.b16 %v3998
        %v4310 = vunpack.c.l.b16 %v3999
        %v4311 = vunpack.c.h.b16 %v3999
        %v4312 = vunpack.c.l.b16 %v4000
        %v4313 = vunpack.c.h.b16 %v4000
        %v4314 = vunpack.c.l.b16 %v4001
        %v4315 = vunpack.c.h.b16 %v4001
        %v4316 = vunpack.c.l.b16 %v4002
        %v4317 = vunpack.c.h.b16 %v4002
        %v4318 = vunpack.c.l.b16 %v4003
        %v4319 = vunpack.c.h.b16 %v4003
        %v4320 = vunpack.c.l.b16 %v4004
        %v4321 = vunpack.c.h.b16 %v4004
        %v4322 = vunpack.c.l.b16 %v4005
        %v4323 = vunpack.c.h.b16 %v4005
        %v4324 = vunpack.c.l.b16 %v4006
        %v4325 = vunpack.c.h.b16 %v4006
        %v4326 = vunpack.c.l.b16 %v4007
        %v4327 = vunpack.c.h.b16 %v4007
        %v4328 = vunpack.c.l.b16 %v4008
        %v4329 = vunpack.c.h.b16 %v4008
        %v4330 = vunpack.c.l.b16 %v4009
        %v4331 = vunpack.c.h.b16 %v4009
        %v4332 = vunpack.c.l.b16 %v4010
        %v4333 = vunpack.c.h.b16 %v4010
        %v4334 = vunpack.c.l.b16 %v4011
        %v4335 = vunpack.c.h.b16 %v4011
        %v4336 = vunpack.c.l.b16 %v4012
        %v4337 = vunpack.c.h.b16 %v4012
        %v4338 = vunpack.c.l.b16 %v4013
        %v4339 = vunpack.c.h.b16 %v4013
        %v4340 = vunpack.c.l.b16 %v4014
        %v4341 = vunpack.c.h.b16 %v4014
        %v4342 = vunpack.c.l.b16 %v4015
        %v4343 = vunpack.c.h.b16 %v4015
        %v4344 = vunpack.c.l.b16 %v4016
        %v4345 = vunpack.c.h.b16 %v4016
        %v4346 = vunpack.c.l.b16 %v4017
        %v4347 = vunpack.c.h.b16 %v4017
        %v4348 = vunpack.c.l.b16 %v4018
        %v4349 = vunpack.c.h.b16 %v4018
        %v4350 = vunpack.c.l.b16 %v4019
        %v4351 = vunpack.c.h.b16 %v4019
        %v4352 = vunpack.c.l.b16 %v4020
        %v4353 = vunpack.c.h.b16 %v4020
        %v4354 = vunpack.c.l.b16 %v4021
        %v4355 = vunpack.c.h.b16 %v4021
        %v4356 = vunpack.c.l.b16 %v4022
        %v4357 = vunpack.c.h.b16 %v4022
        %v4358 = vunpack.c.l.b16 %v4023
        %v4359 = vunpack.c.h.b16 %v4023
        %v4360 = vunpack.c.l.b16 %v4024
        %v4361 = vunpack.c.h.b16 %v4024
        %v4362 = vunpack.c.l.b16 %v4025
        %v4363 = vunpack.c.h.b16 %v4025
        %v4364 = vunpack.c.l.b16 %v4026
        %v4365 = vunpack.c.h.b16 %v4026
        %v4366 = vunpack.c.l.b16 %v4027
        %v4367 = vunpack.c.h.b16 %v4027
        %v4368 = vunpack.c.l.b16 %v4028
        %v4369 = vunpack.c.h.b16 %v4028
        %v4370 = vunpack.c.l.b16 %v4029
        %v4371 = vunpack.c.h.b16 %v4029
        %v4372 = vunpack.c.l.b16 %v4030
        %v4373 = vunpack.c.h.b16 %v4030
        %v4374 = vunpack.c.l.b16 %v4031
        %v4375 = vunpack.c.h.b16 %v4031
        %v4376 = vunpack.c.l.b16 %v4032
        %v4377 = vunpack.c.h.b16 %v4032
        %v4378 = vunpack.c.l.b16 %v4033
        %v4379 = vunpack.c.h.b16 %v4033
        %v4380 = vunpack.c.l.b16 %v4034
        %v4381 = vunpack.c.h.b16 %v4034
        %v4382 = vunpack.c.l.b16 %v4035
        %v4383 = vunpack.c.h.b16 %v4035
        %v4384 = vunpack.c.l.b16 %v4036
        %v4385 = vunpack.c.h.b16 %v4036
        %v4386 = vunpack.c.l.b16 %v4037
        %v4387 = vunpack.c.h.b16 %v4037
        %v4388 = vunpack.c.l.b16 %v4038
        %v4389 = vunpack.c.h.b16 %v4038
        %v4390 = vunpack.c.l.b16 %v4039
        %v4391 = vunpack.c.h.b16 %v4039
        %v4392 = vunpack.c.l.b16 %v4040
        %v4393 = vunpack.c.h.b16 %v4040
        %v4394 = vunpack.c.l.b16 %v4041
        %v4395 = vunpack.c.h.b16 %v4041
        %v4396 = vunpack.c.l.b16 %v4042
        %v4397 = vunpack.c.h.b16 %v4042
        %v4398 = vunpack.c.l.b16 %v4043
        %v4399 = vunpack.c.h.b16 %v4043
        %v4400 = vunpack.c.l.b16 %v4044
        %v4401 = vunpack.c.h.b16 %v4044
        %v4402 = vunpack.c.l.b16 %v4045
        %v4403 = vunpack.c.h.b16 %v4045
        %v4404 = vunpack.c.l.b16 %v4046
        %v4405 = vunpack.c.h.b16 %v4046
        %v4406 = vunpack.c.l.b16 %v4047
        %v4407 = vunpack.c.h.b16 %v4047
        %v4408 = vunpack.c.l.b16 %v4048
        %v4409 = vunpack.c.h.b16 %v4048
        %v4410 = vunpack.c.l.b16 %v4049
        %v4411 = vunpack.c.h.b16 %v4049
        %v4412 = vunpack.c.l.b16 %v4050
        %v4413 = vunpack.c.h.b16 %v4050
        %v4414 = vunpack.c.l.b16 %v4051
        %v4415 = vunpack.c.h.b16 %v4051
        %v4416 = vunpack.c.l.b16 %v4052
        %v4417 = vunpack.c.h.b16 %v4052
        %v4418 = vunpack.c.l.b16 %v4053
        %v4419 = vunpack.c.h.b16 %v4053
        %v4420 = vunpack.c.l.b16 %v4054
        %v4421 = vunpack.c.h.b16 %v4054
        %v4422 = vunpack.c.l.b16 %v4055
        %v4423 = vunpack.c.h.b16 %v4055
        %v4424 = vunpack.c.l.b16 %v4056
        %v4425 = vunpack.c.h.b16 %v4056
        %v4426 = vunpack.c.l.b16 %v4057
        %v4427 = vunpack.c.h.b16 %v4057
        %v4428 = vunpack.c.l.b16 %v4058
        %v4429 = vunpack.c.h.b16 %v4058
        %v4430 = vunpack.c.l.b16 %v4059
        %v4431 = vunpack.c.h.b16 %v4059
        %v4432 = vunpack.c.l.b16 %v4060
        %v4433 = vunpack.c.h.b16 %v4060
        %v4434 = vunpack.c.l.b16 %v4061
        %v4435 = vunpack.c.h.b16 %v4061
        %v4436 = vunpack.c.l.b16 %v4062
        %v4437 = vunpack.c.h.b16 %v4062
        %v4438 = vunpack.c.l.b16 %v4063
        %v4439 = vunpack.c.h.b16 %v4063
        %v4440 = vunpack.c.l.b16 %v4064
        %v4441 = vunpack.c.h.b16 %v4064
        %v4442 = vunpack.c.l.b16 %v4065
        %v4443 = vunpack.c.h.b16 %v4065
        %v4444 = vunpack.c.l.b16 %v4066
        %v4445 = vunpack.c.h.b16 %v4066
        %v4446 = vunpack.c.l.b16 %v4067
        %v4447 = vunpack.c.h.b16 %v4067
        %v4448 = vunpack.c.l.b16 %v4068
        %v4449 = vunpack.c.h.b16 %v4068
        %v4450 = vunpack.c.l.b16 %v4069
        %v4451 = vunpack.c.h.b16 %v4069
        %v4452 = vunpack.c.l.b16 %v4070
        %v4453 = vunpack.c.h.b16 %v4070
        %v4454 = vunpack.c.l.b16 %v4071
        %v4455 = vunpack.c.h.b16 %v4071
        %v4456 = vunpack.c.l.b16 %v4072
        %v4457 = vunpack.c.h.b16 %v4072
        %v4458 = vunpack.c.l.b16 %v4073
        %v4459 = vunpack.c.h.b16 %v4073
        %v4460 = vunpack.c.l.b16 %v4074
        %v4461 = vunpack.c.h.b16 %v4074
        %v4462 = vunpack.c.l.b16 %v4075
        %v4463 = vunpack.c.h.b16 %v4075
        %v4464 = vunpack.c.l.b16 %v4076
        %v4465 = vunpack.c.h.b16 %v4076
        %v4466 = vunpack.c.l.b16 %v4077
        %v4467 = vunpack.c.h.b16 %v4077
        %v4468 = vunpack.c.l.b16 %v4078
        %v4469 = vunpack.c.h.b16 %v4078
        %v4470 = vunpack.c.l.b16 %v4079
        %v4471 = vunpack.c.h.b16 %v4079
        %v4472 = vunpack.c.l.b16 %v4080
        %v4473 = vunpack.c.h.b16 %v4080
        %v4474 = vunpack.c.l.b16 %v4081
        %v4475 = vunpack.c.h.b16 %v4081
        %v4476 = vpack.c.b16 %v4224, %v4220
        %v4477 = vpack.c.b16 %v4225, %v4221
        %v4478 = vpack.c.b16 %v4226, %v4222
        %v4479 = vpack.c.b16 %v4227, %v4223
        %v4480 = vpack.c.b16 %v4232, %v4228
        %v4481 = vpack.c.b16 %v4233, %v4229
        %v4482 = vpack.c.b16 %v4234, %v4230
        %v4483 = vpack.c.b16 %v4235, %v4231
        %v4484 = vpack.c.b16 %v4240, %v4236
        %v4485 = vpack.c.b16 %v4241, %v4237
        %v4486 = vpack.c.b16 %v4242, %v4238
        %v4487 = vpack.c.b16 %v4243, %v4239
        %v4488 = vpack.c.b16 %v4248, %v4244
        %v4489 = vpack.c.b16 %v4249, %v4245
        %v4490 = vpack.c.b16 %v4250, %v4246
        %v4491 = vpack.c.b16 %v4251, %v4247
        %v4492 = vpack.c.b16 %v4256, %v4252
        %v4493 = vpack.c.b16 %v4257, %v4253
        %v4494 = vpack.c.b16 %v4258, %v4254
        %v4495 = vpack.c.b16 %v4259, %v4255
        %v4496 = vpack.c.b16 %v4264, %v4260
        %v4497 = vpack.c.b16 %v4265, %v4261
        %v4498 = vpack.c.b16 %v4266, %v4262
        %v4499 = vpack.c.b16 %v4267, %v4263
        %v4500 = vpack.c.b16 %v4272, %v4268
        %v4501 = vpack.c.b16 %v4273, %v4269
        %v4502 = vpack.c.b16 %v4274, %v4270
        %v4503 = vpack.c.b16 %v4275, %v4271
        %v4504 = vpack.c.b16 %v4280, %v4276
        %v4505 = vpack.c.b16 %v4281, %v4277
        %v4506 = vpack.c.b16 %v4282, %v4278
        %v4507 = vpack.c.b16 %v4283, %v4279
        %v4508 = vpack.c.b16 %v4288, %v4284
        %v4509 = vpack.c.b16 %v4289, %v4285
        %v4510 = vpack.c.b16 %v4290, %v4286
        %v4511 = vpack.c.b16 %v4291, %v4287
        %v4512 = vpack.c.b16 %v4296, %v4292
        %v4513 = vpack.c.b16 %v4297, %v4293
        %v4514 = vpack.c.b16 %v4298, %v4294
        %v4515 = vpack.c.b16 %v4299, %v4295
        %v4516 = vpack.c.b16 %v4304, %v4300
        %v4517 = vpack.c.b16 %v4305, %v4301
        %v4518 = vpack.c.b16 %v4306, %v4302
        %v4519 = vpack.c.b16 %v4307, %v4303
        %v4520 = vpack.c.b16 %v4312, %v4308
        %v4521 = vpack.c.b16 %v4313, %v4309
        %v4522 = vpack.c.b16 %v4314, %v4310
        %v4523 = vpack.c.b16 %v4315, %v4311
        %v4524 = vpack.c.b16 %v4320, %v4316
        %v4525 = vpack.c.b16 %v4321, %v4317
        %v4526 = vpack.c.b16 %v4322, %v4318
        %v4527 = vpack.c.b16 %v4323, %v4319
        %v4528 = vpack.c.b16 %v4328, %v4324
        %v4529 = vpack.c.b16 %v4329, %v4325
        %v4530 = vpack.c.b16 %v4330, %v4326
        %v4531 = vpack.c.b16 %v4331, %v4327
        %v4532 = vpack.c.b16 %v4336, %v4332
        %v4533 = vpack.c.b16 %v4337, %v4333
        %v4534 = vpack.c.b16 %v4338, %v4334
        %v4535 = vpack.c.b16 %v4339, %v4335
        %v4536 = vpack.c.b16 %v4344, %v4340
        %v4537 = vpack.c.b16 %v4345, %v4341
        %v4538 = vpack.c.b16 %v4346, %v4342
        %v4539 = vpack.c.b16 %v4347, %v4343
        %v4540 = vpack.c.b16 %v4352, %v4348
        %v4541 = vpack.c.b16 %v4353, %v4349
        %v4542 = vpack.c.b16 %v4354, %v4350
        %v4543 = vpack.c.b16 %v4355, %v4351
        %v4544 = vpack.c.b16 %v4360, %v4356
        %v4545 = vpack.c.b16 %v4361, %v4357
        %v4546 = vpack.c.b16 %v4362, %v4358
        %v4547 = vpack.c.b16 %v4363, %v4359
        %v4548 = vpack.c.b16 %v4368, %v4364
        %v4549 = vpack.c.b16 %v4369, %v4365
        %v4550 = vpack.c.b16 %v4370, %v4366
        %v4551 = vpack.c.b16 %v4371, %v4367
        %v4552 = vpack.c.b16 %v4376, %v4372
        %v4553 = vpack.c.b16 %v4377, %v4373
        %v4554 = vpack.c.b16 %v4378, %v4374
        %v4555 = vpack.c.b16 %v4379, %v4375
        %v4556 = vpack.c.b16 %v4384, %v4380
        %v4557 = vpack.c.b16 %v4385, %v4381
        %v4558 = vpack.c.b16 %v4386, %v4382
        %v4559 = vpack.c.b16 %v4387, %v4383
        %v4560 = vpack.c.b16 %v4392, %v4388
        %v4561 = vpack.c.b16 %v4393, %v4389
        %v4562 = vpack.c.b16 %v4394, %v4390
        %v4563 = vpack.c.b16 %v4395, %v4391
        %v4564 = vpack.c.b16 %v4400, %v4396
        %v4565 = vpack.c.b16 %v4401, %v4397
        %v4566 = vpack.c.b16 %v4402, %v4398
        %v4567 = vpack.c.b16 %v4403, %v4399
        %v4568 = vpack.c.b16 %v4408, %v4404
        %v4569 = vpack.c.b16 %v4409, %v4405
        %v4570 = vpack.c.b16 %v4410, %v4406
        %v4571 = vpack.c.b16 %v4411, %v4407
        %v4572 = vpack.c.b16 %v4416, %v4412
        %v4573 = vpack.c.b16 %v4417, %v4413
        %v4574 = vpack.c.b16 %v4418, %v4414
        %v4575 = vpack.c.b16 %v4419, %v4415
        %v4576 = vpack.c.b16 %v4424, %v4420
        %v4577 = vpack.c.b16 %v4425, %v4421
        %v4578 = vpack.c.b16 %v4426, %v4422
        %v4579 = vpack.c.b16 %v4427, %v4423
        %v4580 = vpack.c.b16 %v4432, %v4428
        %v4581 = vpack.c.b16 %v4433, %v4429
        %v4582 = vpack.c.b16 %v4434, %v4430
        %v4583 = vpack.c.b16 %v4435, %v4431
        %v4584 = vpack.c.b16 %v4440, %v4436
        %v4585 = vpack.c.b16 %v4441, %v4437
        %v4586 = vpack.c.b16 %v4442, %v4438
        %v4587 = vpack.c.b16 %v4443, %v4439
        %v4588 = vpack.c.b16 %v4448, %v4444
        %v4589 = vpack.c.b16 %v4449, %v4445
        %v4590 = vpack.c.b16 %v4450, %v4446
        %v4591 = vpack.c.b16 %v4451, %v4447
        %v4592 = vpack.c.b16 %v4456, %v4452
        %v4593 = vpack.c.b16 %v4457, %v4453
        %v4594 = vpack.c.b16 %v4458, %v4454
        %v4595 = vpack.c.b16 %v4459, %v4455
        %v4596 = vpack.c.b16 %v4464, %v4460
        %v4597 = vpack.c.b16 %v4465, %v4461
        %v4598 = vpack.c.b16 %v4466, %v4462
        %v4599 = vpack.c.b16 %v4467, %v4463
        %v4600 = vpack.c.b16 %v4472, %v4468
        %v4601 = vpack.c.b16 %v4473, %v4469
        %v4602 = vpack.c.b16 %v4474, %v4470
        %v4603 = vpack.c.b16 %v4475, %v4471
        %4732 = vmatpush.bf16.msra.mxu0 %v4504
        %4733 = vmatpush.bf16.msra.mxu0 %v4500
        %4734 = vmatpush.bf16.msra.mxu0 %v4496
        %4735 = vmatpush.bf16.msra.mxu0 %v4492
        %4736 = vmatpush.bf16.msra.mxu0 %v4488
        %4737 = vmatpush.bf16.msra.mxu0 %v4484
        %4738 = vmatpush.bf16.msra.mxu0 %v4480
        %4739 = vmatpush.bf16.msra.mxu0 %v4476
        %4740 = vmatmul.bf16.gmra.mxu0 %v3946
        %v4741 = vpop.f32.mrf.mxu0
        %v4742 = vadd.f32 %v4084, %v4741
        %v4743 = vpop.f32.mrf.mxu0
        %v4744 = vadd.f32 %v4084, %v4743
        %4745 = vmatmul.bf16.gmra.mxu0 %v3950
        %v4746 = vpop.f32.mrf.mxu0
        %v4747 = vadd.f32 %v4084, %v4746
        %v4748 = vpop.f32.mrf.mxu0
        %v4749 = vadd.f32 %v4084, %v4748
        %4750 = vdwg.mxu0
        %4751 = vmatpush.bf16.msra.mxu0 %v4536
        %4752 = vmatpush.bf16.msra.mxu0 %v4532
        %4753 = vmatpush.bf16.msra.mxu0 %v4528
        %4754 = vmatpush.bf16.msra.mxu0 %v4524
        %4755 = vmatpush.bf16.msra.mxu0 %v4520
        %4756 = vmatpush.bf16.msra.mxu0 %v4516
        %4757 = vmatpush.bf16.msra.mxu0 %v4512
        %4758 = vmatpush.bf16.msra.mxu0 %v4508
        %4759 = vmatmul.bf16.gmra.mxu0 %v3947
        %v4760 = vpop.f32.mrf.mxu0
        %v4761 = vadd.f32 %v4742, %v4760
        %v4762 = vpop.f32.mrf.mxu0
        %v4763 = vadd.f32 %v4744, %v4762
        %4764 = vmatmul.bf16.gmra.mxu0 %v3951
        %v4765 = vpop.f32.mrf.mxu0
        %v4766 = vadd.f32 %v4747, %v4765
        %v4767 = vpop.f32.mrf.mxu0
        %v4768 = vadd.f32 %v4749, %v4767
        %4769 = vdwg.mxu0
        %4770 = vmatpush.bf16.msra.mxu0 %v4568
        %4771 = vmatpush.bf16.msra.mxu0 %v4564
        %4772 = vmatpush.bf16.msra.mxu0 %v4560
        %4773 = vmatpush.bf16.msra.mxu0 %v4556
        %4774 = vmatpush.bf16.msra.mxu0 %v4552
        %4775 = vmatpush.bf16.msra.mxu0 %v4548
        %4776 = vmatpush.bf16.msra.mxu0 %v4544
        %4777 = vmatpush.bf16.msra.mxu0 %v4540
        %4778 = vmatmul.bf16.gmra.mxu0 %v3948
        %v4779 = vpop.f32.mrf.mxu0
        %v4780 = vadd.f32 %v4761, %v4779
        %v4781 = vpop.f32.mrf.mxu0
        %v4782 = vadd.f32 %v4763, %v4781
        %4783 = vmatmul.bf16.gmra.mxu0 %v3952
        %v4784 = vpop.f32.mrf.mxu0
        %v4785 = vadd.f32 %v4766, %v4784
        %v4786 = vpop.f32.mrf.mxu0
        %v4787 = vadd.f32 %v4768, %v4786
        %4788 = vdwg.mxu0
        %4789 = vmatpush.bf16.msra.mxu0 %v4600
        %4790 = vmatpush.bf16.msra.mxu0 %v4596
        %4791 = vmatpush.bf16.msra.mxu0 %v4592
        %4792 = vmatpush.bf16.msra.mxu0 %v4588
        %4793 = vmatpush.bf16.msra.mxu0 %v4584
        %4794 = vmatpush.bf16.msra.mxu0 %v4580
        %4795 = vmatpush.bf16.msra.mxu0 %v4576
        %4796 = vmatpush.bf16.msra.mxu0 %v4572
        %4797 = vmatmul.bf16.gmra.mxu0 %v3949
        %v4798 = vpop.f32.mrf.mxu0
        %v4799 = vadd.f32 %v4780, %v4798
        %v4800 = vpop.f32.mrf.mxu0
        %v4801 = vadd.f32 %v4782, %v4800
        %4802 = vmatmul.bf16.gmra.mxu0 %v3953
        %v4803 = vpop.f32.mrf.mxu0
        %v4804 = vadd.f32 %v4785, %v4803
        %v4805 = vpop.f32.mrf.mxu0
        %v4806 = vadd.f32 %v4787, %v4805
        %4807 = vdwg.mxu0
        %4808 = vmatpush.bf16.msra.mxu0 %v4505
        %4809 = vmatpush.bf16.msra.mxu0 %v4501
        %4810 = vmatpush.bf16.msra.mxu0 %v4497
        %4811 = vmatpush.bf16.msra.mxu0 %v4493
        %4812 = vmatpush.bf16.msra.mxu0 %v4489
        %4813 = vmatpush.bf16.msra.mxu0 %v4485
        %4814 = vmatpush.bf16.msra.mxu0 %v4481
        %4815 = vmatpush.bf16.msra.mxu0 %v4477
        %4816 = vmatmul.bf16.gmra.mxu0 %v3946
        %v4817 = vpop.f32.mrf.mxu0
        %v4818 = vadd.f32 %v4085, %v4817
        %v4819 = vpop.f32.mrf.mxu0
        %v4820 = vadd.f32 %v4085, %v4819
        %4821 = vmatmul.bf16.gmra.mxu0 %v3950
        %v4822 = vpop.f32.mrf.mxu0
        %v4823 = vadd.f32 %v4085, %v4822
        %v4824 = vpop.f32.mrf.mxu0
        %v4825 = vadd.f32 %v4085, %v4824
        %4826 = vdwg.mxu0
        %4827 = vmatpush.bf16.msra.mxu0 %v4537
        %4828 = vmatpush.bf16.msra.mxu0 %v4533
        %4829 = vmatpush.bf16.msra.mxu0 %v4529
        %4830 = vmatpush.bf16.msra.mxu0 %v4525
        %4831 = vmatpush.bf16.msra.mxu0 %v4521
        %4832 = vmatpush.bf16.msra.mxu0 %v4517
        %4833 = vmatpush.bf16.msra.mxu0 %v4513
        %4834 = vmatpush.bf16.msra.mxu0 %v4509
        %4835 = vmatmul.bf16.gmra.mxu0 %v3947
        %v4836 = vpop.f32.mrf.mxu0
        %v4837 = vadd.f32 %v4818, %v4836
        %v4838 = vpop.f32.mrf.mxu0
        %v4839 = vadd.f32 %v4820, %v4838
        %4840 = vmatmul.bf16.gmra.mxu0 %v3951
        %v4841 = vpop.f32.mrf.mxu0
        %v4842 = vadd.f32 %v4823, %v4841
        %v4843 = vpop.f32.mrf.mxu0
        %v4844 = vadd.f32 %v4825, %v4843
        %4845 = vdwg.mxu0
        %4846 = vmatpush.bf16.msra.mxu0 %v4569
        %4847 = vmatpush.bf16.msra.mxu0 %v4565
        %4848 = vmatpush.bf16.msra.mxu0 %v4561
        %4849 = vmatpush.bf16.msra.mxu0 %v4557
        %4850 = vmatpush.bf16.msra.mxu0 %v4553
        %4851 = vmatpush.bf16.msra.mxu0 %v4549
        %4852 = vmatpush.bf16.msra.mxu0 %v4545
        %4853 = vmatpush.bf16.msra.mxu0 %v4541
        %4854 = vmatmul.bf16.gmra.mxu0 %v3948
        %v4855 = vpop.f32.mrf.mxu0
        %v4856 = vadd.f32 %v4837, %v4855
        %v4857 = vpop.f32.mrf.mxu0
        %v4858 = vadd.f32 %v4839, %v4857
        %4859 = vmatmul.bf16.gmra.mxu0 %v3952
        %v4860 = vpop.f32.mrf.mxu0
        %v4861 = vadd.f32 %v4842, %v4860
        %v4862 = vpop.f32.mrf.mxu0
        %v4863 = vadd.f32 %v4844, %v4862
        %4864 = vdwg.mxu0
        %4865 = vmatpush.bf16.msra.mxu0 %v4601
        %4866 = vmatpush.bf16.msra.mxu0 %v4597
        %4867 = vmatpush.bf16.msra.mxu0 %v4593
        %4868 = vmatpush.bf16.msra.mxu0 %v4589
        %4869 = vmatpush.bf16.msra.mxu0 %v4585
        %4870 = vmatpush.bf16.msra.mxu0 %v4581
        %4871 = vmatpush.bf16.msra.mxu0 %v4577
        %4872 = vmatpush.bf16.msra.mxu0 %v4573
        %4873 = vmatmul.bf16.gmra.mxu0 %v3949
        %v4874 = vpop.f32.mrf.mxu0
        %v4875 = vadd.f32 %v4856, %v4874
        %v4876 = vpop.f32.mrf.mxu0
        %v4877 = vadd.f32 %v4858, %v4876
        %4878 = vmatmul.bf16.gmra.mxu0 %v3953
        %v4879 = vpop.f32.mrf.mxu0
        %v4880 = vadd.f32 %v4861, %v4879
        %v4881 = vpop.f32.mrf.mxu0
        %v4882 = vadd.f32 %v4863, %v4881
        %4883 = vdwg.mxu0
        %4884 = vmatpush.bf16.msra.mxu0 %v4506
        %4885 = vmatpush.bf16.msra.mxu0 %v4502
        %4886 = vmatpush.bf16.msra.mxu0 %v4498
        %4887 = vmatpush.bf16.msra.mxu0 %v4494
        %4888 = vmatpush.bf16.msra.mxu0 %v4490
        %4889 = vmatpush.bf16.msra.mxu0 %v4486
        %4890 = vmatpush.bf16.msra.mxu0 %v4482
        %4891 = vmatpush.bf16.msra.mxu0 %v4478
        %4892 = vmatmul.bf16.gmra.mxu0 %v3946
        %v4893 = vpop.f32.mrf.mxu0
        %v4894 = vadd.f32 %v4086, %v4893
        %v4895 = vpop.f32.mrf.mxu0
        %v4896 = vadd.f32 %v4086, %v4895
        %4897 = vmatmul.bf16.gmra.mxu0 %v3950
        %v4898 = vpop.f32.mrf.mxu0
        %v4899 = vadd.f32 %v4086, %v4898
        %v4900 = vpop.f32.mrf.mxu0
        %v4901 = vadd.f32 %v4086, %v4900
        %4902 = vdwg.mxu0
        %4903 = vmatpush.bf16.msra.mxu0 %v4538
        %4904 = vmatpush.bf16.msra.mxu0 %v4534
        %4905 = vmatpush.bf16.msra.mxu0 %v4530
        %4906 = vmatpush.bf16.msra.mxu0 %v4526
        %4907 = vmatpush.bf16.msra.mxu0 %v4522
        %4908 = vmatpush.bf16.msra.mxu0 %v4518
        %4909 = vmatpush.bf16.msra.mxu0 %v4514
        %4910 = vmatpush.bf16.msra.mxu0 %v4510
        %4911 = vmatmul.bf16.gmra.mxu0 %v3947
        %v4912 = vpop.f32.mrf.mxu0
        %v4913 = vadd.f32 %v4894, %v4912
        %v4914 = vpop.f32.mrf.mxu0
        %v4915 = vadd.f32 %v4896, %v4914
        %4916 = vmatmul.bf16.gmra.mxu0 %v3951
        %v4917 = vpop.f32.mrf.mxu0
        %v4918 = vadd.f32 %v4899, %v4917
        %v4919 = vpop.f32.mrf.mxu0
        %v4920 = vadd.f32 %v4901, %v4919
        %4921 = vdwg.mxu0
        %4922 = vmatpush.bf16.msra.mxu0 %v4570
        %4923 = vmatpush.bf16.msra.mxu0 %v4566
        %4924 = vmatpush.bf16.msra.mxu0 %v4562
        %4925 = vmatpush.bf16.msra.mxu0 %v4558
        %4926 = vmatpush.bf16.msra.mxu0 %v4554
        %4927 = vmatpush.bf16.msra.mxu0 %v4550
        %4928 = vmatpush.bf16.msra.mxu0 %v4546
        %4929 = vmatpush.bf16.msra.mxu0 %v4542
        %4930 = vmatmul.bf16.gmra.mxu0 %v3948
        %v4931 = vpop.f32.mrf.mxu0
        %v4932 = vadd.f32 %v4913, %v4931
        %v4933 = vpop.f32.mrf.mxu0
        %v4934 = vadd.f32 %v4915, %v4933
        %4935 = vmatmul.bf16.gmra.mxu0 %v3952
        %v4936 = vpop.f32.mrf.mxu0
        %v4937 = vadd.f32 %v4918, %v4936
        %v4938 = vpop.f32.mrf.mxu0
        %v4939 = vadd.f32 %v4920, %v4938
        %4940 = vdwg.mxu0
        %4941 = vmatpush.bf16.msra.mxu0 %v4602
        %4942 = vmatpush.bf16.msra.mxu0 %v4598
        %4943 = vmatpush.bf16.msra.mxu0 %v4594
        %4944 = vmatpush.bf16.msra.mxu0 %v4590
        %4945 = vmatpush.bf16.msra.mxu0 %v4586
        %4946 = vmatpush.bf16.msra.mxu0 %v4582
        %4947 = vmatpush.bf16.msra.mxu0 %v4578
        %4948 = vmatpush.bf16.msra.mxu0 %v4574
        %4949 = vmatmul.bf16.gmra.mxu0 %v3949
        %v4950 = vpop.f32.mrf.mxu0
        %v4951 = vadd.f32 %v4932, %v4950
        %v4952 = vpop.f32.mrf.mxu0
        %v4953 = vadd.f32 %v4934, %v4952
        %4954 = vmatmul.bf16.gmra.mxu0 %v3953
        %v4955 = vpop.f32.mrf.mxu0
        %v4956 = vadd.f32 %v4937, %v4955
        %v4957 = vpop.f32.mrf.mxu0
        %v4958 = vadd.f32 %v4939, %v4957
        %4959 = vdwg.mxu0
        %4960 = vmatpush.bf16.msra.mxu0 %v4507
        %4961 = vmatpush.bf16.msra.mxu0 %v4503
        %4962 = vmatpush.bf16.msra.mxu0 %v4499
        %4963 = vmatpush.bf16.msra.mxu0 %v4495
        %4964 = vmatpush.bf16.msra.mxu0 %v4491
        %4965 = vmatpush.bf16.msra.mxu0 %v4487
        %4966 = vmatpush.bf16.msra.mxu0 %v4483
        %4967 = vmatpush.bf16.msra.mxu0 %v4479
        %4968 = vmatmul.bf16.gmra.mxu0 %v3946
        %v4969 = vpop.f32.mrf.mxu0
        %v4970 = vadd.f32 %v4087, %v4969
        %v4971 = vpop.f32.mrf.mxu0
        %v4972 = vadd.f32 %v4087, %v4971
        %4973 = vmatmul.bf16.gmra.mxu0 %v3950
        %v4974 = vpop.f32.mrf.mxu0
        %v4975 = vadd.f32 %v4087, %v4974
        %v4976 = vpop.f32.mrf.mxu0
        %v4977 = vadd.f32 %v4087, %v4976
        %4978 = vdwg.mxu0
        %4979 = vmatpush.bf16.msra.mxu0 %v4539
        %4980 = vmatpush.bf16.msra.mxu0 %v4535
        %4981 = vmatpush.bf16.msra.mxu0 %v4531
        %4982 = vmatpush.bf16.msra.mxu0 %v4527
        %4983 = vmatpush.bf16.msra.mxu0 %v4523
        %4984 = vmatpush.bf16.msra.mxu0 %v4519
        %4985 = vmatpush.bf16.msra.mxu0 %v4515
        %4986 = vmatpush.bf16.msra.mxu0 %v4511
        %4987 = vmatmul.bf16.gmra.mxu0 %v3947
        %v4988 = vpop.f32.mrf.mxu0
        %v4989 = vadd.f32 %v4970, %v4988
        %v4990 = vpop.f32.mrf.mxu0
        %v4991 = vadd.f32 %v4972, %v4990
        %4992 = vmatmul.bf16.gmra.mxu0 %v3951
        %v4993 = vpop.f32.mrf.mxu0
        %v4994 = vadd.f32 %v4975, %v4993
        %v4995 = vpop.f32.mrf.mxu0
        %v4996 = vadd.f32 %v4977, %v4995
        %4997 = vdwg.mxu0
        %4998 = vmatpush.bf16.msra.mxu0 %v4571
        %4999 = vmatpush.bf16.msra.mxu0 %v4567
        %5000 = vmatpush.bf16.msra.mxu0 %v4563
        %5001 = vmatpush.bf16.msra.mxu0 %v4559
        %5002 = vmatpush.bf16.msra.mxu0 %v4555
        %5003 = vmatpush.bf16.msra.mxu0 %v4551
        %5004 = vmatpush.bf16.msra.mxu0 %v4547
        %5005 = vmatpush.bf16.msra.mxu0 %v4543
        %5006 = vmatmul.bf16.gmra.mxu0 %v3948
        %v5007 = vpop.f32.mrf.mxu0
        %v5008 = vadd.f32 %v4989, %v5007
        %v5009 = vpop.f32.mrf.mxu0
        %v5010 = vadd.f32 %v4991, %v5009
        %5011 = vmatmul.bf16.gmra.mxu0 %v3952
        %v5012 = vpop.f32.mrf.mxu0
        %v5013 = vadd.f32 %v4994, %v5012
        %v5014 = vpop.f32.mrf.mxu0
        %v5015 = vadd.f32 %v4996, %v5014
        %5016 = vdwg.mxu0
        %5017 = vmatpush.bf16.msra.mxu0 %v4603
        %5018 = vmatpush.bf16.msra.mxu0 %v4599
        %5019 = vmatpush.bf16.msra.mxu0 %v4595
        %5020 = vmatpush.bf16.msra.mxu0 %v4591
        %5021 = vmatpush.bf16.msra.mxu0 %v4587
        %5022 = vmatpush.bf16.msra.mxu0 %v4583
        %5023 = vmatpush.bf16.msra.mxu0 %v4579
        %5024 = vmatpush.bf16.msra.mxu0 %v4575
        %5025 = vmatmul.bf16.gmra.mxu0 %v3949
        %v5026 = vpop.f32.mrf.mxu0
        %v5027 = vadd.f32 %v5008, %v5026
        %v5028 = vpop.f32.mrf.mxu0
        %v5029 = vadd.f32 %v5010, %v5028
        %5030 = vmatmul.bf16.gmra.mxu0 %v3953
        %v5031 = vpop.f32.mrf.mxu0
        %v5032 = vadd.f32 %v5013, %v5031
        %v5033 = vpop.f32.mrf.mxu0
        %v5034 = vadd.f32 %v5015, %v5033
        %5035 = vdwg.mxu0
        %v5036 = vadd.f32 %v4799, %v371
        %v5037 = vadd.f32 %v4875, %v372
        %v5038 = vadd.f32 %v4951, %v373
        %v5039 = vadd.f32 %v5027, %v374
        %v5040 = vadd.f32 %v4801, %v375
        %v5041 = vadd.f32 %v4877, %v376
        %v5042 = vadd.f32 %v4953, %v377
        %v5043 = vadd.f32 %v5029, %v378
        %v5044 = vadd.f32 %v4804, %v379
        %v5045 = vadd.f32 %v4880, %v380
        %v5046 = vadd.f32 %v4956, %v381
        %v5047 = vadd.f32 %v5032, %v382
        %v5048 = vadd.f32 %v4806, %v383
        %v5049 = vadd.f32 %v4882, %v384
        %v5050 = vadd.f32 %v4958, %v385
        %v5051 = vadd.f32 %v5034, %v386
        %v5052 = vadd.f32 %v5036, %v5037
        %v5053 = vadd.f32 %v5052, %v5038
        %v5054 = vadd.f32 %v5053, %v5039
        %5055 = vadd.xlane.f32.xlu0 %v5054
        %v5056 = vpop.xlane.xlu0 %5055
        %v5057 = vadd.f32 %v5040, %v5041
        %v5058 = vadd.f32 %v5057, %v5042
        %v5059 = vadd.f32 %v5058, %v5043
        %5060 = vadd.xlane.f32.xlu0 %v5059
        %v5061 = vpop.xlane.xlu0 %5060
        %v5062 = vadd.f32 %v5044, %v5045
        %v5063 = vadd.f32 %v5062, %v5046
        %v5064 = vadd.f32 %v5063, %v5047
        %5065 = vadd.xlane.f32.xlu0 %v5064
        %v5066 = vpop.xlane.xlu0 %5065
        %v5067 = vsel %vm3817, %v5048, 0.0
        %v5068 = vsel %vm3817, %v5049, 0.0
        %v5069 = vadd.f32 %v5067, %v5068
        %v5070 = vsel %vm3817, %v5050, 0.0
        %v5071 = vadd.f32 %v5069, %v5070
        %v5072 = vsel %vm3817, %v5051, 0.0
        %v5073 = vadd.f32 %v5071, %v5072
        %5074 = vadd.xlane.f32.xlu0 %v5073
        %v5075 = vpop.xlane.xlu0 %5074
        %v5076 = vmul.f32 %v5056, 0.0020661156
        %v5077 = vmul.f32 %v5061, 0.0020661156
        %v5078 = vmul.f32 %v5066, 0.0020661156
        %v5079 = vmul.f32 %v5075, 0.0020661156
        %v5080 = vmul.f32 %v5036, %v5036
        %v5081 = vmul.f32 %v5037, %v5037
        %v5082 = vmul.f32 %v5038, %v5038
        %v5083 = vmul.f32 %v5039, %v5039
        %v5084 = vmul.f32 %v5040, %v5040
        %v5085 = vmul.f32 %v5041, %v5041
        %v5086 = vmul.f32 %v5042, %v5042
        %v5087 = vmul.f32 %v5043, %v5043
        %v5088 = vmul.f32 %v5044, %v5044
        %v5089 = vmul.f32 %v5045, %v5045
        %v5090 = vmul.f32 %v5046, %v5046
        %v5091 = vmul.f32 %v5047, %v5047
        %v5092 = vmul.f32 %v5048, %v5048
        %v5093 = vmul.f32 %v5049, %v5049
        %v5094 = vmul.f32 %v5050, %v5050
        %v5095 = vmul.f32 %v5051, %v5051
        %v5096 = vadd.f32 %v5080, %v5081
        %v5097 = vadd.f32 %v5096, %v5082
        %v5098 = vadd.f32 %v5097, %v5083
        %5099 = vadd.xlane.f32.xlu0 %v5098
        %v5100 = vpop.xlane.xlu0 %5099
        %v5101 = vadd.f32 %v5084, %v5085
        %v5102 = vadd.f32 %v5101, %v5086
        %v5103 = vadd.f32 %v5102, %v5087
        %5104 = vadd.xlane.f32.xlu0 %v5103
        %v5105 = vpop.xlane.xlu0 %5104
        %v5106 = vadd.f32 %v5088, %v5089
        %v5107 = vadd.f32 %v5106, %v5090
        %v5108 = vadd.f32 %v5107, %v5091
        %5109 = vadd.xlane.f32.xlu0 %v5108
        %v5110 = vpop.xlane.xlu0 %5109
        %v5111 = vsel %vm3817, %v5092, 0.0
        %v5112 = vsel %vm3817, %v5093, 0.0
        %v5113 = vadd.f32 %v5111, %v5112
        %v5114 = vsel %vm3817, %v5094, 0.0
        %v5115 = vadd.f32 %v5113, %v5114
        %v5116 = vsel %vm3817, %v5095, 0.0
        %v5117 = vadd.f32 %v5115, %v5116
        %5118 = vadd.xlane.f32.xlu0 %v5117
        %v5119 = vpop.xlane.xlu0 %5118
        %v5120 = vmul.f32 %v5100, 0.0020661156
        %v5121 = vmul.f32 %v5105, 0.0020661156
        %v5122 = vmul.f32 %v5110, 0.0020661156
        %v5123 = vmul.f32 %v5119, 0.0020661156
        %v5124 = vmul.f32 %v5076, %v5076
        %v5125 = vmul.f32 %v5077, %v5077
        %v5126 = vmul.f32 %v5078, %v5078
        %v5127 = vmul.f32 %v5079, %v5079
        %v5128 = vsub.f32 %v5120, %v5124
        %v5129 = vsub.f32 %v5121, %v5125
        %v5130 = vsub.f32 %v5122, %v5126
        %v5131 = vsub.f32 %v5123, %v5127
        %v5132 = vmax.f32 %v5128, 0.0
        %v5133 = vmax.f32 %v5129, 0.0
        %v5134 = vmax.f32 %v5130, 0.0
        %v5135 = vmax.f32 %v5131, 0.0
        %v5136 = vsub.f32 %v5036, %v5076
        %v5137 = vsub.f32 %v5037, %v5076
        %v5138 = vsub.f32 %v5038, %v5076
        %v5139 = vsub.f32 %v5039, %v5076
        %v5140 = vsub.f32 %v5040, %v5077
        %v5141 = vsub.f32 %v5041, %v5077
        %v5142 = vsub.f32 %v5042, %v5077
        %v5143 = vsub.f32 %v5043, %v5077
        %v5144 = vsub.f32 %v5044, %v5078
        %v5145 = vsub.f32 %v5045, %v5078
        %v5146 = vsub.f32 %v5046, %v5078
        %v5147 = vsub.f32 %v5047, %v5078
        %v5148 = vsub.f32 %v5048, %v5079
        %v5149 = vsub.f32 %v5049, %v5079
        %v5150 = vsub.f32 %v5050, %v5079
        %v5151 = vsub.f32 %v5051, %v5079
        %v5152 = vadd.f32 %v5132, 1e-05
        %v5153 = vadd.f32 %v5133, 1e-05
        %v5154 = vadd.f32 %v5134, 1e-05
        %v5155 = vadd.f32 %v5135, 1e-05
        %v5156 = vrsqrt.pop %v5152
        %v5157 = vmul.f32 %v5156, %v5152
        %v5158 = vmul.f32 %v5157, %v5156
        %v5159 = vmul.f32 0.5, %v5158
        %v5160 = vsub.f32 1.5, %v5159
        %v5161 = vmul.f32 %v5156, %v5160
        %vm5162 = vweird.f32 %v5152
        %vm5163 = vweird.f32 %v5156
        %vm5164 = vmor %vm5162, %vm5163
        %v5165 = vsel %vm5164, %v5156, %v5161
        %v5166 = vrsqrt.pop %v5153
        %v5167 = vmul.f32 %v5166, %v5153
        %v5168 = vmul.f32 %v5167, %v5166
        %v5169 = vmul.f32 0.5, %v5168
        %v5170 = vsub.f32 1.5, %v5169
        %v5171 = vmul.f32 %v5166, %v5170
        %vm5172 = vweird.f32 %v5153
        %vm5173 = vweird.f32 %v5166
        %vm5174 = vmor %vm5172, %vm5173
        %v5175 = vsel %vm5174, %v5166, %v5171
        %v5176 = vrsqrt.pop %v5154
        %v5177 = vmul.f32 %v5176, %v5154
        %v5178 = vmul.f32 %v5177, %v5176
        %v5179 = vmul.f32 0.5, %v5178
        %v5180 = vsub.f32 1.5, %v5179
        %v5181 = vmul.f32 %v5176, %v5180
        %vm5182 = vweird.f32 %v5154
        %vm5183 = vweird.f32 %v5176
        %vm5184 = vmor %vm5182, %vm5183
        %v5185 = vsel %vm5184, %v5176, %v5181
        %v5186 = vrsqrt.pop %v5155
        %v5187 = vmul.f32 %v5186, %v5155
        %v5188 = vmul.f32 %v5187, %v5186
        %v5189 = vmul.f32 0.5, %v5188
        %v5190 = vsub.f32 1.5, %v5189
        %v5191 = vmul.f32 %v5186, %v5190
        %vm5192 = vweird.f32 %v5155
        %vm5193 = vweird.f32 %v5186
        %vm5194 = vmor %vm5192, %vm5193
        %v5195 = vsel %vm5194, %v5186, %v5191
        %v5196 = vmul.f32 %v5136, %v5165
        %v5197 = vmul.f32 %v5137, %v5165
        %v5198 = vmul.f32 %v5138, %v5165
        %v5199 = vmul.f32 %v5139, %v5165
        %v5200 = vmul.f32 %v5140, %v5175
        %v5201 = vmul.f32 %v5141, %v5175
        %v5202 = vmul.f32 %v5142, %v5175
        %v5203 = vmul.f32 %v5143, %v5175
        %v5204 = vmul.f32 %v5144, %v5185
        %v5205 = vmul.f32 %v5145, %v5185
        %v5206 = vmul.f32 %v5146, %v5185
        %v5207 = vmul.f32 %v5147, %v5185
        %v5208 = vmul.f32 %v5148, %v5195
        %v5209 = vmul.f32 %v5149, %v5195
        %v5210 = vmul.f32 %v5150, %v5195
        %v5211 = vmul.f32 %v5151, %v5195
        %v5212 = vld [vmem:[#allocation9] sm:$0xf]
        %v5214 = vperm.slane %v5212, 0
        %v5215 = vperm.slane %v5212, 1
        %v5216 = vperm.slane %v5212, 2
        %v5217 = vperm.slane %v5212, 3
        %v5222 = vmul.f32 %v5196, %v5214
        %v5223 = vmul.f32 %v5197, %v5215
        %v5224 = vmul.f32 %v5198, %v5216
        %v5225 = vmul.f32 %v5199, %v5217
        %v5226 = vmul.f32 %v5200, %v5214
        %v5227 = vmul.f32 %v5201, %v5215
        %v5228 = vmul.f32 %v5202, %v5216
        %v5229 = vmul.f32 %v5203, %v5217
        %v5230 = vmul.f32 %v5204, %v5214
        %v5231 = vmul.f32 %v5205, %v5215
        %v5232 = vmul.f32 %v5206, %v5216
        %v5233 = vmul.f32 %v5207, %v5217
        %v5234 = vmul.f32 %v5208, %v5214
        %v5235 = vmul.f32 %v5209, %v5215
        %v5236 = vmul.f32 %v5210, %v5216
        %v5237 = vmul.f32 %v5211, %v5217
        %v5238 = vld [vmem:[#allocation10] sm:$0xf]
        %v5240 = vperm.slane %v5238, 0
        %v5241 = vperm.slane %v5238, 1
        %v5242 = vperm.slane %v5238, 2
        %v5243 = vperm.slane %v5238, 3
        %v5248 = vadd.f32 %v5222, %v5240
        %v5249 = vadd.f32 %v5223, %v5241
        %v5250 = vadd.f32 %v5224, %v5242
        %v5251 = vadd.f32 %v5225, %v5243
        %v5252 = vadd.f32 %v5226, %v5240
        %v5253 = vadd.f32 %v5227, %v5241
        %v5254 = vadd.f32 %v5228, %v5242
        %v5255 = vadd.f32 %v5229, %v5243
        %v5256 = vadd.f32 %v5230, %v5240
        %v5257 = vadd.f32 %v5231, %v5241
        %v5258 = vadd.f32 %v5232, %v5242
        %v5259 = vadd.f32 %v5233, %v5243
        %v5260 = vadd.f32 %v5234, %v5240
        %v5261 = vadd.f32 %v5235, %v5241
        %v5262 = vadd.f32 %v5236, %v5242
        %v5263 = vadd.f32 %v5237, %v5243
        %5264 = vst [vmem:[%s370] sm:$0xff] %v5248
        %5265 = vst [vmem:[%s370 + $0x8] sm:$0xff] %v5249
        %5266 = vst [vmem:[%s370 + $0x10] sm:$0xff] %v5250
        %5267 = vst [vmem:[%s370 + $0x18] sm:$0xff] %v5251
        %5268 = vst [vmem:[%s370 + $0x20] sm:$0xff] %v5252
        %5269 = vst [vmem:[%s370 + $0x28] sm:$0xff] %v5253
        %5270 = vst [vmem:[%s370 + $0x30] sm:$0xff] %v5254
        %5271 = vst [vmem:[%s370 + $0x38] sm:$0xff] %v5255
        %5272 = vst [vmem:[%s370 + $0x40] sm:$0xff] %v5256
        %5273 = vst [vmem:[%s370 + $0x48] sm:$0xff] %v5257
        %5274 = vst [vmem:[%s370 + $0x50] sm:$0xff] %v5258
        %5275 = vst [vmem:[%s370 + $0x58] sm:$0xff] %v5259
        %5276 = vst [vmem:[%s370 + $0x60] sm:$0x3f] %v5260
        %5277 = vst [vmem:[%s370 + $0x68] sm:$0x3f] %v5261
        %5278 = vst [vmem:[%s370 + $0x70] sm:$0x3f] %v5262
        %5279 = vst [vmem:[%s370 + $0x78] sm:$0x3f] %v5263
        %p5280 = scmp.lt.s32.totalorder %s22, 1
        %s5281 = scalar_select %p5280, %s22, 1
        %s5282 = smul.addr %s5281, 16
        %s5283 = smul.addr %s5282, 8
        %s5284 = scalar_lea.vmem %s7, %s5283
        // Predicated region
        $region73: #{tpu_custom_call.1} parent=47 // pred_check
          %p5285 = pneg %p192
        $region74: #{tpu_custom_call.1} parent=47 // pred_check_branch
          %5287 = sbr.rel (%p5285) target = $region76
        $region75: #{tpu_custom_call.1} parent=47 // pred_region
          _
        $region76: #{tpu_custom_call.1} parent=47 // pred_fallthru
          _
      $region48: #{tpu_custom_call.1} parent=5 // pred_fallthru
        _
      %p5288 = scmp.le.s32.totalorder 2, %s17
      // Predicated region
      $region77: #{tpu_custom_call.1} parent=5 // pred_check
        %p5289 = pneg %p5288
      $region78: #{tpu_custom_call.1} parent=5 // pred_check_branch
        %5291 = sbr.rel (%p5289) target = $region80
      $region79: #{tpu_custom_call.1} parent=5 // pred_region
        %s5292 = ssub.s32 %s17, 2
        // Predicated region
        $region81: #{tpu_custom_call.1} parent=79 // pred_check
          %p5293 = pneg %p198
        $region82: #{tpu_custom_call.1} parent=79 // pred_check_branch
          %5295 = sbr.rel (%p5293) target = $region84
        $region83: #{tpu_custom_call.1} parent=79 // pred_region
          %p5296 = scmp.lt.s32.totalorder %s23, 1
          %s5297 = scalar_select %p5296, %s23, 1
          %s5298 = smul.addr %s5297, 16
          %s5299 = smul.addr %s5298, 8
          %s5300 = scalar_lea.vmem %s7, %s5299
        $region84: #{tpu_custom_call.1} parent=79 // pred_fallthru
          _
      $region80: #{tpu_custom_call.1} parent=5 // pred_fallthru
        _
    $region6: #{tpu_custom_call.1} parent=1 // loop_footer
      %s21 = sadd.s32 1, %s17
    $region7: #{tpu_custom_call.1} parent=1 // loop_footer_branch
      %16 = sbr.rel target = $region3
    $region8: #{tpu_custom_call.1} parent=1 // loop_exit
      _
    %5301 = vsyncpa [#allocation3], 1
    %s5302 = scalar_lea.sflag [#allocation3], 1
    %5303 = vsyncpa %s5302, 1
    %5304 = vsyncpa [#allocation5], 1
    %5305 = vsyncpa [#allocation8], 1
    %5306 = vsyncpa [#allocation11], 1

</llo_original>
